<compile_context>
chip_gen: v5e
topology: v5e:2x2
jax: 0.10.0
libtpu: 0.0.40
codegen_flags: <defaults>
</compile_context>

<pallas_src>
import functools
import math

import jax
import jax.numpy as jnp
from jax.experimental import pallas as pl
from jax.experimental.pallas import tpu as pltpu


# Parameters as seen by the kernels (p_b intentionally absent: it cancels in
# the softmax; p_w is pre-arranged to (H, c, D) in the wrapper).
RPE_KERNEL_PARAMS = ('q_w', 'q_b', 'k_w', 'k_b', 'v_w', 'v_b', 'p_w',
                     'o_w', 'o_b', 'ln1_g', 'ln1_b',
                     'e_w', 'e_b', 's_w', 's_b', 'ln2_g', 'ln2_b')
CROSS_KERNEL_PARAMS = ('q_w', 'q_b', 'k_w', 'k_b', 'v_w', 'v_b',
                       'o_w', 'o_b', 'ln1_g', 'ln1_b',
                       'e_w', 'e_b', 's_w', 's_b', 'ln2_g', 'ln2_b')
_MATMUL_WEIGHTS = ('q_w', 'k_w', 'v_w', 'o_w', 'e_w', 's_w')


def _layer_norm(x, gamma, beta, eps=1e-5):
    mean = jnp.mean(x, axis=-1, keepdims=True)
    var = jnp.mean((x - mean) ** 2, axis=-1, keepdims=True)
    return (x - mean) * jax.lax.rsqrt(var + eps) * gamma + beta


def _attention_ffn_body(xq, mem, p_embed, w, num_heads):
    """Fused transformer-layer math for one query tile.

    xq:      (TQ, D) f32  query tile (also the residual input)
    mem:     (M,  D) f32  key/value source
    p_embed: (TQ, M, D) bf16 RPE embedding tile, or None (cross attention)
    """
    tq, d = xq.shape
    m = mem.shape[0]
    h = num_heads
    c = d // h
    inv_sqrt_c = 1.0 / math.sqrt(c)

    xq_bf = xq.astype(jnp.bfloat16)
    mem_bf = mem.astype(jnp.bfloat16)

    # Projections (bf16 operands, f32 accumulation), biases added in f32.
    q = jnp.dot(xq_bf, w['q_w'], preferred_element_type=jnp.float32) + w['q_b']
    k = jnp.dot(mem_bf, w['k_w'], preferred_element_type=jnp.float32) + w['k_b']
    v = jnp.dot(mem_bf, w['v_w'], preferred_element_type=jnp.float32) + w['v_b']

    q3 = q.reshape(tq, h, c).astype(jnp.bfloat16)
    k3 = k.reshape(m, h, c).astype(jnp.bfloat16)
    v3 = v.reshape(m, h, c).astype(jnp.bfloat16)

    # Batched QK^T scores over all heads: (H, TQ, M).
    scores = jnp.einsum('nhc,mhc->hnm', q3, k3,
                        preferred_element_type=jnp.float32)

    if p_embed is not None:
        # RPE term: project q through p_w (w['p_w'] is (H, c, D)), then
        # contract with the raw embedding over D on the MXU.
        r = jnp.einsum('nhc,hcd->nhd', q3, w['p_w'],
                       preferred_element_type=jnp.float32)
        scores = scores + jnp.einsum('nhd,nmd->hnm',
                                     r.astype(jnp.bfloat16), p_embed,
                                     preferred_element_type=jnp.float32)

    scores = scores * inv_sqrt_c
    # TODO(synk): memory_masks (None by default in the reference) not implemented.
    scores = scores - jnp.max(scores, axis=-1, keepdims=True)
    e = jnp.exp(scores)
    attn = e * pl.reciprocal(jnp.sum(e, axis=-1, keepdims=True), approx=True)

    # Attention output for all heads at once, then merge heads.
    ctx = jnp.einsum('hnm,mhc->nhc', attn.astype(jnp.bfloat16), v3,
                     preferred_element_type=jnp.float32)
    hidden = ctx.reshape(tq, d)

    # Output projection + residual + LayerNorm (AttentionLayer).
    hidden = jnp.dot(hidden.astype(jnp.bfloat16), w['o_w'],
                     preferred_element_type=jnp.float32) + w['o_b']
    x1 = _layer_norm(hidden + xq, w['ln1_g'], w['ln1_b'])

    # Feed-forward (AttentionOutput): expand -> ReLU -> squeeze -> res + LN.
    ff = jnp.dot(x1.astype(jnp.bfloat16), w['e_w'],
                 preferred_element_type=jnp.float32) + w['e_b']
    ff = jnp.maximum(ff, 0.0)
    ff = jnp.dot(ff.astype(jnp.bfloat16), w['s_w'],
                 preferred_element_type=jnp.float32) + w['s_b']
    return _layer_norm(x1 + ff, w['ln2_g'], w['ln2_b'])


def _rpe_self_layer_kernel(xq_ref, xkv_ref, emb_ref, *refs, num_heads):
    out_ref = refs[-1]
    w = {name: r[...] for name, r in zip(RPE_KERNEL_PARAMS, refs[:-1])}
    out = _attention_ffn_body(xq_ref[...], xkv_ref[...], emb_ref[...], w, num_heads)
    out_ref[...] = out.astype(out_ref.dtype)


def _cross_layer_kernel(xq_ref, mem_ref, *refs, num_heads):
    out_ref = refs[-1]
    w = {name: r[...] for name, r in zip(CROSS_KERNEL_PARAMS, refs[:-1])}
    out = _attention_ffn_body(xq_ref[...], mem_ref[...], None, w, num_heads)
    out_ref[...] = out.astype(out_ref.dtype)


def _weight_specs(weights):
    # Constant index maps: weights stay resident across the grid.
    return [pl.BlockSpec(w.shape, lambda b, q, nd=w.ndim: (0,) * nd)
            for w in weights]


def _pick_query_tile(n, row_bytes, budget=8 * 1024 * 1024):
    """Largest tile (multiple of 8, dividing n) whose per-buffer block fits."""
    divisors = [t for t in (256, 128, 64, 32, 16, 8) if n % t == 0]
    if not divisors:
        return n
    for t in divisors:
        if t * row_bytes <= budget:
            return t
    return divisors[-1]


def _vmem_limit_bytes(in_out_block_bytes, weight_bytes, scratch_bytes):
    est = 2 * in_out_block_bytes + 2 * weight_bytes + scratch_bytes
    # Clamp to a range that is safe on v5e / v6e / v7x scoped-VMEM budgets.
    return int(min(max(2 * est, 32 * 1024 * 1024), 48 * 1024 * 1024))


def _prep_params(params, num_heads, with_rpe):
    """Cast matmul weights to bf16; rearrange p_w to (H, c, D); drop p_b."""
    out = {k: v for k, v in params.items() if k != 'p_b'}
    for name in _MATMUL_WEIGHTS:
        out[name] = params[name].astype(jnp.bfloat16)
    if with_rpe:
        d = params['p_w'].shape[0]
        c = d // num_heads
        # p_w_hcd[h, ci, din] = p_w[din, h*c + ci]
        out['p_w'] = (jnp.transpose(params['p_w'])
                      .reshape(num_heads, c, d).astype(jnp.bfloat16))
    return out


def rpe_self_layer(x, emb, params, num_heads):
    B, N, D = x.shape
    assert D % num_heads == 0
    tq = _pick_query_tile(N, row_bytes=N * D * 2)   # emb row (bf16) dominates
    nq = N // tq

    w = _prep_params(params, num_heads, with_rpe=True)
    weights = [w[name] for name in RPE_KERNEL_PARAMS]
    emb_bf = emb.astype(jnp.bfloat16)

    in_out = (tq * D + N * D + tq * D) * 4 + tq * N * D * 2
    weight_bytes = sum(math.prod(t.shape) * t.dtype.itemsize for t in weights)
    scratch = (4 * num_heads * tq * N + 3 * (tq + 2 * N) * D
               + 4 * tq * D + tq * 2 * D) * 4

    kernel = functools.partial(_rpe_self_layer_kernel, num_heads=num_heads)
    return pl.pallas_call(
        kernel,
        out_shape=jax.ShapeDtypeStruct((B, N, D), x.dtype),
        grid=(B, nq),
        in_specs=[pl.BlockSpec((None, tq, D), lambda b, q: (b, q, 0)),      # query tile
                  pl.BlockSpec((None, N, D), lambda b, q: (b, 0, 0)),       # full kv source
                  pl.BlockSpec((None, tq, N, D), lambda b, q: (b, q, 0, 0))]  # emb tile
                 + _weight_specs(weights),
        out_specs=pl.BlockSpec((None, tq, D), lambda b, q: (b, q, 0)),
        compiler_params=pltpu.CompilerParams(
            dimension_semantics=("parallel", "parallel"),
            vmem_limit_bytes=_vmem_limit_bytes(in_out, weight_bytes, scratch)),
    )(x, x, emb_bf, *weights)


def cross_layer(x, mem, params, num_heads):
    B, N, D = x.shape
    M = mem.shape[1]
    assert D % num_heads == 0
    tq = _pick_query_tile(N, row_bytes=D * 4)
    nq = N // tq

    w = _prep_params(params, num_heads, with_rpe=False)
    weights = [w[name] for name in CROSS_KERNEL_PARAMS]

    in_out = (tq * D + M * D + tq * D) * 4
    weight_bytes = sum(math.prod(t.shape) * t.dtype.itemsize for t in weights)
    scratch = (4 * num_heads * tq * M + 3 * (tq + 2 * M) * D
               + 4 * tq * D + tq * 2 * D) * 4

    kernel = functools.partial(_cross_layer_kernel, num_heads=num_heads)
    return pl.pallas_call(
        kernel,
        out_shape=jax.ShapeDtypeStruct((B, N, D), x.dtype),
        grid=(B, nq),
        in_specs=[pl.BlockSpec((None, tq, D), lambda b, q: (b, q, 0)),
                  pl.BlockSpec((None, M, D), lambda b, q: (b, 0, 0))]
                 + _weight_specs(weights),
        out_specs=pl.BlockSpec((None, tq, D), lambda b, q: (b, q, 0)),
        compiler_params=pltpu.CompilerParams(
            dimension_semantics=("parallel", "parallel"),
            vmem_limit_bytes=_vmem_limit_bytes(in_out, weight_bytes, scratch)),
    )(x, mem, *weights)


def rpe_conditional_transformer(blocks, layer_params, feats0, feats1,
                                embeddings0, embeddings1,
                                ref_overlapped_points_c_idx, src_overlapped_points_c_idx,
                                ref_no_overlapped_points_c_idx, src_no_overlapped_points_c_idx,
                                masks0=None, masks1=None,
                                num_heads=4, parallel=False,
                                return_attention_scores=False):
    """Mirrors RPEConditionalTransformer.forward.

    The *_points_c_idx arguments are accepted (as in the PyTorch signature)
    but are not used by the reference forward pass.
    """
    # TODO(synk): return_attention_scores=True path (per-layer score tensors)
    #             is not materialized; default in the reference is False.
    for block, params in zip(blocks, layer_params):
        if block == 'self':
            feats0 = rpe_self_layer(feats0, embeddings0, params, num_heads)
            feats1 = rpe_self_layer(feats1, embeddings1, params, num_heads)
        elif parallel:
            new_feats0 = cross_layer(feats0, feats1, params, num_heads)
            new_feats1 = cross_layer(feats1, feats0, params, num_heads)
            feats0, feats1 = new_feats0, new_feats1
        else:
            feats0 = cross_layer(feats0, feats1, params, num_heads)
            feats1 = cross_layer(feats1, feats0, params, num_heads)
    return feats0, feats1


def _linear_params(key, din, dout):
    kw, kb = jax.random.split(key)
    bound = 1.0 / math.sqrt(din)
    w = jax.random.uniform(kw, (din, dout), jnp.float32, -bound, bound)
    b = jax.random.uniform(kb, (1, dout), jnp.float32, -bound, bound)
    return w, b


def init_layer_params(key, d_model, with_rpe):
    ks = jax.random.split(key, 7)
    p = {}
    p['q_w'], p['q_b'] = _linear_params(ks[0], d_model, d_model)
    p['k_w'], p['k_b'] = _linear_params(ks[1], d_model, d_model)
    p['v_w'], p['v_b'] = _linear_params(ks[2], d_model, d_model)
    if with_rpe:
        # p_b kept here to mirror the PyTorch state dict, but its contribution
        # is a per-(query, head) constant that cancels in the softmax.
        p['p_w'], p['p_b'] = _linear_params(ks[3], d_model, d_model)
    p['o_w'], p['o_b'] = _linear_params(ks[4], d_model, d_model)
    p['ln1_g'] = jnp.ones((1, d_model), jnp.float32)
    p['ln1_b'] = jnp.zeros((1, d_model), jnp.float32)
    p['e_w'], p['e_b'] = _linear_params(ks[5], d_model, 2 * d_model)
    p['s_w'], p['s_b'] = _linear_params(ks[6], 2 * d_model, d_model)
    p['ln2_g'] = jnp.ones((1, d_model), jnp.float32)
    p['ln2_b'] = jnp.zeros((1, d_model), jnp.float32)
    return p


if __name__ == "__main__":
    B, N, D, H = 2, 8, 32, 4
    blocks = ('self', 'cross', 'self', 'cross')

    key = jax.random.PRNGKey(0)
    k0, k1, ke0, ke1, kp = jax.random.split(key, 5)
    feats0 = jax.random.normal(k0, (B, N, D), jnp.float32)
    feats1 = jax.random.normal(k1, (B, N, D), jnp.float32)
    embeddings0 = jax.random.normal(ke0, (B, N, N, D), jnp.float32)
    embeddings1 = jax.random.normal(ke1, (B, N, N, D), jnp.float32)

    # Present in the PyTorch forward signature but unused by its body.
    ref_overlapped_points_c_idx = jnp.arange(N, dtype=jnp.int32)
    src_overlapped_points_c_idx = jnp.arange(N, dtype=jnp.int32)
    ref_no_overlapped_points_c_idx = jnp.arange(N, dtype=jnp.int32)
    src_no_overlapped_points_c_idx = jnp.arange(N, dtype=jnp.int32)

    layer_keys = jax.random.split(kp, len(blocks))
    layer_params = [init_layer_params(layer_keys[i], D, with_rpe=(blocks[i] == 'self'))
                    for i in range(len(blocks))]

    out0, out1 = rpe_conditional_transformer(
        blocks, layer_params, feats0, feats1, embeddings0, embeddings1,
        ref_overlapped_points_c_idx, src_overlapped_points_c_idx,
        ref_no_overlapped_points_c_idx, src_no_overlapped_points_c_idx,
        masks0=None, masks1=None, num_heads=H, parallel=False,
        return_attention_scores=False)

    jax.block_until_ready((out0, out1))
    assert out0.shape == (B, N, D) and out1.shape == (B, N, D)
    assert bool(jnp.all(jnp.isfinite(out0))) and bool(jnp.all(jnp.isfinite(out1)))
    print("KERNEL_OK")
</pallas_src>

<mosaic_0001>
module attributes {stable_mosaic.version = 11 : i64} {
  func.func @_rpe_self_layer_kernel(%arg0: i32, %arg1: i32, %arg2: memref<1x8x32xf32, #tpu.memory_space<vmem>>, %arg3: memref<1x8x32xf32, #tpu.memory_space<vmem>>, %arg4: memref<1x8x8x32xbf16, #tpu.memory_space<vmem>>, %arg5: memref<32x32xbf16, #tpu.memory_space<vmem>>, %arg6: memref<1x32xf32, #tpu.memory_space<vmem>>, %arg7: memref<32x32xbf16, #tpu.memory_space<vmem>>, %arg8: memref<1x32xf32, #tpu.memory_space<vmem>>, %arg9: memref<32x32xbf16, #tpu.memory_space<vmem>>, %arg10: memref<1x32xf32, #tpu.memory_space<vmem>>, %arg11: memref<4x8x32xbf16, #tpu.memory_space<vmem>>, %arg12: memref<32x32xbf16, #tpu.memory_space<vmem>>, %arg13: memref<1x32xf32, #tpu.memory_space<vmem>>, %arg14: memref<1x32xf32, #tpu.memory_space<vmem>>, %arg15: memref<1x32xf32, #tpu.memory_space<vmem>>, %arg16: memref<32x64xbf16, #tpu.memory_space<vmem>>, %arg17: memref<1x64xf32, #tpu.memory_space<vmem>>, %arg18: memref<64x32xbf16, #tpu.memory_space<vmem>>, %arg19: memref<1x32xf32, #tpu.memory_space<vmem>>, %arg20: memref<1x32xf32, #tpu.memory_space<vmem>>, %arg21: memref<1x32xf32, #tpu.memory_space<vmem>>, %arg22: memref<1x8x32xf32, #tpu.memory_space<vmem>>) attributes {dimension_semantics = [#tpu.dimension_semantics<parallel>, #tpu.dimension_semantics<parallel>], iteration_bounds = array<i64: 2, 1>, scalar_prefetch = 0 : i64, scratch_operands = 0 : i64, tpu.core_type = #tpu.core_type<tc>, window_params = [{transform_indices = @transform_0, window_bounds = array<i64: 1, 8, 32>}, {transform_indices = @transform_1, window_bounds = array<i64: 1, 8, 32>}, {transform_indices = @transform_2, window_bounds = array<i64: 1, 8, 8, 32>}, {pipeline_mode = #tpu.pipeline_mode<synchronous>, transform_indices = @transform_3, window_bounds = array<i64: 32, 32>}, {pipeline_mode = #tpu.pipeline_mode<synchronous>, transform_indices = @transform_4, window_bounds = array<i64: 1, 32>}, {pipeline_mode = #tpu.pipeline_mode<synchronous>, transform_indices = @transform_5, window_bounds = array<i64: 32, 32>}, {pipeline_mode = #tpu.pipeline_mode<synchronous>, transform_indices = @transform_6, window_bounds = array<i64: 1, 32>}, {pipeline_mode = #tpu.pipeline_mode<synchronous>, transform_indices = @transform_7, window_bounds = array<i64: 32, 32>}, {pipeline_mode = #tpu.pipeline_mode<synchronous>, transform_indices = @transform_8, window_bounds = array<i64: 1, 32>}, {pipeline_mode = #tpu.pipeline_mode<synchronous>, transform_indices = @transform_9, window_bounds = array<i64: 4, 8, 32>}, {pipeline_mode = #tpu.pipeline_mode<synchronous>, transform_indices = @transform_10, window_bounds = array<i64: 32, 32>}, {pipeline_mode = #tpu.pipeline_mode<synchronous>, transform_indices = @transform_11, window_bounds = array<i64: 1, 32>}, {pipeline_mode = #tpu.pipeline_mode<synchronous>, transform_indices = @transform_12, window_bounds = array<i64: 1, 32>}, {pipeline_mode = #tpu.pipeline_mode<synchronous>, transform_indices = @transform_13, window_bounds = array<i64: 1, 32>}, {pipeline_mode = #tpu.pipeline_mode<synchronous>, transform_indices = @transform_14, window_bounds = array<i64: 32, 64>}, {pipeline_mode = #tpu.pipeline_mode<synchronous>, transform_indices = @transform_15, window_bounds = array<i64: 1, 64>}, {pipeline_mode = #tpu.pipeline_mode<synchronous>, transform_indices = @transform_16, window_bounds = array<i64: 64, 32>}, {pipeline_mode = #tpu.pipeline_mode<synchronous>, transform_indices = @transform_17, window_bounds = array<i64: 1, 32>}, {pipeline_mode = #tpu.pipeline_mode<synchronous>, transform_indices = @transform_18, window_bounds = array<i64: 1, 32>}, {pipeline_mode = #tpu.pipeline_mode<synchronous>, transform_indices = @transform_19, window_bounds = array<i64: 1, 32>}, {transform_indices = @transform_20, window_bounds = array<i64: 1, 8, 32>}]} {
    %c0 = arith.constant 0 : index
    %c0_0 = arith.constant 0 : index
    %0 = vector.load %arg5[%c0, %c0_0] : memref<32x32xbf16, #tpu.memory_space<vmem>>, vector<32x32xbf16>
    %c0_1 = arith.constant 0 : index
    %c0_2 = arith.constant 0 : index
    %1 = vector.load %arg6[%c0_1, %c0_2] : memref<1x32xf32, #tpu.memory_space<vmem>>, vector<1x32xf32>
    %c0_3 = arith.constant 0 : index
    %c0_4 = arith.constant 0 : index
    %2 = vector.load %arg7[%c0_3, %c0_4] : memref<32x32xbf16, #tpu.memory_space<vmem>>, vector<32x32xbf16>
    %c0_5 = arith.constant 0 : index
    %c0_6 = arith.constant 0 : index
    %3 = vector.load %arg8[%c0_5, %c0_6] : memref<1x32xf32, #tpu.memory_space<vmem>>, vector<1x32xf32>
    %c0_7 = arith.constant 0 : index
    %c0_8 = arith.constant 0 : index
    %4 = vector.load %arg9[%c0_7, %c0_8] : memref<32x32xbf16, #tpu.memory_space<vmem>>, vector<32x32xbf16>
    %c0_9 = arith.constant 0 : index
    %c0_10 = arith.constant 0 : index
    %5 = vector.load %arg10[%c0_9, %c0_10] : memref<1x32xf32, #tpu.memory_space<vmem>>, vector<1x32xf32>
    %c0_11 = arith.constant 0 : index
    %c0_12 = arith.constant 0 : index
    %c0_13 = arith.constant 0 : index
    %6 = vector.load %arg11[%c0_11, %c0_12, %c0_13] : memref<4x8x32xbf16, #tpu.memory_space<vmem>>, vector<4x8x32xbf16>
    %c0_14 = arith.constant 0 : index
    %c0_15 = arith.constant 0 : index
    %7 = vector.load %arg12[%c0_14, %c0_15] : memref<32x32xbf16, #tpu.memory_space<vmem>>, vector<32x32xbf16>
    %c0_16 = arith.constant 0 : index
    %c0_17 = arith.constant 0 : index
    %8 = vector.load %arg13[%c0_16, %c0_17] : memref<1x32xf32, #tpu.memory_space<vmem>>, vector<1x32xf32>
    %c0_18 = arith.constant 0 : index
    %c0_19 = arith.constant 0 : index
    %9 = vector.load %arg14[%c0_18, %c0_19] : memref<1x32xf32, #tpu.memory_space<vmem>>, vector<1x32xf32>
    %c0_20 = arith.constant 0 : index
    %c0_21 = arith.constant 0 : index
    %10 = vector.load %arg15[%c0_20, %c0_21] : memref<1x32xf32, #tpu.memory_space<vmem>>, vector<1x32xf32>
    %c0_22 = arith.constant 0 : index
    %c0_23 = arith.constant 0 : index
    %11 = vector.load %arg16[%c0_22, %c0_23] : memref<32x64xbf16, #tpu.memory_space<vmem>>, vector<32x64xbf16>
    %c0_24 = arith.constant 0 : index
    %c0_25 = arith.constant 0 : index
    %12 = vector.load %arg17[%c0_24, %c0_25] : memref<1x64xf32, #tpu.memory_space<vmem>>, vector<1x64xf32>
    %c0_26 = arith.constant 0 : index
    %c0_27 = arith.constant 0 : index
    %13 = vector.load %arg18[%c0_26, %c0_27] : memref<64x32xbf16, #tpu.memory_space<vmem>>, vector<64x32xbf16>
    %c0_28 = arith.constant 0 : index
    %c0_29 = arith.constant 0 : index
    %14 = vector.load %arg19[%c0_28, %c0_29] : memref<1x32xf32, #tpu.memory_space<vmem>>, vector<1x32xf32>
    %c0_30 = arith.constant 0 : index
    %c0_31 = arith.constant 0 : index
    %15 = vector.load %arg20[%c0_30, %c0_31] : memref<1x32xf32, #tpu.memory_space<vmem>>, vector<1x32xf32>
    %c0_32 = arith.constant 0 : index
    %c0_33 = arith.constant 0 : index
    %16 = vector.load %arg21[%c0_32, %c0_33] : memref<1x32xf32, #tpu.memory_space<vmem>>, vector<1x32xf32>
    %c0_34 = arith.constant 0 : index
    %c0_35 = arith.constant 0 : index
    %c0_36 = arith.constant 0 : index
    %17 = vector.load %arg2[%c0_34, %c0_35, %c0_36] : memref<1x8x32xf32, #tpu.memory_space<vmem>>, vector<1x8x32xf32>
    %18 = vector.shape_cast %17 : vector<1x8x32xf32> to vector<8x32xf32>
    %c0_37 = arith.constant 0 : index
    %c0_38 = arith.constant 0 : index
    %c0_39 = arith.constant 0 : index
    %19 = vector.load %arg3[%c0_37, %c0_38, %c0_39] : memref<1x8x32xf32, #tpu.memory_space<vmem>>, vector<1x8x32xf32>
    %20 = vector.shape_cast %19 : vector<1x8x32xf32> to vector<8x32xf32>
    %c0_40 = arith.constant 0 : index
    %c0_41 = arith.constant 0 : index
    %c0_42 = arith.constant 0 : index
    %c0_43 = arith.constant 0 : index
    %21 = vector.load %arg4[%c0_40, %c0_41, %c0_42, %c0_43] : memref<1x8x8x32xbf16, #tpu.memory_space<vmem>>, vector<1x8x8x32xbf16>
    %22 = vector.shape_cast %21 : vector<1x8x8x32xbf16> to vector<8x8x32xbf16>
    %23 = arith.truncf %18 : vector<8x32xf32> to vector<8x32xbf16>
    %24 = arith.truncf %20 : vector<8x32xf32> to vector<8x32xbf16>
    %cst = arith.constant dense<0.000000e+00> : vector<8x32xf32>
    %25 = tpu.matmul %23, %0, %cst {dimension_numbers = #tpu.dot_dimension_numbers<[1], [0], [0], [1], [0, 0, 1, 1], [], []>} : vector<8x32xbf16>, vector<32x32xbf16>, vector<8x32xf32> -> vector<8x32xf32>
    %26 = vector.broadcast %1 : vector<1x32xf32> to vector<8x32xf32>
    %27 = arith.addf %25, %26 : vector<8x32xf32>
    %cst_44 = arith.constant dense<0.000000e+00> : vector<8x32xf32>
    %28 = tpu.matmul %24, %2, %cst_44 {dimension_numbers = #tpu.dot_dimension_numbers<[1], [0], [0], [1], [0, 0, 1, 1], [], []>} : vector<8x32xbf16>, vector<32x32xbf16>, vector<8x32xf32> -> vector<8x32xf32>
    %29 = vector.broadcast %3 : vector<1x32xf32> to vector<8x32xf32>
    %30 = arith.addf %28, %29 : vector<8x32xf32>
    %cst_45 = arith.constant dense<0.000000e+00> : vector<8x32xf32>
    %31 = tpu.matmul %24, %4, %cst_45 {dimension_numbers = #tpu.dot_dimension_numbers<[1], [0], [0], [1], [0, 0, 1, 1], [], []>} : vector<8x32xbf16>, vector<32x32xbf16>, vector<8x32xf32> -> vector<8x32xf32>
    %32 = vector.broadcast %5 : vector<1x32xf32> to vector<8x32xf32>
    %33 = arith.addf %31, %32 : vector<8x32xf32>
    %34 = vector.shape_cast %27 : vector<8x32xf32> to vector<8x4x8xf32>
    %35 = arith.truncf %34 : vector<8x4x8xf32> to vector<8x4x8xbf16>
    %36 = vector.shape_cast %30 : vector<8x32xf32> to vector<8x4x8xf32>
    %37 = arith.truncf %36 : vector<8x4x8xf32> to vector<8x4x8xbf16>
    %38 = vector.shape_cast %33 : vector<8x32xf32> to vector<8x4x8xf32>
    %39 = arith.truncf %38 : vector<8x4x8xf32> to vector<8x4x8xbf16>
    "tpu.trace_start"() <{level = 10 : i32, message = "nhc,mhc->hnm"}> : () -> ()
    %cst_46 = arith.constant dense<0.000000e+00> : vector<4x8x8xf32>
    %40 = tpu.matmul %35, %37, %cst_46 {dimension_numbers = #tpu.dot_dimension_numbers<[2], [2], [0], [0], [0, 1, 0, 0, 1, 0], [1], [1]>} : vector<8x4x8xbf16>, vector<8x4x8xbf16>, vector<4x8x8xf32> -> vector<4x8x8xf32>
    "tpu.trace_stop"() : () -> ()
    "tpu.trace_start"() <{level = 10 : i32, message = "nhc,hcd->nhd"}> : () -> ()
    %cst_47 = arith.constant dense<0.000000e+00> : vector<4x32x8xf32>
    %41 = tpu.matmul %6, %35, %cst_47 {dimension_numbers = #tpu.dot_dimension_numbers<[1], [2], [2], [0], [0, 0, 0, 2, 1, 0], [0], [1]>} : vector<4x8x32xbf16>, vector<8x4x8xbf16>, vector<4x32x8xf32> -> vector<4x32x8xf32>
    %42 = tpu.transpose %41, [2, 0, 1] : vector<4x32x8xf32> -> vector<8x4x32xf32>
    "tpu.trace_stop"() : () -> ()
    %43 = arith.truncf %42 : vector<8x4x32xf32> to vector<8x4x32xbf16>
    "tpu.trace_start"() <{level = 10 : i32, message = "nhd,nmd->hnm"}> : () -> ()
    %cst_48 = arith.constant dense<0.000000e+00> : vector<8x8x4xf32>
    %44 = tpu.matmul %22, %43, %cst_48 {dimension_numbers = #tpu.dot_dimension_numbers<[2], [2], [1], [1], [0, 0, 0, 1, 1, 1], [0], [0]>} : vector<8x8x32xbf16>, vector<8x4x32xbf16>, vector<8x8x4xf32> -> vector<8x8x4xf32>
    %45 = tpu.transpose %44, [2, 0, 1] : vector<8x8x4xf32> -> vector<4x8x8xf32>
    "tpu.trace_stop"() : () -> ()
    %46 = arith.addf %40, %45 : vector<4x8x8xf32>
    %cst_49 = arith.constant 0.353553385 : f32
    %47 = vector.broadcast %cst_49 : f32 to vector<4x8x8xf32>
    %48 = arith.mulf %46, %47 : vector<4x8x8xf32>
    %cst_50 = arith.constant dense<0xFF800000> : vector<4x8xf32>
    %49 = vector.multi_reduction <maximumf>, %48, %cst_50 [2] : vector<4x8x8xf32> to vector<4x8xf32>
    %50 = vector.shape_cast %49 : vector<4x8xf32> to vector<4x8x1xf32>
    %51 = vector.broadcast %50 : vector<4x8x1xf32> to vector<4x8x8xf32>
    %52 = arith.subf %48, %51 : vector<4x8x8xf32>
    %53 = math.exp %52 : vector<4x8x8xf32>
    %cst_51 = arith.constant dense<0.000000e+00> : vector<4x8xf32>
    %54 = vector.multi_reduction <add>, %53, %cst_51 [2] : vector<4x8x8xf32> to vector<4x8xf32>
    %55 = vector.shape_cast %54 : vector<4x8xf32> to vector<4x8x1xf32>
    %56 = tpu.reciprocal %55 {approx = true} : vector<4x8x1xf32> -> vector<4x8x1xf32>
    %57 = vector.broadcast %56 : vector<4x8x1xf32> to vector<4x8x8xf32>
    %58 = arith.mulf %53, %57 : vector<4x8x8xf32>
    %59 = arith.truncf %58 : vector<4x8x8xf32> to vector<4x8x8xbf16>
    "tpu.trace_start"() <{level = 10 : i32, message = "hnm,mhc->nhc"}> : () -> ()
    %cst_52 = arith.constant dense<0.000000e+00> : vector<4x8x8xf32>
    %60 = tpu.matmul %39, %59, %cst_52 {dimension_numbers = #tpu.dot_dimension_numbers<[0], [2], [2], [1], [0, 1, 0, 2, 1, 1], [1], [0]>} : vector<8x4x8xbf16>, vector<4x8x8xbf16>, vector<4x8x8xf32> -> vector<4x8x8xf32>
    %61 = tpu.transpose %60, [2, 0, 1] : vector<4x8x8xf32> -> vector<8x4x8xf32>
    "tpu.trace_stop"() : () -> ()
    %62 = vector.shape_cast %61 : vector<8x4x8xf32> to vector<8x32xf32>
    %63 = arith.truncf %62 : vector<8x32xf32> to vector<8x32xbf16>
    %cst_53 = arith.constant dense<0.000000e+00> : vector<8x32xf32>
    %64 = tpu.matmul %63, %7, %cst_53 {dimension_numbers = #tpu.dot_dimension_numbers<[1], [0], [0], [1], [0, 0, 1, 1], [], []>} : vector<8x32xbf16>, vector<32x32xbf16>, vector<8x32xf32> -> vector<8x32xf32>
    %65 = vector.broadcast %8 : vector<1x32xf32> to vector<8x32xf32>
    %66 = arith.addf %64, %65 : vector<8x32xf32>
    %67 = arith.addf %66, %18 : vector<8x32xf32>
    %cst_54 = arith.constant dense<0.000000e+00> : vector<8xf32>
    %68 = vector.multi_reduction <add>, %67, %cst_54 [1] : vector<8x32xf32> to vector<8xf32>
    %69 = vector.shape_cast %68 : vector<8xf32> to vector<8x1xf32>
    %cst_55 = arith.constant 3.200000e+01 : f32
    %70 = vector.broadcast %cst_55 : f32 to vector<8x1xf32>
    %71 = arith.divf %69, %70 : vector<8x1xf32>
    %72 = vector.broadcast %71 : vector<8x1xf32> to vector<8x32xf32>
    %73 = arith.subf %67, %72 : vector<8x32xf32>
    %74 = arith.mulf %73, %73 : vector<8x32xf32>
    %cst_56 = arith.constant dense<0.000000e+00> : vector<8xf32>
    %75 = vector.multi_reduction <add>, %74, %cst_56 [1] : vector<8x32xf32> to vector<8xf32>
    %76 = vector.shape_cast %75 : vector<8xf32> to vector<8x1xf32>
    %cst_57 = arith.constant 3.200000e+01 : f32
    %77 = vector.broadcast %cst_57 : f32 to vector<8x1xf32>
    %78 = arith.divf %76, %77 : vector<8x1xf32>
    %79 = vector.broadcast %71 : vector<8x1xf32> to vector<8x32xf32>
    %80 = arith.subf %67, %79 : vector<8x32xf32>
    %cst_58 = arith.constant 9.99999974E-6 : f32
    %81 = vector.broadcast %cst_58 : f32 to vector<8x1xf32>
    %82 = arith.addf %78, %81 : vector<8x1xf32>
    %83 = math.rsqrt %82 : vector<8x1xf32>
    %84 = vector.broadcast %83 : vector<8x1xf32> to vector<8x32xf32>
    %85 = arith.mulf %80, %84 : vector<8x32xf32>
    %86 = vector.broadcast %9 : vector<1x32xf32> to vector<8x32xf32>
    %87 = arith.mulf %85, %86 : vector<8x32xf32>
    %88 = vector.broadcast %10 : vector<1x32xf32> to vector<8x32xf32>
    %89 = arith.addf %87, %88 : vector<8x32xf32>
    %90 = arith.truncf %89 : vector<8x32xf32> to vector<8x32xbf16>
    %cst_59 = arith.constant dense<0.000000e+00> : vector<8x64xf32>
    %91 = tpu.matmul %90, %11, %cst_59 {dimension_numbers = #tpu.dot_dimension_numbers<[1], [0], [0], [1], [0, 0, 1, 1], [], []>} : vector<8x32xbf16>, vector<32x64xbf16>, vector<8x64xf32> -> vector<8x64xf32>
    %92 = vector.broadcast %12 : vector<1x64xf32> to vector<8x64xf32>
    %93 = arith.addf %91, %92 : vector<8x64xf32>
    %cst_60 = arith.constant 0.000000e+00 : f32
    %94 = vector.broadcast %cst_60 : f32 to vector<8x64xf32>
    %95 = arith.maximumf %93, %94 : vector<8x64xf32>
    %96 = arith.truncf %95 : vector<8x64xf32> to vector<8x64xbf16>
    %cst_61 = arith.constant dense<0.000000e+00> : vector<8x32xf32>
    %97 = tpu.matmul %96, %13, %cst_61 {dimension_numbers = #tpu.dot_dimension_numbers<[1], [0], [0], [1], [0, 0, 1, 1], [], []>} : vector<8x64xbf16>, vector<64x32xbf16>, vector<8x32xf32> -> vector<8x32xf32>
    %98 = vector.broadcast %14 : vector<1x32xf32> to vector<8x32xf32>
    %99 = arith.addf %97, %98 : vector<8x32xf32>
    %100 = arith.addf %89, %99 : vector<8x32xf32>
    %cst_62 = arith.constant dense<0.000000e+00> : vector<8xf32>
    %101 = vector.multi_reduction <add>, %100, %cst_62 [1] : vector<8x32xf32> to vector<8xf32>
    %102 = vector.shape_cast %101 : vector<8xf32> to vector<8x1xf32>
    %cst_63 = arith.constant 3.200000e+01 : f32
    %103 = vector.broadcast %cst_63 : f32 to vector<8x1xf32>
    %104 = arith.divf %102, %103 : vector<8x1xf32>
    %105 = vector.broadcast %104 : vector<8x1xf32> to vector<8x32xf32>
    %106 = arith.subf %100, %105 : vector<8x32xf32>
    %107 = arith.mulf %106, %106 : vector<8x32xf32>
    %cst_64 = arith.constant dense<0.000000e+00> : vector<8xf32>
    %108 = vector.multi_reduction <add>, %107, %cst_64 [1] : vector<8x32xf32> to vector<8xf32>
    %109 = vector.shape_cast %108 : vector<8xf32> to vector<8x1xf32>
    %cst_65 = arith.constant 3.200000e+01 : f32
    %110 = vector.broadcast %cst_65 : f32 to vector<8x1xf32>
    %111 = arith.divf %109, %110 : vector<8x1xf32>
    %112 = vector.broadcast %104 : vector<8x1xf32> to vector<8x32xf32>
    %113 = arith.subf %100, %112 : vector<8x32xf32>
    %cst_66 = arith.constant 9.99999974E-6 : f32
    %114 = vector.broadcast %cst_66 : f32 to vector<8x1xf32>
    %115 = arith.addf %111, %114 : vector<8x1xf32>
    %116 = math.rsqrt %115 : vector<8x1xf32>
    %117 = vector.broadcast %116 : vector<8x1xf32> to vector<8x32xf32>
    %118 = arith.mulf %113, %117 : vector<8x32xf32>
    %119 = vector.broadcast %15 : vector<1x32xf32> to vector<8x32xf32>
    %120 = arith.mulf %118, %119 : vector<8x32xf32>
    %121 = vector.broadcast %16 : vector<1x32xf32> to vector<8x32xf32>
    %122 = arith.addf %120, %121 : vector<8x32xf32>
    %c0_67 = arith.constant 0 : index
    %c0_68 = arith.constant 0 : index
    %c0_69 = arith.constant 0 : index
    %123 = vector.load %arg22[%c0_67, %c0_68, %c0_69] : memref<1x8x32xf32, #tpu.memory_space<vmem>>, vector<1x8x32xf32>
    %124 = vector.shape_cast %123 : vector<1x8x32xf32> to vector<8x32xf32>
    %125 = vector.shape_cast %122 : vector<8x32xf32> to vector<1x8x32xf32>
    tpu.vector_store %arg22[%c0_67, %c0_68, %c0_69], %125 {strides = array<i32>} : memref<1x8x32xf32, #tpu.memory_space<vmem>>, vector<1x8x32xf32>,
    return
  }
  func.func @transform_0(%arg0: i32, %arg1: i32) -> (i32, i32, i32) {
    %c0_i32 = arith.constant 0 : i32
    %c0_i32_0 = arith.constant 0 : i32
    return %arg0, %arg1, %c0_i32 : i32, i32, i32
  }
  func.func @transform_1(%arg0: i32, %arg1: i32) -> (i32, i32, i32) {
    %c0_i32 = arith.constant 0 : i32
    %c0_i32_0 = arith.constant 0 : i32
    %c0_i32_1 = arith.constant 0 : i32
    return %arg0, %c0_i32, %c0_i32_0 : i32, i32, i32
  }
  func.func @transform_2(%arg0: i32, %arg1: i32) -> (i32, i32, i32, i32) {
    %c0_i32 = arith.constant 0 : i32
    %c0_i32_0 = arith.constant 0 : i32
    %c0_i32_1 = arith.constant 0 : i32
    return %arg0, %arg1, %c0_i32, %c0_i32_0 : i32, i32, i32, i32
  }
  func.func @transform_3(%arg0: i32, %arg1: i32) -> (i32, i32) {
    %c0_i32 = arith.constant 0 : i32
    %c0_i32_0 = arith.constant 0 : i32
    %c0_i32_1 = arith.constant 0 : i32
    return %c0_i32, %c0_i32_0 : i32, i32
  }
  func.func @transform_4(%arg0: i32, %arg1: i32) -> (i32, i32) {
    %c0_i32 = arith.constant 0 : i32
    %c0_i32_0 = arith.constant 0 : i32
    %c0_i32_1 = arith.constant 0 : i32
    return %c0_i32, %c0_i32_0 : i32, i32
  }
  func.func @transform_5(%arg0: i32, %arg1: i32) -> (i32, i32) {
    %c0_i32 = arith.constant 0 : i32
    %c0_i32_0 = arith.constant 0 : i32
    %c0_i32_1 = arith.constant 0 : i32
    return %c0_i32, %c0_i32_0 : i32, i32
  }
  func.func @transform_6(%arg0: i32, %arg1: i32) -> (i32, i32) {
    %c0_i32 = arith.constant 0 : i32
    %c0_i32_0 = arith.constant 0 : i32
    %c0_i32_1 = arith.constant 0 : i32
    return %c0_i32, %c0_i32_0 : i32, i32
  }
  func.func @transform_7(%arg0: i32, %arg1: i32) -> (i32, i32) {
    %c0_i32 = arith.constant 0 : i32
    %c0_i32_0 = arith.constant 0 : i32
    %c0_i32_1 = arith.constant 0 : i32
    return %c0_i32, %c0_i32_0 : i32, i32
  }
  func.func @transform_8(%arg0: i32, %arg1: i32) -> (i32, i32) {
    %c0_i32 = arith.constant 0 : i32
    %c0_i32_0 = arith.constant 0 : i32
    %c0_i32_1 = arith.constant 0 : i32
    return %c0_i32, %c0_i32_0 : i32, i32
  }
  func.func @transform_9(%arg0: i32, %arg1: i32) -> (i32, i32, i32) {
    %c0_i32 = arith.constant 0 : i32
    %c0_i32_0 = arith.constant 0 : i32
    %c0_i32_1 = arith.constant 0 : i32
    %c0_i32_2 = arith.constant 0 : i32
    return %c0_i32, %c0_i32_0, %c0_i32_1 : i32, i32, i32
  }
  func.func @transform_10(%arg0: i32, %arg1: i32) -> (i32, i32) {
    %c0_i32 = arith.constant 0 : i32
    %c0_i32_0 = arith.constant 0 : i32
    %c0_i32_1 = arith.constant 0 : i32
    return %c0_i32, %c0_i32_0 : i32, i32
  }
  func.func @transform_11(%arg0: i32, %arg1: i32) -> (i32, i32) {
    %c0_i32 = arith.constant 0 : i32
    %c0_i32_0 = arith.constant 0 : i32
    %c0_i32_1 = arith.constant 0 : i32
    return %c0_i32, %c0_i32_0 : i32, i32
  }
  func.func @transform_12(%arg0: i32, %arg1: i32) -> (i32, i32) {
    %c0_i32 = arith.constant 0 : i32
    %c0_i32_0 = arith.constant 0 : i32
    %c0_i32_1 = arith.constant 0 : i32
    return %c0_i32, %c0_i32_0 : i32, i32
  }
  func.func @transform_13(%arg0: i32, %arg1: i32) -> (i32, i32) {
    %c0_i32 = arith.constant 0 : i32
    %c0_i32_0 = arith.constant 0 : i32
    %c0_i32_1 = arith.constant 0 : i32
    return %c0_i32, %c0_i32_0 : i32, i32
  }
  func.func @transform_14(%arg0: i32, %arg1: i32) -> (i32, i32) {
    %c0_i32 = arith.constant 0 : i32
    %c0_i32_0 = arith.constant 0 : i32
    %c0_i32_1 = arith.constant 0 : i32
    return %c0_i32, %c0_i32_0 : i32, i32
  }
  func.func @transform_15(%arg0: i32, %arg1: i32) -> (i32, i32) {
    %c0_i32 = arith.constant 0 : i32
    %c0_i32_0 = arith.constant 0 : i32
    %c0_i32_1 = arith.constant 0 : i32
    return %c0_i32, %c0_i32_0 : i32, i32
  }
  func.func @transform_16(%arg0: i32, %arg1: i32) -> (i32, i32) {
    %c0_i32 = arith.constant 0 : i32
    %c0_i32_0 = arith.constant 0 : i32
    %c0_i32_1 = arith.constant 0 : i32
    return %c0_i32, %c0_i32_0 : i32, i32
  }
  func.func @transform_17(%arg0: i32, %arg1: i32) -> (i32, i32) {
    %c0_i32 = arith.constant 0 : i32
    %c0_i32_0 = arith.constant 0 : i32
    %c0_i32_1 = arith.constant 0 : i32
    return %c0_i32, %c0_i32_0 : i32, i32
  }
  func.func @transform_18(%arg0: i32, %arg1: i32) -> (i32, i32) {
    %c0_i32 = arith.constant 0 : i32
    %c0_i32_0 = arith.constant 0 : i32
    %c0_i32_1 = arith.constant 0 : i32
    return %c0_i32, %c0_i32_0 : i32, i32
  }
  func.func @transform_19(%arg0: i32, %arg1: i32) -> (i32, i32) {
    %c0_i32 = arith.constant 0 : i32
    %c0_i32_0 = arith.constant 0 : i32
    %c0_i32_1 = arith.constant 0 : i32
    return %c0_i32, %c0_i32_0 : i32, i32
  }
  func.func @transform_20(%arg0: i32, %arg1: i32) -> (i32, i32, i32) {
    %c0_i32 = arith.constant 0 : i32
    %c0_i32_0 = arith.constant 0 : i32
    return %arg0, %arg1, %c0_i32 : i32, i32, i32
  }
}

</mosaic_0001>

<llo_original>
// kernel: tpu_custom_call.1
$region0: #{tpu_custom_call.1}
  #allocation0 [shape = 'u32[]', space=smem, size = 0x4, offset = 0x4, fixed_abs, tag = 'smem constant byte address 0x4 - core index']
  #allocation1 [shape = 'u32[72,128]{1,0:T(1,128)}', space=vmem, size = 0x9000, scoped, tag = 'internal scratch']
  %s0 = inlined_call_operand.vmem [shape: f32[2,8,32], index: 0, kind: input, shape index: {}]
  %s1 = inlined_call_operand.vmem [shape: f32[2,8,32], index: 1, kind: input, shape index: {}]
  %s2 = inlined_call_operand.hbm [shape: bf16[2,8,8,32], index: 2, kind: input, shape index: {}]
  %s3 = inlined_call_operand.vmem [shape: bf16[32,32], index: 3, kind: input, shape index: {}]
  %s4 = inlined_call_operand.vmem [shape: f32[1,32], index: 4, kind: input, shape index: {}]
  %s5 = inlined_call_operand.hbm [shape: bf16[32,32], index: 5, kind: input, shape index: {}]
  %s6 = inlined_call_operand.vmem [shape: f32[1,32], index: 6, kind: input, shape index: {}]
  %s7 = inlined_call_operand.hbm [shape: bf16[32,32], index: 7, kind: input, shape index: {}]
  %s8 = inlined_call_operand.vmem [shape: f32[1,32], index: 8, kind: input, shape index: {}]
  %s9 = inlined_call_operand.hbm [shape: bf16[4,8,32], index: 9, kind: input, shape index: {}]
  %s10 = inlined_call_operand.hbm [shape: bf16[32,32], index: 10, kind: input, shape index: {}]
  %s11 = inlined_call_operand.vmem [shape: f32[1,32], index: 11, kind: input, shape index: {}]
  %s12 = inlined_call_operand.vmem [shape: f32[1,32], index: 12, kind: input, shape index: {}]
  %s13 = inlined_call_operand.vmem [shape: f32[1,32], index: 13, kind: input, shape index: {}]
  %s14 = inlined_call_operand.hbm [shape: bf16[32,64], index: 14, kind: input, shape index: {}]
  %s15 = inlined_call_operand.vmem [shape: f32[1,64], index: 15, kind: input, shape index: {}]
  %s16 = inlined_call_operand.vmem [shape: bf16[64,32], index: 16, kind: input, shape index: {}]
  %s17 = inlined_call_operand.vmem [shape: f32[1,32], index: 17, kind: input, shape index: {}]
  %s18 = inlined_call_operand.vmem [shape: f32[1,32], index: 18, kind: input, shape index: {}]
  %s19 = inlined_call_operand.vmem [shape: f32[1,32], index: 19, kind: input, shape index: {}]
  %s20 = inlined_call_operand.hbm [shape: f32[2,8,32], index: 20, kind: output, shape index: {}]
  %s21 = sld [smem:[#allocation0]]
  $region137: #{tpu_custom_call.1} parent=0
    _
  %s23 = ssub.s32 1, %s21
  %s24 = scalar_select 0, %s23, %s21
  $region1: #{tpu_custom_call.1} parent=0
    #allocation2 [shape = 'u8[32768]{0}', space=vmem, size = 0x8000, scoped, tag = 'input window, operand 2']
    #allocation3 [shape = 's32[2]{0}', space=sflag, size = 0x8, scoped, tag = 'scoped memory for tpu_custom_call.1']
    #allocation4 [shape = 's32[2]{0}', space=sflag, size = 0x8, scoped, tag = 'scoped memory for tpu_custom_call.1']
    #allocation5 [shape = 'u8[8192]{0}', space=vmem, size = 0x2000, scoped, tag = 'input window, operand 5, single buffered']
    #allocation6 [shape = 's32[1]{0}', space=sflag, size = 0x4, scoped, tag = 'scoped memory for tpu_custom_call.1']
    #allocation7 [shape = 'u8[8192]{0}', space=vmem, size = 0x2000, scoped, tag = 'input window, operand 7, single buffered']
    #allocation8 [shape = 'u8[8192]{0}', space=vmem, size = 0x2000, scoped, tag = 'input window, operand 9, single buffered']
    #allocation9 [shape = 's32[1]{0}', space=sflag, size = 0x4, scoped, tag = 'scoped memory for tpu_custom_call.1']
    #allocation10 [shape = 'u8[8192]{0}', space=vmem, size = 0x2000, scoped, tag = 'input window, operand 10, single buffered']
    #allocation11 [shape = 'u8[8192]{0}', space=vmem, size = 0x2000, scoped, tag = 'input window, operand 14, single buffered']
    #allocation12 [shape = 's32[1]{0}', space=sflag, size = 0x4, scoped, tag = 'scoped memory for tpu_custom_call.1']
    #allocation13 [shape = 'u8[8192]{0}', space=vmem, size = 0x2000, scoped, tag = 'output window, operand 0']
    %25 = vsyncpa [#allocation3], 0
    %s26 = scalar_lea.sflag [#allocation3], 1
    %27 = vsyncpa %s26, 0
    %28 = vsyncpa [#allocation6], 0
    %29 = vsyncpa [#allocation9], 0
    %30 = vsyncpa [#allocation12], 0
    %31 = vsyncpa [#allocation4], 0
    %s32 = scalar_lea.sflag [#allocation4], 1
    %33 = vsyncpa %s32, 0
    loop: start=0, step=1, limit=4
    $region2: #{tpu_custom_call.1} parent=1 // loop_pre_header
      _
    $region3: #{tpu_custom_call.1} parent=1 // loop_header
      %s35 = sphi 0, %s39
      %p36 = scmp.ge.s32.totalorder %s35, 4
      %s42 = sphi 0, %s54
      %s43 = sphi 0, %s50
      %s44 = sphi 0, %s42
      %s45 = sphi 0, %s43
      %s46 = sphi 0, %s44
      %s47 = sphi 0, %s45
      %s59 = sphi 0, %s61
      %s62 = sphi 0, %s59
      %s63 = sphi 0, %s62
      %s79 = sphi 0, %s63
      %s85 = sphi 0, %s87
      %s88 = sphi 0, %s85
      %s89 = sphi 0, %s88
      %s105 = sphi 0, %s89
      %s113 = sphi 0, %s115
      %s116 = sphi 0, %s113
      %s117 = sphi 0, %s116
      %s133 = sphi 0, %s117
      %s137 = sphi 0, %s137
      %s139 = sphi 0, %s137
      %s140 = sphi 0, %s139
      %s154 = sphi 0, %s140
      %s158 = sphi 0, %s158
      %s160 = sphi 0, %s158
      %s161 = sphi 0, %s160
      %s175 = sphi 0, %s161
      %s179 = sphi 0, %s179
      %s181 = sphi 0, %s179
      %s182 = sphi 0, %s181
      %s196 = sphi 0, %s182
      %s200 = sphi 0, %s200
      %s202 = sphi 0, %s200
      %s203 = sphi 0, %s202
      %s217 = sphi 0, %s203
      %s221 = sphi 0, %s221
      %s223 = sphi 0, %s221
      %s224 = sphi 0, %s223
      %s238 = sphi 0, %s224
      %s242 = sphi 0, %s242
      %s244 = sphi 0, %s242
      %s245 = sphi 0, %s244
      %s259 = sphi 0, %s245
      %s263 = sphi 0, %s263
      %s265 = sphi 0, %s263
      %s266 = sphi 0, %s265
      %s280 = sphi 0, %s266
      %s284 = sphi 0, %s284
      %s286 = sphi 0, %s284
      %s287 = sphi 0, %s286
      %s301 = sphi 0, %s287
      %s305 = sphi 0, %s305
      %s307 = sphi 0, %s305
      %s308 = sphi 0, %s307
      %s322 = sphi 0, %s308
      %s326 = sphi 0, %s326
      %s328 = sphi 0, %s326
      %s329 = sphi 0, %s328
      %s343 = sphi 0, %s329
      %s347 = sphi 0, %s347
      %s349 = sphi 0, %s347
      %s350 = sphi 0, %s349
      %s364 = sphi 0, %s350
      %s368 = sphi 0, %s368
      %s370 = sphi 0, %s368
      %s371 = sphi 0, %s370
      %s385 = sphi 0, %s371
      %s389 = sphi 0, %s389
      %s391 = sphi 0, %s389
      %s392 = sphi 0, %s391
      %s406 = sphi 0, %s392
      %s410 = sphi 0, %s410
      %s412 = sphi 0, %s410
      %s413 = sphi 0, %s412
      %s427 = sphi 0, %s413
      %s431 = sphi 0, %s431
      %s433 = sphi 0, %s431
      %s434 = sphi 0, %s433
      %s448 = sphi 0, %s434
      %s452 = sphi 0, %s452
      %s454 = sphi 0, %s452
      %s455 = sphi 0, %s454
      %s469 = sphi 0, %s455
      %s473 = sphi 0, %s473
      %s475 = sphi 0, %s473
      %s476 = sphi 0, %s475
      %s490 = sphi 0, %s476
      %s498 = sphi 0, %s500
      %s501 = sphi 0, %s498
      %s502 = sphi 0, %s501
      %s518 = sphi 0, %s502
    $region4: #{tpu_custom_call.1} parent=1 // loop_header_branch
      %38 = sbr.rel (%p36) target = $region8
    $region5: #{tpu_custom_call.1} parent=1 // loop_body
      %s40 = ssub.s32 %s35, 1
      %s41 = ssub.s32 %s35, 2
      %s48 = sadd.s32 1, %s43
      %p49 = scmp.ge.s32.totalorder %s48, 1
      %s50 = scalar_select %p49, 0, %s48
      %s51 = sadd.s32 1, %s42
      %s52 = scalar_select %p49, %s51, %s42
      %p53 = scmp.ge.s32.totalorder %s52, 2
      %s54 = scalar_select %p53, 0, %s52
      %s55 = ssub.s32 %s42, %s54
      %s56 = ssub.s32 %s43, %s50
      %s57 = sor.u32 %s55, %s56
      %p58 = scmp.eq.s32.totalorder %s57, 0
      %s60 = sadd.s32 %s59, 1
      %s61 = scalar_select %p58, %s59, %s60
      %p64 = pneg %p58
      %p65 = scmp.eq.s32.totalorder %s35, 1
      %p66 = por %p64, %p65
      %p67 = scmp.ne.s32.totalorder %s59, %s62
      %p68 = scmp.eq.s32.totalorder %s35, 0
      %p69 = por %p67, %p68
      %p70 = scmp.ne.s32.totalorder %s59, %s62
      %p71 = scmp.eq.s32.totalorder %s40, 1
      %p72 = por %p70, %p71
      %p73 = scmp.ne.s32.totalorder %s62, %s63
      %p74 = scmp.eq.s32.totalorder %s40, 0
      %p75 = por %p73, %p74
      %p76 = scmp.ne.s32.totalorder %s62, %s63
      %p77 = scmp.eq.s32.totalorder %s41, 1
      %p78 = por %p76, %p77
      %p80 = scmp.ne.s32.totalorder %s63, %s79
      %p81 = scmp.eq.s32.totalorder %s41, 0
      %p82 = por %p80, %p81
      %s83 = ssub.s32 %s42, %s54
      %p84 = scmp.eq.s32.totalorder %s83, 0
      %s86 = sadd.s32 %s85, 1
      %s87 = scalar_select %p84, %s85, %s86
      %p90 = pneg %p84
      %p91 = scmp.eq.s32.totalorder %s35, 1
      %p92 = por %p90, %p91
      %p93 = scmp.ne.s32.totalorder %s85, %s88
      %p94 = scmp.eq.s32.totalorder %s35, 0
      %p95 = por %p93, %p94
      %p96 = scmp.ne.s32.totalorder %s85, %s88
      %p97 = scmp.eq.s32.totalorder %s40, 1
      %p98 = por %p96, %p97
      %p99 = scmp.ne.s32.totalorder %s88, %s89
      %p100 = scmp.eq.s32.totalorder %s40, 0
      %p101 = por %p99, %p100
      %p102 = scmp.ne.s32.totalorder %s88, %s89
      %p103 = scmp.eq.s32.totalorder %s41, 1
      %p104 = por %p102, %p103
      %p106 = scmp.ne.s32.totalorder %s89, %s105
      %p107 = scmp.eq.s32.totalorder %s41, 0
      %p108 = por %p106, %p107
      %s109 = ssub.s32 %s42, %s54
      %s110 = ssub.s32 %s43, %s50
      %s111 = sor.u32 %s109, %s110
      %p112 = scmp.eq.s32.totalorder %s111, 0
      %s114 = sadd.s32 %s113, 1
      %s115 = scalar_select %p112, %s113, %s114
      %p118 = pneg %p112
      %p119 = scmp.eq.s32.totalorder %s35, 1
      %p120 = por %p118, %p119
      %p121 = scmp.ne.s32.totalorder %s113, %s116
      %p122 = scmp.eq.s32.totalorder %s35, 0
      %p123 = por %p121, %p122
      %p124 = scmp.ne.s32.totalorder %s113, %s116
      %p125 = scmp.eq.s32.totalorder %s40, 1
      %p126 = por %p124, %p125
      %p127 = scmp.ne.s32.totalorder %s116, %s117
      %p128 = scmp.eq.s32.totalorder %s40, 0
      %p129 = por %p127, %p128
      %p130 = scmp.ne.s32.totalorder %s116, %s117
      %p131 = scmp.eq.s32.totalorder %s41, 1
      %p132 = por %p130, %p131
      %p134 = scmp.ne.s32.totalorder %s117, %s133
      %p135 = scmp.eq.s32.totalorder %s41, 0
      %p136 = por %p134, %p135
      %s138 = sadd.s32 %s137, 1
      %p141 = scmp.eq.s32.totalorder %s35, 1
      %p142 = scmp.ne.s32.totalorder %s137, %s139
      %p143 = scmp.eq.s32.totalorder %s35, 0
      %p144 = por %p142, %p143
      %p145 = scmp.ne.s32.totalorder %s137, %s139
      %p146 = scmp.eq.s32.totalorder %s40, 1
      %p147 = por %p145, %p146
      %p148 = scmp.ne.s32.totalorder %s139, %s140
      %p149 = scmp.eq.s32.totalorder %s40, 0
      %p150 = por %p148, %p149
      %p151 = scmp.ne.s32.totalorder %s139, %s140
      %p152 = scmp.eq.s32.totalorder %s41, 1
      %p153 = por %p151, %p152
      %p155 = scmp.ne.s32.totalorder %s140, %s154
      %p156 = scmp.eq.s32.totalorder %s41, 0
      %p157 = por %p155, %p156
      %s159 = sadd.s32 %s158, 1
      %p162 = scmp.eq.s32.totalorder %s35, 1
      %p163 = scmp.ne.s32.totalorder %s158, %s160
      %p164 = scmp.eq.s32.totalorder %s35, 0
      %p165 = por %p163, %p164
      %p166 = scmp.ne.s32.totalorder %s158, %s160
      %p167 = scmp.eq.s32.totalorder %s40, 1
      %p168 = por %p166, %p167
      %p169 = scmp.ne.s32.totalorder %s160, %s161
      %p170 = scmp.eq.s32.totalorder %s40, 0
      %p171 = por %p169, %p170
      %p172 = scmp.ne.s32.totalorder %s160, %s161
      %p173 = scmp.eq.s32.totalorder %s41, 1
      %p174 = por %p172, %p173
      %p176 = scmp.ne.s32.totalorder %s161, %s175
      %p177 = scmp.eq.s32.totalorder %s41, 0
      %p178 = por %p176, %p177
      %s180 = sadd.s32 %s179, 1
      %p183 = scmp.eq.s32.totalorder %s35, 1
      %p184 = scmp.ne.s32.totalorder %s179, %s181
      %p185 = scmp.eq.s32.totalorder %s35, 0
      %p186 = por %p184, %p185
      %p187 = scmp.ne.s32.totalorder %s179, %s181
      %p188 = scmp.eq.s32.totalorder %s40, 1
      %p189 = por %p187, %p188
      %p190 = scmp.ne.s32.totalorder %s181, %s182
      %p191 = scmp.eq.s32.totalorder %s40, 0
      %p192 = por %p190, %p191
      %p193 = scmp.ne.s32.totalorder %s181, %s182
      %p194 = scmp.eq.s32.totalorder %s41, 1
      %p195 = por %p193, %p194
      %p197 = scmp.ne.s32.totalorder %s182, %s196
      %p198 = scmp.eq.s32.totalorder %s41, 0
      %p199 = por %p197, %p198
      %s201 = sadd.s32 %s200, 1
      %p204 = scmp.eq.s32.totalorder %s35, 1
      %p205 = scmp.ne.s32.totalorder %s200, %s202
      %p206 = scmp.eq.s32.totalorder %s35, 0
      %p207 = por %p205, %p206
      %p208 = scmp.ne.s32.totalorder %s200, %s202
      %p209 = scmp.eq.s32.totalorder %s40, 1
      %p210 = por %p208, %p209
      %p211 = scmp.ne.s32.totalorder %s202, %s203
      %p212 = scmp.eq.s32.totalorder %s40, 0
      %p213 = por %p211, %p212
      %p214 = scmp.ne.s32.totalorder %s202, %s203
      %p215 = scmp.eq.s32.totalorder %s41, 1
      %p216 = por %p214, %p215
      %p218 = scmp.ne.s32.totalorder %s203, %s217
      %p219 = scmp.eq.s32.totalorder %s41, 0
      %p220 = por %p218, %p219
      %s222 = sadd.s32 %s221, 1
      %p225 = scmp.eq.s32.totalorder %s35, 1
      %p226 = scmp.ne.s32.totalorder %s221, %s223
      %p227 = scmp.eq.s32.totalorder %s35, 0
      %p228 = por %p226, %p227
      %p229 = scmp.ne.s32.totalorder %s221, %s223
      %p230 = scmp.eq.s32.totalorder %s40, 1
      %p231 = por %p229, %p230
      %p232 = scmp.ne.s32.totalorder %s223, %s224
      %p233 = scmp.eq.s32.totalorder %s40, 0
      %p234 = por %p232, %p233
      %p235 = scmp.ne.s32.totalorder %s223, %s224
      %p236 = scmp.eq.s32.totalorder %s41, 1
      %p237 = por %p235, %p236
      %p239 = scmp.ne.s32.totalorder %s224, %s238
      %p240 = scmp.eq.s32.totalorder %s41, 0
      %p241 = por %p239, %p240
      %s243 = sadd.s32 %s242, 1
      %p246 = scmp.eq.s32.totalorder %s35, 1
      %p247 = scmp.ne.s32.totalorder %s242, %s244
      %p248 = scmp.eq.s32.totalorder %s35, 0
      %p249 = por %p247, %p248
      %p250 = scmp.ne.s32.totalorder %s242, %s244
      %p251 = scmp.eq.s32.totalorder %s40, 1
      %p252 = por %p250, %p251
      %p253 = scmp.ne.s32.totalorder %s244, %s245
      %p254 = scmp.eq.s32.totalorder %s40, 0
      %p255 = por %p253, %p254
      %p256 = scmp.ne.s32.totalorder %s244, %s245
      %p257 = scmp.eq.s32.totalorder %s41, 1
      %p258 = por %p256, %p257
      %p260 = scmp.ne.s32.totalorder %s245, %s259
      %p261 = scmp.eq.s32.totalorder %s41, 0
      %p262 = por %p260, %p261
      %s264 = sadd.s32 %s263, 1
      %p267 = scmp.eq.s32.totalorder %s35, 1
      %p268 = scmp.ne.s32.totalorder %s263, %s265
      %p269 = scmp.eq.s32.totalorder %s35, 0
      %p270 = por %p268, %p269
      %p271 = scmp.ne.s32.totalorder %s263, %s265
      %p272 = scmp.eq.s32.totalorder %s40, 1
      %p273 = por %p271, %p272
      %p274 = scmp.ne.s32.totalorder %s265, %s266
      %p275 = scmp.eq.s32.totalorder %s40, 0
      %p276 = por %p274, %p275
      %p277 = scmp.ne.s32.totalorder %s265, %s266
      %p278 = scmp.eq.s32.totalorder %s41, 1
      %p279 = por %p277, %p278
      %p281 = scmp.ne.s32.totalorder %s266, %s280
      %p282 = scmp.eq.s32.totalorder %s41, 0
      %p283 = por %p281, %p282
      %s285 = sadd.s32 %s284, 1
      %p288 = scmp.eq.s32.totalorder %s35, 1
      %p289 = scmp.ne.s32.totalorder %s284, %s286
      %p290 = scmp.eq.s32.totalorder %s35, 0
      %p291 = por %p289, %p290
      %p292 = scmp.ne.s32.totalorder %s284, %s286
      %p293 = scmp.eq.s32.totalorder %s40, 1
      %p294 = por %p292, %p293
      %p295 = scmp.ne.s32.totalorder %s286, %s287
      %p296 = scmp.eq.s32.totalorder %s40, 0
      %p297 = por %p295, %p296
      %p298 = scmp.ne.s32.totalorder %s286, %s287
      %p299 = scmp.eq.s32.totalorder %s41, 1
      %p300 = por %p298, %p299
      %p302 = scmp.ne.s32.totalorder %s287, %s301
      %p303 = scmp.eq.s32.totalorder %s41, 0
      %p304 = por %p302, %p303
      %s306 = sadd.s32 %s305, 1
      %p309 = scmp.eq.s32.totalorder %s35, 1
      %p310 = scmp.ne.s32.totalorder %s305, %s307
      %p311 = scmp.eq.s32.totalorder %s35, 0
      %p312 = por %p310, %p311
      %p313 = scmp.ne.s32.totalorder %s305, %s307
      %p314 = scmp.eq.s32.totalorder %s40, 1
      %p315 = por %p313, %p314
      %p316 = scmp.ne.s32.totalorder %s307, %s308
      %p317 = scmp.eq.s32.totalorder %s40, 0
      %p318 = por %p316, %p317
      %p319 = scmp.ne.s32.totalorder %s307, %s308
      %p320 = scmp.eq.s32.totalorder %s41, 1
      %p321 = por %p319, %p320
      %p323 = scmp.ne.s32.totalorder %s308, %s322
      %p324 = scmp.eq.s32.totalorder %s41, 0
      %p325 = por %p323, %p324
      %s327 = sadd.s32 %s326, 1
      %p330 = scmp.eq.s32.totalorder %s35, 1
      %p331 = scmp.ne.s32.totalorder %s326, %s328
      %p332 = scmp.eq.s32.totalorder %s35, 0
      %p333 = por %p331, %p332
      %p334 = scmp.ne.s32.totalorder %s326, %s328
      %p335 = scmp.eq.s32.totalorder %s40, 1
      %p336 = por %p334, %p335
      %p337 = scmp.ne.s32.totalorder %s328, %s329
      %p338 = scmp.eq.s32.totalorder %s40, 0
      %p339 = por %p337, %p338
      %p340 = scmp.ne.s32.totalorder %s328, %s329
      %p341 = scmp.eq.s32.totalorder %s41, 1
      %p342 = por %p340, %p341
      %p344 = scmp.ne.s32.totalorder %s329, %s343
      %p345 = scmp.eq.s32.totalorder %s41, 0
      %p346 = por %p344, %p345
      %s348 = sadd.s32 %s347, 1
      %p351 = scmp.eq.s32.totalorder %s35, 1
      %p352 = scmp.ne.s32.totalorder %s347, %s349
      %p353 = scmp.eq.s32.totalorder %s35, 0
      %p354 = por %p352, %p353
      %p355 = scmp.ne.s32.totalorder %s347, %s349
      %p356 = scmp.eq.s32.totalorder %s40, 1
      %p357 = por %p355, %p356
      %p358 = scmp.ne.s32.totalorder %s349, %s350
      %p359 = scmp.eq.s32.totalorder %s40, 0
      %p360 = por %p358, %p359
      %p361 = scmp.ne.s32.totalorder %s349, %s350
      %p362 = scmp.eq.s32.totalorder %s41, 1
      %p363 = por %p361, %p362
      %p365 = scmp.ne.s32.totalorder %s350, %s364
      %p366 = scmp.eq.s32.totalorder %s41, 0
      %p367 = por %p365, %p366
      %s369 = sadd.s32 %s368, 1
      %p372 = scmp.eq.s32.totalorder %s35, 1
      %p373 = scmp.ne.s32.totalorder %s368, %s370
      %p374 = scmp.eq.s32.totalorder %s35, 0
      %p375 = por %p373, %p374
      %p376 = scmp.ne.s32.totalorder %s368, %s370
      %p377 = scmp.eq.s32.totalorder %s40, 1
      %p378 = por %p376, %p377
      %p379 = scmp.ne.s32.totalorder %s370, %s371
      %p380 = scmp.eq.s32.totalorder %s40, 0
      %p381 = por %p379, %p380
      %p382 = scmp.ne.s32.totalorder %s370, %s371
      %p383 = scmp.eq.s32.totalorder %s41, 1
      %p384 = por %p382, %p383
      %p386 = scmp.ne.s32.totalorder %s371, %s385
      %p387 = scmp.eq.s32.totalorder %s41, 0
      %p388 = por %p386, %p387
      %s390 = sadd.s32 %s389, 1
      %p393 = scmp.eq.s32.totalorder %s35, 1
      %p394 = scmp.ne.s32.totalorder %s389, %s391
      %p395 = scmp.eq.s32.totalorder %s35, 0
      %p396 = por %p394, %p395
      %p397 = scmp.ne.s32.totalorder %s389, %s391
      %p398 = scmp.eq.s32.totalorder %s40, 1
      %p399 = por %p397, %p398
      %p400 = scmp.ne.s32.totalorder %s391, %s392
      %p401 = scmp.eq.s32.totalorder %s40, 0
      %p402 = por %p400, %p401
      %p403 = scmp.ne.s32.totalorder %s391, %s392
      %p404 = scmp.eq.s32.totalorder %s41, 1
      %p405 = por %p403, %p404
      %p407 = scmp.ne.s32.totalorder %s392, %s406
      %p408 = scmp.eq.s32.totalorder %s41, 0
      %p409 = por %p407, %p408
      %s411 = sadd.s32 %s410, 1
      %p414 = scmp.eq.s32.totalorder %s35, 1
      %p415 = scmp.ne.s32.totalorder %s410, %s412
      %p416 = scmp.eq.s32.totalorder %s35, 0
      %p417 = por %p415, %p416
      %p418 = scmp.ne.s32.totalorder %s410, %s412
      %p419 = scmp.eq.s32.totalorder %s40, 1
      %p420 = por %p418, %p419
      %p421 = scmp.ne.s32.totalorder %s412, %s413
      %p422 = scmp.eq.s32.totalorder %s40, 0
      %p423 = por %p421, %p422
      %p424 = scmp.ne.s32.totalorder %s412, %s413
      %p425 = scmp.eq.s32.totalorder %s41, 1
      %p426 = por %p424, %p425
      %p428 = scmp.ne.s32.totalorder %s413, %s427
      %p429 = scmp.eq.s32.totalorder %s41, 0
      %p430 = por %p428, %p429
      %s432 = sadd.s32 %s431, 1
      %p435 = scmp.eq.s32.totalorder %s35, 1
      %p436 = scmp.ne.s32.totalorder %s431, %s433
      %p437 = scmp.eq.s32.totalorder %s35, 0
      %p438 = por %p436, %p437
      %p439 = scmp.ne.s32.totalorder %s431, %s433
      %p440 = scmp.eq.s32.totalorder %s40, 1
      %p441 = por %p439, %p440
      %p442 = scmp.ne.s32.totalorder %s433, %s434
      %p443 = scmp.eq.s32.totalorder %s40, 0
      %p444 = por %p442, %p443
      %p445 = scmp.ne.s32.totalorder %s433, %s434
      %p446 = scmp.eq.s32.totalorder %s41, 1
      %p447 = por %p445, %p446
      %p449 = scmp.ne.s32.totalorder %s434, %s448
      %p450 = scmp.eq.s32.totalorder %s41, 0
      %p451 = por %p449, %p450
      %s453 = sadd.s32 %s452, 1
      %p456 = scmp.eq.s32.totalorder %s35, 1
      %p457 = scmp.ne.s32.totalorder %s452, %s454
      %p458 = scmp.eq.s32.totalorder %s35, 0
      %p459 = por %p457, %p458
      %p460 = scmp.ne.s32.totalorder %s452, %s454
      %p461 = scmp.eq.s32.totalorder %s40, 1
      %p462 = por %p460, %p461
      %p463 = scmp.ne.s32.totalorder %s454, %s455
      %p464 = scmp.eq.s32.totalorder %s40, 0
      %p465 = por %p463, %p464
      %p466 = scmp.ne.s32.totalorder %s454, %s455
      %p467 = scmp.eq.s32.totalorder %s41, 1
      %p468 = por %p466, %p467
      %p470 = scmp.ne.s32.totalorder %s455, %s469
      %p471 = scmp.eq.s32.totalorder %s41, 0
      %p472 = por %p470, %p471
      %s474 = sadd.s32 %s473, 1
      %p477 = scmp.eq.s32.totalorder %s35, 1
      %p478 = scmp.ne.s32.totalorder %s473, %s475
      %p479 = scmp.eq.s32.totalorder %s35, 0
      %p480 = por %p478, %p479
      %p481 = scmp.ne.s32.totalorder %s473, %s475
      %p482 = scmp.eq.s32.totalorder %s40, 1
      %p483 = por %p481, %p482
      %p484 = scmp.ne.s32.totalorder %s475, %s476
      %p485 = scmp.eq.s32.totalorder %s40, 0
      %p486 = por %p484, %p485
      %p487 = scmp.ne.s32.totalorder %s475, %s476
      %p488 = scmp.eq.s32.totalorder %s41, 1
      %p489 = por %p487, %p488
      %p491 = scmp.ne.s32.totalorder %s476, %s490
      %p492 = scmp.eq.s32.totalorder %s41, 0
      %p493 = por %p491, %p492
      %s494 = ssub.s32 %s42, %s54
      %s495 = ssub.s32 %s43, %s50
      %s496 = sor.u32 %s494, %s495
      %p497 = scmp.eq.s32.totalorder %s496, 0
      %s499 = sadd.s32 %s498, 1
      %s500 = scalar_select %p497, %s498, %s499
      %p503 = pneg %p497
      %p504 = scmp.eq.s32.totalorder %s35, 1
      %p505 = por %p503, %p504
      %p506 = scmp.ne.s32.totalorder %s498, %s501
      %p507 = scmp.eq.s32.totalorder %s35, 0
      %p508 = por %p506, %p507
      %p509 = scmp.ne.s32.totalorder %s498, %s501
      %p510 = scmp.eq.s32.totalorder %s40, 1
      %p511 = por %p509, %p510
      %p512 = scmp.ne.s32.totalorder %s501, %s502
      %p513 = scmp.eq.s32.totalorder %s40, 0
      %p514 = por %p512, %p513
      %p515 = scmp.ne.s32.totalorder %s501, %s502
      %p516 = scmp.eq.s32.totalorder %s41, 1
      %p517 = por %p515, %p516
      %p519 = scmp.ne.s32.totalorder %s502, %s518
      %p520 = scmp.eq.s32.totalorder %s41, 0
      %p521 = por %p519, %p520
      %p522 = scmp.le.s32.totalorder 1, %s35
      %p523 = scmp.lt.s32.totalorder %s35, 3
      %p524 = pnand %p522, %p523
      %p525 = pneg %p524
      // Predicated region
      $region9: #{tpu_custom_call.1} parent=5 // pred_check
        _
      $region10: #{tpu_custom_call.1} parent=5 // pred_check_branch
        %527 = sbr.rel (%p524) target = $region12
      $region11: #{tpu_custom_call.1} parent=5 // pred_region
        %s528 = ssub.s32 %s35, 1
        // Predicated region
        $region13: #{tpu_custom_call.1} parent=11 // pred_check
          %p529 = pneg %p150
        $region14: #{tpu_custom_call.1} parent=11 // pred_check_branch
          %531 = sbr.rel (%p529) target = $region16
        $region15: #{tpu_custom_call.1} parent=11 // pred_region
          _
        $region16: #{tpu_custom_call.1} parent=11 // pred_fallthru
          _
        // Predicated region
        $region17: #{tpu_custom_call.1} parent=11 // pred_check
          %p532 = pneg %p171
        $region18: #{tpu_custom_call.1} parent=11 // pred_check_branch
          %534 = sbr.rel (%p532) target = $region20
        $region19: #{tpu_custom_call.1} parent=11 // pred_region
          _
        $region20: #{tpu_custom_call.1} parent=11 // pred_fallthru
          _
        // Predicated region
        $region21: #{tpu_custom_call.1} parent=11 // pred_check
          %p535 = pneg %p192
        $region22: #{tpu_custom_call.1} parent=11 // pred_check_branch
          %537 = sbr.rel (%p535) target = $region24
        $region23: #{tpu_custom_call.1} parent=11 // pred_region
          %539 = vsyncadd [#allocation6], 0
          %s540 = sshll.u32 %s5, 4
          %s541 = int_to_ptr.hbm [resolvable:$true] %s540
          %s542 = sshll.u32 [#allocation5], 4
          %s543 = int_to_ptr.vmem [resolvable:$true] %s542
          %548 = dma.hbm_to_vmem [thread:$0]  %s541, 256, %s543, [#allocation6], 64, 64, 4
        $region24: #{tpu_custom_call.1} parent=11 // pred_fallthru
          _
        // Predicated region
        $region25: #{tpu_custom_call.1} parent=11 // pred_check
          %p549 = pneg %p213
        $region26: #{tpu_custom_call.1} parent=11 // pred_check_branch
          %551 = sbr.rel (%p549) target = $region28
        $region27: #{tpu_custom_call.1} parent=11 // pred_region
          _
        $region28: #{tpu_custom_call.1} parent=11 // pred_fallthru
          _
        // Predicated region
        $region29: #{tpu_custom_call.1} parent=11 // pred_check
          %p552 = pneg %p234
        $region30: #{tpu_custom_call.1} parent=11 // pred_check_branch
          %554 = sbr.rel (%p552) target = $region32
        $region31: #{tpu_custom_call.1} parent=11 // pred_region
          %556 = vsyncadd [#allocation6], 0
          %s557 = sshll.u32 %s7, 4
          %s558 = int_to_ptr.hbm [resolvable:$true] %s557
          %s559 = sshll.u32 [#allocation7], 4
          %s560 = int_to_ptr.vmem [resolvable:$true] %s559
          %565 = dma.hbm_to_vmem [thread:$0]  %s558, 256, %s560, [#allocation6], 64, 64, 4
        $region32: #{tpu_custom_call.1} parent=11 // pred_fallthru
          _
        // Predicated region
        $region33: #{tpu_custom_call.1} parent=11 // pred_check
          %p566 = pneg %p255
        $region34: #{tpu_custom_call.1} parent=11 // pred_check_branch
          %568 = sbr.rel (%p566) target = $region36
        $region35: #{tpu_custom_call.1} parent=11 // pred_region
          _
        $region36: #{tpu_custom_call.1} parent=11 // pred_fallthru
          _
        // Predicated region
        $region37: #{tpu_custom_call.1} parent=11 // pred_check
          %p569 = pneg %p276
        $region38: #{tpu_custom_call.1} parent=11 // pred_check_branch
          %571 = sbr.rel (%p569) target = $region40
        $region39: #{tpu_custom_call.1} parent=11 // pred_region
          %573 = vsyncadd [#allocation9], 0
          %s574 = sshll.u32 %s9, 4
          %s575 = int_to_ptr.hbm [resolvable:$true] %s574
          %s576 = sshll.u32 [#allocation8], 4
          %s577 = int_to_ptr.vmem [resolvable:$true] %s576
          %582 = dma.hbm_to_vmem [thread:$0]  %s575, 256, %s577, [#allocation9], 64, 64, 4
        $region40: #{tpu_custom_call.1} parent=11 // pred_fallthru
          _
        // Predicated region
        $region41: #{tpu_custom_call.1} parent=11 // pred_check
          %p583 = pneg %p297
        $region42: #{tpu_custom_call.1} parent=11 // pred_check_branch
          %585 = sbr.rel (%p583) target = $region44
        $region43: #{tpu_custom_call.1} parent=11 // pred_region
          %587 = vsyncadd [#allocation9], 0
          %s588 = sshll.u32 %s10, 4
          %s589 = int_to_ptr.hbm [resolvable:$true] %s588
          %s590 = sshll.u32 [#allocation10], 4
          %s591 = int_to_ptr.vmem [resolvable:$true] %s590
          %596 = dma.hbm_to_vmem [thread:$0]  %s589, 256, %s591, [#allocation9], 64, 64, 4
        $region44: #{tpu_custom_call.1} parent=11 // pred_fallthru
          _
        // Predicated region
        $region45: #{tpu_custom_call.1} parent=11 // pred_check
          %p597 = pneg %p318
        $region46: #{tpu_custom_call.1} parent=11 // pred_check_branch
          %599 = sbr.rel (%p597) target = $region48
        $region47: #{tpu_custom_call.1} parent=11 // pred_region
          _
        $region48: #{tpu_custom_call.1} parent=11 // pred_fallthru
          _
        // Predicated region
        $region49: #{tpu_custom_call.1} parent=11 // pred_check
          %p600 = pneg %p339
        $region50: #{tpu_custom_call.1} parent=11 // pred_check_branch
          %602 = sbr.rel (%p600) target = $region52
        $region51: #{tpu_custom_call.1} parent=11 // pred_region
          _
        $region52: #{tpu_custom_call.1} parent=11 // pred_fallthru
          _
        // Predicated region
        $region53: #{tpu_custom_call.1} parent=11 // pred_check
          %p603 = pneg %p360
        $region54: #{tpu_custom_call.1} parent=11 // pred_check_branch
          %605 = sbr.rel (%p603) target = $region56
        $region55: #{tpu_custom_call.1} parent=11 // pred_region
          _
        $region56: #{tpu_custom_call.1} parent=11 // pred_fallthru
          _
        // Predicated region
        $region57: #{tpu_custom_call.1} parent=11 // pred_check
          %p606 = pneg %p381
        $region58: #{tpu_custom_call.1} parent=11 // pred_check_branch
          %608 = sbr.rel (%p606) target = $region60
        $region59: #{tpu_custom_call.1} parent=11 // pred_region
          %610 = vsyncadd [#allocation12], 0
          %s611 = sshll.u32 %s14, 4
          %s612 = int_to_ptr.hbm [resolvable:$true] %s611
          %s613 = sshll.u32 [#allocation11], 4
          %s614 = int_to_ptr.vmem [resolvable:$true] %s613
          %619 = dma.hbm_to_vmem [thread:$0]  %s612, 256, %s614, [#allocation12], 64, 64, 4
        $region60: #{tpu_custom_call.1} parent=11 // pred_fallthru
          _
        // Predicated region
        $region61: #{tpu_custom_call.1} parent=11 // pred_check
          %p620 = pneg %p402
        $region62: #{tpu_custom_call.1} parent=11 // pred_check_branch
          %622 = sbr.rel (%p620) target = $region64
        $region63: #{tpu_custom_call.1} parent=11 // pred_region
          _
        $region64: #{tpu_custom_call.1} parent=11 // pred_fallthru
          _
        // Predicated region
        $region65: #{tpu_custom_call.1} parent=11 // pred_check
          %p623 = pneg %p423
        $region66: #{tpu_custom_call.1} parent=11 // pred_check_branch
          %625 = sbr.rel (%p623) target = $region68
        $region67: #{tpu_custom_call.1} parent=11 // pred_region
          _
        $region68: #{tpu_custom_call.1} parent=11 // pred_fallthru
          _
        // Predicated region
        $region69: #{tpu_custom_call.1} parent=11 // pred_check
          %p626 = pneg %p444
        $region70: #{tpu_custom_call.1} parent=11 // pred_check_branch
          %628 = sbr.rel (%p626) target = $region72
        $region71: #{tpu_custom_call.1} parent=11 // pred_region
          _
        $region72: #{tpu_custom_call.1} parent=11 // pred_fallthru
          _
        // Predicated region
        $region73: #{tpu_custom_call.1} parent=11 // pred_check
          %p629 = pneg %p465
        $region74: #{tpu_custom_call.1} parent=11 // pred_check_branch
          %631 = sbr.rel (%p629) target = $region76
        $region75: #{tpu_custom_call.1} parent=11 // pred_region
          _
        $region76: #{tpu_custom_call.1} parent=11 // pred_fallthru
          _
        // Predicated region
        $region77: #{tpu_custom_call.1} parent=11 // pred_check
          %p632 = pneg %p486
        $region78: #{tpu_custom_call.1} parent=11 // pred_check_branch
          %634 = sbr.rel (%p632) target = $region80
        $region79: #{tpu_custom_call.1} parent=11 // pred_region
          _
        $region80: #{tpu_custom_call.1} parent=11 // pred_fallthru
          _
      $region12: #{tpu_custom_call.1} parent=5 // pred_fallthru
        _
      %p635 = scmp.lt.s32.totalorder %s35, 2
      // Predicated region
      $region81: #{tpu_custom_call.1} parent=5 // pred_check
        %p636 = pneg %p635
      $region82: #{tpu_custom_call.1} parent=5 // pred_check_branch
        %638 = sbr.rel (%p636) target = $region84
      $region83: #{tpu_custom_call.1} parent=5 // pred_region
        // Predicated region
        $region85: #{tpu_custom_call.1} parent=83 // pred_check
          %p639 = pneg %p69
        $region86: #{tpu_custom_call.1} parent=83 // pred_check_branch
          %641 = sbr.rel (%p639) target = $region88
        $region87: #{tpu_custom_call.1} parent=83 // pred_region
          %p642 = scmp.lt.s32.totalorder %s42, 1
          %s643 = scalar_select %p642, %s42, 1
          %p644 = scmp.lt.s32.totalorder %s43, 0
          %s645 = scalar_select %p644, %s43, 0
          %s646 = sadd.s32 %s645, %s643
          %s647 = smul.addr %s646, 8
          %s648 = scalar_lea.vmem %s0, %s647
        $region88: #{tpu_custom_call.1} parent=83 // pred_fallthru
          _
        // Predicated region
        $region89: #{tpu_custom_call.1} parent=83 // pred_check
          %p649 = pneg %p95
        $region90: #{tpu_custom_call.1} parent=83 // pred_check_branch
          %651 = sbr.rel (%p649) target = $region92
        $region91: #{tpu_custom_call.1} parent=83 // pred_region
          %p652 = scmp.lt.s32.totalorder %s42, 1
          %s653 = scalar_select %p652, %s42, 1
          %s654 = smul.addr %s653, 8
          %s655 = scalar_lea.vmem %s1, %s654
        $region92: #{tpu_custom_call.1} parent=83 // pred_fallthru
          _
        // Predicated region
        $region93: #{tpu_custom_call.1} parent=83 // pred_check
          %p656 = pneg %p123
        $region94: #{tpu_custom_call.1} parent=83 // pred_check_branch
          %658 = sbr.rel (%p656) target = $region96
        $region95: #{tpu_custom_call.1} parent=83 // pred_region
          %s659 = sand.u32 %s113, 1
          %s660 = scalar_lea.sflag [#allocation3], %s659
          %s661 = sand.u32 %s113, 1
          %s662 = smul.addr %s661, 32
          %s663 = scalar_lea.vmem [#allocation2], %s662
          %s664 = smul.u32 8, %s43
          %666 = vsyncadd %s660, 0
          %s667 = smul.addr %s42, 8
          %s668 = sadd.s32 %s664, %s667
          %s669 = smul.addr %s668, 4
          %s670 = scalar_lea.hbm %s2, %s669
          %s671 = sshll.u32 %s670, 4
          %s672 = int_to_ptr.hbm [resolvable:$true] %s671
          %s673 = sshll.u32 %s663, 4
          %s674 = int_to_ptr.vmem [resolvable:$true] %s673
          %679 = dma.hbm_to_vmem [thread:$0]  %s672, 512, %s674, %s660, 64, 64, 4
        $region96: #{tpu_custom_call.1} parent=83 // pred_fallthru
          _
      $region84: #{tpu_custom_call.1} parent=5 // pred_fallthru
        _
      %p680 = scmp.le.s32.totalorder 1, %s35
      %p681 = scmp.lt.s32.totalorder %s35, 3
      %p682 = pnand %p680, %p681
      %p683 = pneg %p682
      // Predicated region
      $region97: #{tpu_custom_call.1} parent=5 // pred_check
        _
      $region98: #{tpu_custom_call.1} parent=5 // pred_check_branch
        %685 = sbr.rel (%p682) target = $region100
      $region99: #{tpu_custom_call.1} parent=5 // pred_region
        %s686 = ssub.s32 %s35, 1
        %s687 = sand.u32 %s116, 1
        %s688 = scalar_lea.sflag [#allocation3], %s687
        %s689 = sand.u32 %s116, 1
        %s690 = smul.addr %s689, 32
        %s691 = scalar_lea.vmem [#allocation2], %s690
        // Predicated region
        $region101: #{tpu_custom_call.1} parent=99 // pred_check
          %p692 = pneg %p129
        $region102: #{tpu_custom_call.1} parent=99 // pred_check_branch
          %694 = sbr.rel (%p692) target = $region104
        $region103: #{tpu_custom_call.1} parent=99 // pred_region
          %696 = dma.done %s688, 512
        $region104: #{tpu_custom_call.1} parent=99 // pred_fallthru
          _
        // Predicated region
        $region105: #{tpu_custom_call.1} parent=99 // pred_check
          %p697 = pneg %p192
        $region106: #{tpu_custom_call.1} parent=99 // pred_check_branch
          %699 = sbr.rel (%p697) target = $region108
        $region107: #{tpu_custom_call.1} parent=99 // pred_region
          %701 = dma.done [#allocation6], 256
        $region108: #{tpu_custom_call.1} parent=99 // pred_fallthru
          _
        // Predicated region
        $region109: #{tpu_custom_call.1} parent=99 // pred_check
          %p702 = pneg %p234
        $region110: #{tpu_custom_call.1} parent=99 // pred_check_branch
          %704 = sbr.rel (%p702) target = $region112
        $region111: #{tpu_custom_call.1} parent=99 // pred_region
          %706 = dma.done [#allocation6], 256
        $region112: #{tpu_custom_call.1} parent=99 // pred_fallthru
          _
        // Predicated region
        $region113: #{tpu_custom_call.1} parent=99 // pred_check
          %p707 = pneg %p276
        $region114: #{tpu_custom_call.1} parent=99 // pred_check_branch
          %709 = sbr.rel (%p707) target = $region116
        $region115: #{tpu_custom_call.1} parent=99 // pred_region
          %711 = dma.done [#allocation9], 256
        $region116: #{tpu_custom_call.1} parent=99 // pred_fallthru
          _
        // Predicated region
        $region117: #{tpu_custom_call.1} parent=99 // pred_check
          %p712 = pneg %p297
        $region118: #{tpu_custom_call.1} parent=99 // pred_check_branch
          %714 = sbr.rel (%p712) target = $region120
        $region119: #{tpu_custom_call.1} parent=99 // pred_region
          %716 = dma.done [#allocation9], 256
        $region120: #{tpu_custom_call.1} parent=99 // pred_fallthru
          _
        // Predicated region
        $region121: #{tpu_custom_call.1} parent=99 // pred_check
          %p717 = pneg %p381
        $region122: #{tpu_custom_call.1} parent=99 // pred_check_branch
          %719 = sbr.rel (%p717) target = $region124
        $region123: #{tpu_custom_call.1} parent=99 // pred_region
          %721 = dma.done [#allocation12], 256
        $region124: #{tpu_custom_call.1} parent=99 // pred_fallthru
          _
        %p722 = scmp.lt.s32.totalorder %s44, 1
        %s723 = scalar_select %p722, %s44, 1
        %p724 = scmp.lt.s32.totalorder %s45, 0
        %s725 = scalar_select %p724, %s45, 0
        %s726 = sadd.s32 %s725, %s723
        %s727 = smul.addr %s726, 8
        %s728 = scalar_lea.vmem %s0, %s727
        %p729 = pneg %p75
        %p730 = pneg %p72
        %p731 = scmp.lt.s32.totalorder %s44, 1
        %s732 = scalar_select %p731, %s44, 1
        %s733 = smul.addr %s732, 8
        %s734 = scalar_lea.vmem %s1, %s733
        %p735 = pneg %p101
        %p736 = pneg %p98
        %s737 = sand.u32 %s116, 1
        %s738 = scalar_lea.sflag [#allocation3], %s737
        %s739 = sand.u32 %s116, 1
        %s740 = smul.addr %s739, 32
        %s741 = scalar_lea.vmem [#allocation2], %s740
        %p742 = pneg %p129
        %p743 = pneg %p126
        %p744 = pneg %p150
        %p745 = pneg %p147
        %p746 = pneg %p171
        %p747 = pneg %p168
        %p748 = pneg %p192
        %p749 = pneg %p189
        %p750 = pneg %p213
        %p751 = pneg %p210
        %p752 = pneg %p234
        %p753 = pneg %p231
        %p754 = pneg %p255
        %p755 = pneg %p252
        %p756 = pneg %p276
        %p757 = pneg %p273
        %p758 = pneg %p297
        %p759 = pneg %p294
        %p760 = pneg %p318
        %p761 = pneg %p315
        %p762 = pneg %p339
        %p763 = pneg %p336
        %p764 = pneg %p360
        %p765 = pneg %p357
        %p766 = pneg %p381
        %p767 = pneg %p378
        %p768 = pneg %p402
        %p769 = pneg %p399
        %p770 = pneg %p423
        %p771 = pneg %p420
        %p772 = pneg %p444
        %p773 = pneg %p441
        %p774 = pneg %p465
        %p775 = pneg %p462
        %p776 = pneg %p486
        %p777 = pneg %p483
        %p778 = pneg %p514
        %p779 = pneg %p511
        %s780 = sand.u32 %s501, 1
        %s781 = scalar_lea.sflag [#allocation4], %s780
        %s782 = sand.u32 %s501, 1
        %s783 = smul.addr %s782, 8
        %s784 = scalar_lea.vmem [#allocation13], %s783
        %p785 = scmp.lt.s32.totalorder %s44, 1
        %s786 = scalar_select %p785, %s44, 1
        %p787 = scmp.lt.s32.totalorder %s45, 0
        %s788 = scalar_select %p787, %s45, 0
        %s789 = sadd.s32 %s788, %s786
        %s790 = smul.addr %s789, 8
        %s791 = scalar_lea.vmem %s0, %s790
        %p792 = scmp.lt.s32.totalorder %s44, 1
        %s793 = scalar_select %p792, %s44, 1
        %s794 = smul.addr %s793, 8
        %s795 = scalar_lea.vmem %s1, %s794
        %s796 = smul.u32 8, %s45
        %v798 = vld [vmem:[%s3] sm:$0xf]
        %v799 = vld [vmem:[%s3 + $0x4] sm:$0xf]
        %v800 = vld [vmem:[%s3 + $0x8] sm:$0xf]
        %v801 = vld [vmem:[%s3 + $0xc] sm:$0xf]
        %v802 = vld [vmem:[%s4] sm:$0x1]
        %v803 = vld [vmem:[#allocation5] sm:$0xf]
        %v804 = vld [vmem:[#allocation5 + $0x4] sm:$0xf]
        %v805 = vld [vmem:[#allocation5 + $0x8] sm:$0xf]
        %v806 = vld [vmem:[#allocation5 + $0xc] sm:$0xf]
        %v807 = vld [vmem:[%s6] sm:$0x1]
        %v808 = vld [vmem:[#allocation7] sm:$0xf]
        %v809 = vld [vmem:[#allocation7 + $0x4] sm:$0xf]
        %v810 = vld [vmem:[#allocation7 + $0x8] sm:$0xf]
        %v811 = vld [vmem:[#allocation7 + $0xc] sm:$0xf]
        %v812 = vld [vmem:[%s8] sm:$0x1]
        %v813 = vld [vmem:[#allocation8] sm:$0xf]
        %v814 = vld [vmem:[#allocation8 + $0x4] sm:$0xf]
        %v815 = vld [vmem:[#allocation8 + $0x8] sm:$0xf]
        %v816 = vld [vmem:[#allocation8 + $0xc] sm:$0xf]
        %v817 = vld [vmem:[#allocation10] sm:$0xf]
        %v818 = vld [vmem:[#allocation10 + $0x4] sm:$0xf]
        %v819 = vld [vmem:[#allocation10 + $0x8] sm:$0xf]
        %v820 = vld [vmem:[#allocation10 + $0xc] sm:$0xf]
        %v821 = vld [vmem:[%s11] sm:$0x1]
        %v822 = vld [vmem:[%s12] sm:$0x1]
        %v823 = vld [vmem:[%s13] sm:$0x1]
        %v824 = vld [vmem:[#allocation11] sm:$0xf]
        %v825 = vld [vmem:[#allocation11 + $0x4] sm:$0xf]
        %v826 = vld [vmem:[#allocation11 + $0x8] sm:$0xf]
        %v827 = vld [vmem:[#allocation11 + $0xc] sm:$0xf]
        %v828 = vld [vmem:[%s15] sm:$0x1]
        %v829 = vld [vmem:[%s16] sm:$0xf]
        %v830 = vld [vmem:[%s16 + $0x4] sm:$0xf]
        %v831 = vld [vmem:[%s16 + $0x8] sm:$0xf]
        %v832 = vld [vmem:[%s16 + $0xc] sm:$0xf]
        %v833 = vld [vmem:[%s16 + $0x10] sm:$0xf]
        %v834 = vld [vmem:[%s16 + $0x14] sm:$0xf]
        %v835 = vld [vmem:[%s16 + $0x18] sm:$0xf]
        %v836 = vld [vmem:[%s16 + $0x1c] sm:$0xf]
        %v837 = vld [vmem:[%s17] sm:$0x1]
        %v838 = vld [vmem:[%s18] sm:$0x1]
        %v839 = vld [vmem:[%s19] sm:$0x1]
        %v840 = vld [vmem:[%s791] sm:$0xff]
        %v841 = vld [vmem:[%s795] sm:$0xff]
        %v842 = vld [vmem:[%s691] sm:$0xf]
        %v843 = vld [vmem:[%s691 + $0x4] sm:$0xf]
        %v844 = vld [vmem:[%s691 + $0x8] sm:$0xf]
        %v845 = vld [vmem:[%s691 + $0xc] sm:$0xf]
        %v846 = vld [vmem:[%s691 + $0x10] sm:$0xf]
        %v847 = vld [vmem:[%s691 + $0x14] sm:$0xf]
        %v848 = vld [vmem:[%s691 + $0x18] sm:$0xf]
        %v849 = vld [vmem:[%s691 + $0x1c] sm:$0xf]
        %v850 = vpack.c.bf16 %v840, %v840
        %v851 = vpack.c.bf16 %v841, %v841
        %v853 = vperm.slane %v802, 0
        %v859 = vunpack.c.l.b16 %v798
        %v860 = vunpack.c.l.b16 %v799
        %v861 = vunpack.c.l.b16 %v800
        %v862 = vunpack.c.l.b16 %v801
        %v863 = vpack.c.b16 %v860, %v859
        %v864 = vpack.c.b16 %v862, %v861
        %vm867 = vcmask 261120
        %v869 = vsel %vm867, %v850, 0
        %871 = vmatpush.bf16.msra.mxu0 0
        %872 = vmatpush.bf16.msra.mxu0 0
        %873 = vmatpush.bf16.msra.mxu0 0
        %874 = vmatpush.bf16.msra.mxu0 0
        %875 = vmatpush.bf16.msra.mxu0 0
        %876 = vmatpush.bf16.msra.mxu0 0
        %877 = vmatpush.bf16.msra.mxu0 %v864
        %878 = vmatpush.bf16.msra.mxu0 %v863
        %879 = vmatmul.bf16.gmra.mxu0 %v869
        %v880 = vpop.f32.mrf.mxu0
        %v881 = vadd.f32 %v853, %v880
        %v882 = vpop.f32.mrf.mxu0
        %883 = vdwg.mxu0
        %v885 = vperm.slane %v807, 0
        %v891 = vunpack.c.l.b16 %v803
        %v892 = vunpack.c.l.b16 %v804
        %v893 = vunpack.c.l.b16 %v805
        %v894 = vunpack.c.l.b16 %v806
        %v895 = vpack.c.b16 %v892, %v891
        %v896 = vpack.c.b16 %v894, %v893
        %v900 = vsel %vm867, %v851, 0
        %902 = vmatpush.bf16.msra.mxu0 0
        %903 = vmatpush.bf16.msra.mxu0 0
        %904 = vmatpush.bf16.msra.mxu0 0
        %905 = vmatpush.bf16.msra.mxu0 0
        %906 = vmatpush.bf16.msra.mxu0 0
        %907 = vmatpush.bf16.msra.mxu0 0
        %908 = vmatpush.bf16.msra.mxu0 %v896
        %909 = vmatpush.bf16.msra.mxu0 %v895
        %910 = vmatmul.bf16.gmra.mxu0 %v900
        %v911 = vpop.f32.mrf.mxu0
        %v912 = vadd.f32 %v885, %v911
        %v913 = vpop.f32.mrf.mxu0
        %914 = vdwg.mxu0
        %v916 = vperm.slane %v812, 0
        %v922 = vunpack.c.l.b16 %v808
        %v923 = vunpack.c.l.b16 %v809
        %v924 = vunpack.c.l.b16 %v810
        %v925 = vunpack.c.l.b16 %v811
        %v926 = vpack.c.b16 %v923, %v922
        %v927 = vpack.c.b16 %v925, %v924
        %930 = vmatpush.bf16.msra.mxu0 0
        %931 = vmatpush.bf16.msra.mxu0 0
        %932 = vmatpush.bf16.msra.mxu0 0
        %933 = vmatpush.bf16.msra.mxu0 0
        %934 = vmatpush.bf16.msra.mxu0 0
        %935 = vmatpush.bf16.msra.mxu0 0
        %936 = vmatpush.bf16.msra.mxu0 %v927
        %937 = vmatpush.bf16.msra.mxu0 %v926
        %938 = vmatmul.bf16.gmra.mxu0 %v900
        %v939 = vpop.f32.mrf.mxu0
        %v940 = vadd.f32 %v916, %v939
        %v941 = vpop.f32.mrf.mxu0
        %942 = vdwg.mxu0
        %944 = vrot.lane.b32.xlu0 %v881, 120
        %v945 = vpop.permute.xlu0 %944
        %947 = vrot.lane.b32.xlu0 %v881, 112
        %v948 = vpop.permute.xlu0 %947
        %950 = vrot.lane.b32.xlu0 %v881, 104
        %v951 = vpop.permute.xlu0 %950
        %v953 = vrot.slane %v948, 4
        %vm954 = vcmask 1047556
        %v955 = vsel %vm954, %v953, %v881
        %v956 = vrot.slane %v881, 4
        %v957 = vsel %vm954, %v948, %v956
        %v959 = vunpack.c.l.s4 1983009808
        %v960 = vunpack.c.0.s8 %v959
        %v961 = vperm.slane %v955, %v960
        %v963 = vunpack.c.l.s4 1983009808
        %v964 = vunpack.c.0.s8 %v963
        %v965 = vperm.slane %v957, %v964
        %v966 = vrot.slane %v951, 4
        %v967 = vsel %vm954, %v966, %v945
        %v968 = vrot.slane %v945, 4
        %v969 = vsel %vm954, %v951, %v968
        %v971 = vunpack.c.l.s4 1983009808
        %v972 = vunpack.c.0.s8 %v971
        %v973 = vperm.slane %v967, %v972
        %v975 = vunpack.c.l.s4 1983009808
        %v976 = vunpack.c.0.s8 %v975
        %v977 = vperm.slane %v969, %v976
        %v978 = vrot.slane %v973, 4
        %v979 = vsel %vm954, %v978, %v961
        %v980 = vrot.slane %v961, 4
        %v981 = vsel %vm954, %v973, %v980
        %v983 = vunpack.c.l.s4 1934713408
        %v984 = vunpack.c.0.s8 %v983
        %v985 = vperm.slane %v979, %v984
        %v987 = vunpack.c.l.s4 1934713408
        %v988 = vunpack.c.0.s8 %v987
        %v989 = vperm.slane %v981, %v988
        %v990 = vrot.slane %v977, 4
        %v991 = vsel %vm954, %v990, %v965
        %v992 = vrot.slane %v965, 4
        %v993 = vsel %vm954, %v977, %v992
        %v995 = vunpack.c.l.s4 1934713408
        %v996 = vunpack.c.0.s8 %v995
        %v997 = vperm.slane %v991, %v996
        %v999 = vunpack.c.l.s4 1934713408
        %v1000 = vunpack.c.0.s8 %v999
        %v1001 = vperm.slane %v993, %v1000
        %v1002 = vrot.slane %v985, 4
        %v1003 = vsel %vm954, 0.0, %v1002
        %v1004 = vrot.slane %v989, 4
        %v1005 = vsel %vm954, 0.0, %v1004
        %v1006 = vrot.slane %v997, 4
        %v1007 = vsel %vm954, 0.0, %v1006
        %v1008 = vrot.slane %v1001, 4
        %v1009 = vsel %vm954, 0.0, %v1008
        %v1010 = vpack.c.bf16 %v985, %v985
        %v1011 = vpack.c.bf16 %v1003, %v1003
        %v1012 = vpack.c.bf16 %v989, %v989
        %v1013 = vpack.c.bf16 %v1005, %v1005
        %v1014 = vpack.c.bf16 %v997, %v997
        %v1015 = vpack.c.bf16 %v1007, %v1007
        %v1016 = vpack.c.bf16 %v1001, %v1001
        %v1017 = vpack.c.bf16 %v1009, %v1009
        %1019 = vrot.lane.b32.xlu0 %v912, 120
        %v1020 = vpop.permute.xlu0 %1019
        %1022 = vrot.lane.b32.xlu0 %v912, 112
        %v1023 = vpop.permute.xlu0 %1022
        %1025 = vrot.lane.b32.xlu0 %v912, 104
        %v1026 = vpop.permute.xlu0 %1025
        %v1028 = vrot.slane %v1023, 4
        %v1029 = vsel %vm954, %v1028, %v912
        %v1030 = vrot.slane %v912, 4
        %v1031 = vsel %vm954, %v1023, %v1030
        %v1033 = vunpack.c.l.s4 1983009808
        %v1034 = vunpack.c.0.s8 %v1033
        %v1035 = vperm.slane %v1029, %v1034
        %v1037 = vunpack.c.l.s4 1983009808
        %v1038 = vunpack.c.0.s8 %v1037
        %v1039 = vperm.slane %v1031, %v1038
        %v1040 = vrot.slane %v1026, 4
        %v1041 = vsel %vm954, %v1040, %v1020
        %v1042 = vrot.slane %v1020, 4
        %v1043 = vsel %vm954, %v1026, %v1042
        %v1045 = vunpack.c.l.s4 1983009808
        %v1046 = vunpack.c.0.s8 %v1045
        %v1047 = vperm.slane %v1041, %v1046
        %v1049 = vunpack.c.l.s4 1983009808
        %v1050 = vunpack.c.0.s8 %v1049
        %v1051 = vperm.slane %v1043, %v1050
        %v1052 = vrot.slane %v1047, 4
        %v1053 = vsel %vm954, %v1052, %v1035
        %v1054 = vrot.slane %v1035, 4
        %v1055 = vsel %vm954, %v1047, %v1054
        %v1057 = vunpack.c.l.s4 1934713408
        %v1058 = vunpack.c.0.s8 %v1057
        %v1059 = vperm.slane %v1053, %v1058
        %v1061 = vunpack.c.l.s4 1934713408
        %v1062 = vunpack.c.0.s8 %v1061
        %v1063 = vperm.slane %v1055, %v1062
        %v1064 = vrot.slane %v1051, 4
        %v1065 = vsel %vm954, %v1064, %v1039
        %v1066 = vrot.slane %v1039, 4
        %v1067 = vsel %vm954, %v1051, %v1066
        %v1069 = vunpack.c.l.s4 1934713408
        %v1070 = vunpack.c.0.s8 %v1069
        %v1071 = vperm.slane %v1065, %v1070
        %v1073 = vunpack.c.l.s4 1934713408
        %v1074 = vunpack.c.0.s8 %v1073
        %v1075 = vperm.slane %v1067, %v1074
        %v1076 = vrot.slane %v1059, 4
        %v1077 = vsel %vm954, 0.0, %v1076
        %v1078 = vrot.slane %v1063, 4
        %v1079 = vsel %vm954, 0.0, %v1078
        %v1080 = vrot.slane %v1071, 4
        %v1081 = vsel %vm954, 0.0, %v1080
        %v1082 = vrot.slane %v1075, 4
        %v1083 = vsel %vm954, 0.0, %v1082
        %v1084 = vpack.c.bf16 %v1059, %v1059
        %v1085 = vpack.c.bf16 %v1077, %v1077
        %v1086 = vpack.c.bf16 %v1063, %v1063
        %v1087 = vpack.c.bf16 %v1079, %v1079
        %v1088 = vpack.c.bf16 %v1071, %v1071
        %v1089 = vpack.c.bf16 %v1081, %v1081
        %v1090 = vpack.c.bf16 %v1075, %v1075
        %v1091 = vpack.c.bf16 %v1083, %v1083
        %1093 = vrot.lane.b32.xlu0 %v940, 120
        %v1094 = vpop.permute.xlu0 %1093
        %1096 = vrot.lane.b32.xlu0 %v940, 112
        %v1097 = vpop.permute.xlu0 %1096
        %1099 = vrot.lane.b32.xlu0 %v940, 104
        %v1100 = vpop.permute.xlu0 %1099
        %v1102 = vrot.slane %v1097, 4
        %v1103 = vsel %vm954, %v1102, %v940
        %v1104 = vrot.slane %v940, 4
        %v1105 = vsel %vm954, %v1097, %v1104
        %v1107 = vunpack.c.l.s4 1983009808
        %v1108 = vunpack.c.0.s8 %v1107
        %v1109 = vperm.slane %v1103, %v1108
        %v1111 = vunpack.c.l.s4 1983009808
        %v1112 = vunpack.c.0.s8 %v1111
        %v1113 = vperm.slane %v1105, %v1112
        %v1114 = vrot.slane %v1100, 4
        %v1115 = vsel %vm954, %v1114, %v1094
        %v1116 = vrot.slane %v1094, 4
        %v1117 = vsel %vm954, %v1100, %v1116
        %v1119 = vunpack.c.l.s4 1983009808
        %v1120 = vunpack.c.0.s8 %v1119
        %v1121 = vperm.slane %v1115, %v1120
        %v1123 = vunpack.c.l.s4 1983009808
        %v1124 = vunpack.c.0.s8 %v1123
        %v1125 = vperm.slane %v1117, %v1124
        %v1126 = vrot.slane %v1121, 4
        %v1127 = vsel %vm954, %v1126, %v1109
        %v1128 = vrot.slane %v1109, 4
        %v1129 = vsel %vm954, %v1121, %v1128
        %v1131 = vunpack.c.l.s4 1934713408
        %v1132 = vunpack.c.0.s8 %v1131
        %v1133 = vperm.slane %v1127, %v1132
        %v1135 = vunpack.c.l.s4 1934713408
        %v1136 = vunpack.c.0.s8 %v1135
        %v1137 = vperm.slane %v1129, %v1136
        %v1138 = vrot.slane %v1125, 4
        %v1139 = vsel %vm954, %v1138, %v1113
        %v1140 = vrot.slane %v1113, 4
        %v1141 = vsel %vm954, %v1125, %v1140
        %v1143 = vunpack.c.l.s4 1934713408
        %v1144 = vunpack.c.0.s8 %v1143
        %v1145 = vperm.slane %v1139, %v1144
        %v1147 = vunpack.c.l.s4 1934713408
        %v1148 = vunpack.c.0.s8 %v1147
        %v1149 = vperm.slane %v1141, %v1148
        %v1150 = vrot.slane %v1133, 4
        %v1151 = vsel %vm954, 0.0, %v1150
        %v1152 = vrot.slane %v1137, 4
        %v1153 = vsel %vm954, 0.0, %v1152
        %v1154 = vrot.slane %v1145, 4
        %v1155 = vsel %vm954, 0.0, %v1154
        %v1156 = vrot.slane %v1149, 4
        %v1157 = vsel %vm954, 0.0, %v1156
        %v1158 = vpack.c.bf16 %v1133, %v1133
        %v1159 = vpack.c.bf16 %v1151, %v1151
        %v1160 = vpack.c.bf16 %v1137, %v1137
        %v1161 = vpack.c.bf16 %v1153, %v1153
        %v1162 = vpack.c.bf16 %v1145, %v1145
        %v1163 = vpack.c.bf16 %v1155, %v1155
        %v1164 = vpack.c.bf16 %v1149, %v1149
        %v1165 = vpack.c.bf16 %v1157, %v1157
        %1166 = vxpose.xlu0.c.b16.start [1/8] %v1010, 128
        %1167 = vxpose.xlu0.c.b16.cont [2/8] 0, 128
        %1168 = vxpose.xlu0.c.b16.cont [3/8] 0, 128
        %1169 = vxpose.xlu0.c.b16.cont [4/8] 0, 128
        %1170 = vxpose.xlu0.c.b16.cont [5/8] 0, 128
        %1171 = vxpose.xlu0.c.b16.cont [6/8] 0, 128
        %1172 = vxpose.xlu0.c.b16.cont [7/8] 0, 128
        %1173 = vxpose.xlu0.c.b16.end [8/8] 0, 128
        %v1174 = vpop.trf.xlu0
        %v1175 = vpop.trf.xlu0
        %v1176 = vpop.trf.xlu0
        %v1177 = vpop.trf.xlu0
        %v1178 = vpop.trf.xlu0
        %v1179 = vpop.trf.xlu0
        %v1180 = vpop.trf.xlu0
        %v1181 = vpop.trf.xlu0
        %1182 = vxpose.xlu0.c.b16.start [1/8] %v1011, 128
        %1183 = vxpose.xlu0.c.b16.cont [2/8] 0, 128
        %1184 = vxpose.xlu0.c.b16.cont [3/8] 0, 128
        %1185 = vxpose.xlu0.c.b16.cont [4/8] 0, 128
        %1186 = vxpose.xlu0.c.b16.cont [5/8] 0, 128
        %1187 = vxpose.xlu0.c.b16.cont [6/8] 0, 128
        %1188 = vxpose.xlu0.c.b16.cont [7/8] 0, 128
        %1189 = vxpose.xlu0.c.b16.end [8/8] 0, 128
        %v1190 = vpop.trf.xlu0
        %v1191 = vpop.trf.xlu0
        %v1192 = vpop.trf.xlu0
        %v1193 = vpop.trf.xlu0
        %v1194 = vpop.trf.xlu0
        %v1195 = vpop.trf.xlu0
        %v1196 = vpop.trf.xlu0
        %v1197 = vpop.trf.xlu0
        %1198 = vxpose.xlu0.c.b16.start [1/8] %v1012, 128
        %1199 = vxpose.xlu0.c.b16.cont [2/8] 0, 128
        %1200 = vxpose.xlu0.c.b16.cont [3/8] 0, 128
        %1201 = vxpose.xlu0.c.b16.cont [4/8] 0, 128
        %1202 = vxpose.xlu0.c.b16.cont [5/8] 0, 128
        %1203 = vxpose.xlu0.c.b16.cont [6/8] 0, 128
        %1204 = vxpose.xlu0.c.b16.cont [7/8] 0, 128
        %1205 = vxpose.xlu0.c.b16.end [8/8] 0, 128
        %v1206 = vpop.trf.xlu0
        %v1207 = vpop.trf.xlu0
        %v1208 = vpop.trf.xlu0
        %v1209 = vpop.trf.xlu0
        %v1210 = vpop.trf.xlu0
        %v1211 = vpop.trf.xlu0
        %v1212 = vpop.trf.xlu0
        %v1213 = vpop.trf.xlu0
        %1214 = vxpose.xlu0.c.b16.start [1/8] %v1013, 128
        %1215 = vxpose.xlu0.c.b16.cont [2/8] 0, 128
        %1216 = vxpose.xlu0.c.b16.cont [3/8] 0, 128
        %1217 = vxpose.xlu0.c.b16.cont [4/8] 0, 128
        %1218 = vxpose.xlu0.c.b16.cont [5/8] 0, 128
        %1219 = vxpose.xlu0.c.b16.cont [6/8] 0, 128
        %1220 = vxpose.xlu0.c.b16.cont [7/8] 0, 128
        %1221 = vxpose.xlu0.c.b16.end [8/8] 0, 128
        %v1222 = vpop.trf.xlu0
        %v1223 = vpop.trf.xlu0
        %v1224 = vpop.trf.xlu0
        %v1225 = vpop.trf.xlu0
        %v1226 = vpop.trf.xlu0
        %v1227 = vpop.trf.xlu0
        %v1228 = vpop.trf.xlu0
        %v1229 = vpop.trf.xlu0
        %1230 = vxpose.xlu0.c.b16.start [1/8] %v1014, 128
        %1231 = vxpose.xlu0.c.b16.cont [2/8] 0, 128
        %1232 = vxpose.xlu0.c.b16.cont [3/8] 0, 128
        %1233 = vxpose.xlu0.c.b16.cont [4/8] 0, 128
        %1234 = vxpose.xlu0.c.b16.cont [5/8] 0, 128
        %1235 = vxpose.xlu0.c.b16.cont [6/8] 0, 128
        %1236 = vxpose.xlu0.c.b16.cont [7/8] 0, 128
        %1237 = vxpose.xlu0.c.b16.end [8/8] 0, 128
        %v1238 = vpop.trf.xlu0
        %v1239 = vpop.trf.xlu0
        %v1240 = vpop.trf.xlu0
        %v1241 = vpop.trf.xlu0
        %v1242 = vpop.trf.xlu0
        %v1243 = vpop.trf.xlu0
        %v1244 = vpop.trf.xlu0
        %v1245 = vpop.trf.xlu0
        %1246 = vxpose.xlu0.c.b16.start [1/8] %v1015, 128
        %1247 = vxpose.xlu0.c.b16.cont [2/8] 0, 128
        %1248 = vxpose.xlu0.c.b16.cont [3/8] 0, 128
        %1249 = vxpose.xlu0.c.b16.cont [4/8] 0, 128
        %1250 = vxpose.xlu0.c.b16.cont [5/8] 0, 128
        %1251 = vxpose.xlu0.c.b16.cont [6/8] 0, 128
        %1252 = vxpose.xlu0.c.b16.cont [7/8] 0, 128
        %1253 = vxpose.xlu0.c.b16.end [8/8] 0, 128
        %v1254 = vpop.trf.xlu0
        %v1255 = vpop.trf.xlu0
        %v1256 = vpop.trf.xlu0
        %v1257 = vpop.trf.xlu0
        %v1258 = vpop.trf.xlu0
        %v1259 = vpop.trf.xlu0
        %v1260 = vpop.trf.xlu0
        %v1261 = vpop.trf.xlu0
        %1262 = vxpose.xlu0.c.b16.start [1/8] %v1016, 128
        %1263 = vxpose.xlu0.c.b16.cont [2/8] 0, 128
        %1264 = vxpose.xlu0.c.b16.cont [3/8] 0, 128
        %1265 = vxpose.xlu0.c.b16.cont [4/8] 0, 128
        %1266 = vxpose.xlu0.c.b16.cont [5/8] 0, 128
        %1267 = vxpose.xlu0.c.b16.cont [6/8] 0, 128
        %1268 = vxpose.xlu0.c.b16.cont [7/8] 0, 128
        %1269 = vxpose.xlu0.c.b16.end [8/8] 0, 128
        %v1270 = vpop.trf.xlu0
        %v1271 = vpop.trf.xlu0
        %v1272 = vpop.trf.xlu0
        %v1273 = vpop.trf.xlu0
        %v1274 = vpop.trf.xlu0
        %v1275 = vpop.trf.xlu0
        %v1276 = vpop.trf.xlu0
        %v1277 = vpop.trf.xlu0
        %1278 = vxpose.xlu0.c.b16.start [1/8] %v1017, 128
        %1279 = vxpose.xlu0.c.b16.cont [2/8] 0, 128
        %1280 = vxpose.xlu0.c.b16.cont [3/8] 0, 128
        %1281 = vxpose.xlu0.c.b16.cont [4/8] 0, 128
        %1282 = vxpose.xlu0.c.b16.cont [5/8] 0, 128
        %1283 = vxpose.xlu0.c.b16.cont [6/8] 0, 128
        %1284 = vxpose.xlu0.c.b16.cont [7/8] 0, 128
        %1285 = vxpose.xlu0.c.b16.end [8/8] 0, 128
        %v1286 = vpop.trf.xlu0
        %v1287 = vpop.trf.xlu0
        %v1288 = vpop.trf.xlu0
        %v1289 = vpop.trf.xlu0
        %v1290 = vpop.trf.xlu0
        %v1291 = vpop.trf.xlu0
        %v1292 = vpop.trf.xlu0
        %v1293 = vpop.trf.xlu0
        %v1294 = vrot.slane %v1238, 4
        %vm1295 = vcmask 1047556
        %v1296 = vsel %vm1295, %v1294, %v1174
        %v1298 = vunpack.c.l.s4 1983009808
        %v1299 = vunpack.c.0.s8 %v1298
        %v1300 = vperm.slane %v1296, %v1299
        %v1301 = vrot.slane %v1270, 4
        %v1302 = vsel %vm1295, %v1301, %v1206
        %v1304 = vunpack.c.l.s4 1983009808
        %v1305 = vunpack.c.0.s8 %v1304
        %v1306 = vperm.slane %v1302, %v1305
        %v1307 = vrot.slane %v1306, 4
        %v1308 = vsel %vm1295, %v1307, %v1300
        %v1309 = vrot.slane %v1300, 4
        %v1310 = vsel %vm1295, %v1306, %v1309
        %v1312 = vunpack.c.l.s4 1934713408
        %v1313 = vunpack.c.0.s8 %v1312
        %v1314 = vperm.slane %v1308, %v1313
        %v1316 = vunpack.c.l.s4 1934713408
        %v1317 = vunpack.c.0.s8 %v1316
        %v1318 = vperm.slane %v1310, %v1317
        %v1319 = vrot.slane %v1314, 4
        %v1320 = vsel %vm1295, 0, %v1319
        %v1321 = vrot.slane %v1318, 4
        %v1322 = vsel %vm1295, 0, %v1321
        %v1323 = vrot.slane %v1254, 4
        %v1324 = vsel %vm1295, %v1323, %v1190
        %v1326 = vunpack.c.l.s4 1983009808
        %v1327 = vunpack.c.0.s8 %v1326
        %v1328 = vperm.slane %v1324, %v1327
        %v1329 = vrot.slane %v1286, 4
        %v1330 = vsel %vm1295, %v1329, %v1222
        %v1332 = vunpack.c.l.s4 1983009808
        %v1333 = vunpack.c.0.s8 %v1332
        %v1334 = vperm.slane %v1330, %v1333
        %v1335 = vrot.slane %v1334, 4
        %v1336 = vsel %vm1295, %v1335, %v1328
        %v1337 = vrot.slane %v1328, 4
        %v1338 = vsel %vm1295, %v1334, %v1337
        %v1340 = vunpack.c.l.s4 1934713408
        %v1341 = vunpack.c.0.s8 %v1340
        %v1342 = vperm.slane %v1336, %v1341
        %v1344 = vunpack.c.l.s4 1934713408
        %v1345 = vunpack.c.0.s8 %v1344
        %v1346 = vperm.slane %v1338, %v1345
        %v1347 = vrot.slane %v1342, 4
        %v1348 = vsel %vm1295, 0, %v1347
        %v1349 = vrot.slane %v1346, 4
        %v1350 = vsel %vm1295, 0, %v1349
        %v1353 = vpack.i.b16 %v1342, %v1314
        %v1355 = vshrl.u32 %v1314, 16
        %v1356 = vshrl.u32 %v1342, 16
        %v1357 = vpack.i.b16 %v1356, %v1355
        %v1361 = vpack.i.b16 %v1348, %v1320
        %v1363 = vshrl.u32 %v1320, 16
        %v1364 = vshrl.u32 %v1348, 16
        %v1365 = vpack.i.b16 %v1364, %v1363
        %v1369 = vpack.i.b16 %v1346, %v1318
        %v1371 = vshrl.u32 %v1318, 16
        %v1372 = vshrl.u32 %v1346, 16
        %v1373 = vpack.i.b16 %v1372, %v1371
        %v1377 = vpack.i.b16 %v1350, %v1322
        %v1379 = vshrl.u32 %v1322, 16
        %v1380 = vshrl.u32 %v1350, 16
        %v1381 = vpack.i.b16 %v1380, %v1379
        %1383 = vxpose.xlu0.c.b16.start [1/8] %v1353, 128
        %1384 = vxpose.xlu0.c.b16.cont [2/8] 0, 128
        %1385 = vxpose.xlu0.c.b16.cont [3/8] 0, 128
        %1386 = vxpose.xlu0.c.b16.cont [4/8] 0, 128
        %1387 = vxpose.xlu0.c.b16.cont [5/8] 0, 128
        %1388 = vxpose.xlu0.c.b16.cont [6/8] 0, 128
        %1389 = vxpose.xlu0.c.b16.cont [7/8] 0, 128
        %1390 = vxpose.xlu0.c.b16.end [8/8] 0, 128
        %v1391 = vpop.trf.xlu0
        %v1392 = vpop.trf.xlu0
        %v1393 = vpop.trf.xlu0
        %v1394 = vpop.trf.xlu0
        %v1395 = vpop.trf.xlu0
        %v1396 = vpop.trf.xlu0
        %v1397 = vpop.trf.xlu0
        %v1398 = vpop.trf.xlu0
        %1399 = vxpose.xlu0.c.b16.start [1/8] %v1357, 128
        %1400 = vxpose.xlu0.c.b16.cont [2/8] 0, 128
        %1401 = vxpose.xlu0.c.b16.cont [3/8] 0, 128
        %1402 = vxpose.xlu0.c.b16.cont [4/8] 0, 128
        %1403 = vxpose.xlu0.c.b16.cont [5/8] 0, 128
        %1404 = vxpose.xlu0.c.b16.cont [6/8] 0, 128
        %1405 = vxpose.xlu0.c.b16.cont [7/8] 0, 128
        %1406 = vxpose.xlu0.c.b16.end [8/8] 0, 128
        %v1407 = vpop.trf.xlu0
        %v1408 = vpop.trf.xlu0
        %v1409 = vpop.trf.xlu0
        %v1410 = vpop.trf.xlu0
        %v1411 = vpop.trf.xlu0
        %v1412 = vpop.trf.xlu0
        %v1413 = vpop.trf.xlu0
        %v1414 = vpop.trf.xlu0
        %1415 = vxpose.xlu0.c.b16.start [1/8] %v1361, 128
        %1416 = vxpose.xlu0.c.b16.cont [2/8] 0, 128
        %1417 = vxpose.xlu0.c.b16.cont [3/8] 0, 128
        %1418 = vxpose.xlu0.c.b16.cont [4/8] 0, 128
        %1419 = vxpose.xlu0.c.b16.cont [5/8] 0, 128
        %1420 = vxpose.xlu0.c.b16.cont [6/8] 0, 128
        %1421 = vxpose.xlu0.c.b16.cont [7/8] 0, 128
        %1422 = vxpose.xlu0.c.b16.end [8/8] 0, 128
        %v1423 = vpop.trf.xlu0
        %v1424 = vpop.trf.xlu0
        %v1425 = vpop.trf.xlu0
        %v1426 = vpop.trf.xlu0
        %v1427 = vpop.trf.xlu0
        %v1428 = vpop.trf.xlu0
        %v1429 = vpop.trf.xlu0
        %v1430 = vpop.trf.xlu0
        %1431 = vxpose.xlu0.c.b16.start [1/8] %v1365, 128
        %1432 = vxpose.xlu0.c.b16.cont [2/8] 0, 128
        %1433 = vxpose.xlu0.c.b16.cont [3/8] 0, 128
        %1434 = vxpose.xlu0.c.b16.cont [4/8] 0, 128
        %1435 = vxpose.xlu0.c.b16.cont [5/8] 0, 128
        %1436 = vxpose.xlu0.c.b16.cont [6/8] 0, 128
        %1437 = vxpose.xlu0.c.b16.cont [7/8] 0, 128
        %1438 = vxpose.xlu0.c.b16.end [8/8] 0, 128
        %v1439 = vpop.trf.xlu0
        %v1440 = vpop.trf.xlu0
        %v1441 = vpop.trf.xlu0
        %v1442 = vpop.trf.xlu0
        %v1443 = vpop.trf.xlu0
        %v1444 = vpop.trf.xlu0
        %v1445 = vpop.trf.xlu0
        %v1446 = vpop.trf.xlu0
        %1447 = vxpose.xlu0.c.b16.start [1/8] %v1369, 128
        %1448 = vxpose.xlu0.c.b16.cont [2/8] 0, 128
        %1449 = vxpose.xlu0.c.b16.cont [3/8] 0, 128
        %1450 = vxpose.xlu0.c.b16.cont [4/8] 0, 128
        %1451 = vxpose.xlu0.c.b16.cont [5/8] 0, 128
        %1452 = vxpose.xlu0.c.b16.cont [6/8] 0, 128
        %1453 = vxpose.xlu0.c.b16.cont [7/8] 0, 128
        %1454 = vxpose.xlu0.c.b16.end [8/8] 0, 128
        %v1455 = vpop.trf.xlu0
        %v1456 = vpop.trf.xlu0
        %v1457 = vpop.trf.xlu0
        %v1458 = vpop.trf.xlu0
        %v1459 = vpop.trf.xlu0
        %v1460 = vpop.trf.xlu0
        %v1461 = vpop.trf.xlu0
        %v1462 = vpop.trf.xlu0
        %1463 = vxpose.xlu0.c.b16.start [1/8] %v1373, 128
        %1464 = vxpose.xlu0.c.b16.cont [2/8] 0, 128
        %1465 = vxpose.xlu0.c.b16.cont [3/8] 0, 128
        %1466 = vxpose.xlu0.c.b16.cont [4/8] 0, 128
        %1467 = vxpose.xlu0.c.b16.cont [5/8] 0, 128
        %1468 = vxpose.xlu0.c.b16.cont [6/8] 0, 128
        %1469 = vxpose.xlu0.c.b16.cont [7/8] 0, 128
        %1470 = vxpose.xlu0.c.b16.end [8/8] 0, 128
        %v1471 = vpop.trf.xlu0
        %v1472 = vpop.trf.xlu0
        %v1473 = vpop.trf.xlu0
        %v1474 = vpop.trf.xlu0
        %v1475 = vpop.trf.xlu0
        %v1476 = vpop.trf.xlu0
        %v1477 = vpop.trf.xlu0
        %v1478 = vpop.trf.xlu0
        %1479 = vxpose.xlu0.c.b16.start [1/8] %v1377, 128
        %1480 = vxpose.xlu0.c.b16.cont [2/8] 0, 128
        %1481 = vxpose.xlu0.c.b16.cont [3/8] 0, 128
        %1482 = vxpose.xlu0.c.b16.cont [4/8] 0, 128
        %1483 = vxpose.xlu0.c.b16.cont [5/8] 0, 128
        %1484 = vxpose.xlu0.c.b16.cont [6/8] 0, 128
        %1485 = vxpose.xlu0.c.b16.cont [7/8] 0, 128
        %1486 = vxpose.xlu0.c.b16.end [8/8] 0, 128
        %v1487 = vpop.trf.xlu0
        %v1488 = vpop.trf.xlu0
        %v1489 = vpop.trf.xlu0
        %v1490 = vpop.trf.xlu0
        %v1491 = vpop.trf.xlu0
        %v1492 = vpop.trf.xlu0
        %v1493 = vpop.trf.xlu0
        %v1494 = vpop.trf.xlu0
        %1495 = vxpose.xlu0.c.b16.start [1/8] %v1381, 128
        %1496 = vxpose.xlu0.c.b16.cont [2/8] 0, 128
        %1497 = vxpose.xlu0.c.b16.cont [3/8] 0, 128
        %1498 = vxpose.xlu0.c.b16.cont [4/8] 0, 128
        %1499 = vxpose.xlu0.c.b16.cont [5/8] 0, 128
        %1500 = vxpose.xlu0.c.b16.cont [6/8] 0, 128
        %1501 = vxpose.xlu0.c.b16.cont [7/8] 0, 128
        %1502 = vxpose.xlu0.c.b16.end [8/8] 0, 128
        %v1503 = vpop.trf.xlu0
        %v1504 = vpop.trf.xlu0
        %v1505 = vpop.trf.xlu0
        %v1506 = vpop.trf.xlu0
        %v1507 = vpop.trf.xlu0
        %v1508 = vpop.trf.xlu0
        %v1509 = vpop.trf.xlu0
        %v1510 = vpop.trf.xlu0
        %v1511 = vrot.slane %v1455, 4
        %v1512 = vsel %vm1295, %v1511, %v1391
        %v1514 = vunpack.c.l.s4 1983009808
        %v1515 = vunpack.c.0.s8 %v1514
        %v1516 = vperm.slane %v1512, %v1515
        %v1517 = vrot.slane %v1487, 4
        %v1518 = vsel %vm1295, %v1517, %v1423
        %v1520 = vunpack.c.l.s4 1983009808
        %v1521 = vunpack.c.0.s8 %v1520
        %v1522 = vperm.slane %v1518, %v1521
        %v1523 = vrot.slane %v1522, 4
        %v1524 = vsel %vm1295, %v1523, %v1516
        %v1526 = vunpack.c.l.s4 1934713408
        %v1527 = vunpack.c.0.s8 %v1526
        %v1528 = vperm.slane %v1524, %v1527
        %v1529 = vrot.slane %v1528, 4
        %v1530 = vsel %vm1295, 0, %v1529
        %v1531 = vrot.slane %v1471, 4
        %v1532 = vsel %vm1295, %v1531, %v1407
        %v1534 = vunpack.c.l.s4 1983009808
        %v1535 = vunpack.c.0.s8 %v1534
        %v1536 = vperm.slane %v1532, %v1535
        %v1537 = vrot.slane %v1503, 4
        %v1538 = vsel %vm1295, %v1537, %v1439
        %v1540 = vunpack.c.l.s4 1983009808
        %v1541 = vunpack.c.0.s8 %v1540
        %v1542 = vperm.slane %v1538, %v1541
        %v1543 = vrot.slane %v1542, 4
        %v1544 = vsel %vm1295, %v1543, %v1536
        %v1546 = vunpack.c.l.s4 1934713408
        %v1547 = vunpack.c.0.s8 %v1546
        %v1548 = vperm.slane %v1544, %v1547
        %v1549 = vrot.slane %v1548, 4
        %v1550 = vsel %vm1295, 0, %v1549
        %v1553 = vpack.i.b16 %v1548, %v1528
        %v1554 = vshrl.u32 %v1528, 16
        %v1555 = vshrl.u32 %v1548, 16
        %v1556 = vpack.i.b16 %v1555, %v1554
        %v1559 = vpack.i.b16 %v1550, %v1530
        %v1560 = vshrl.u32 %v1530, 16
        %v1561 = vshrl.u32 %v1550, 16
        %v1562 = vpack.i.b16 %v1561, %v1560
        %1563 = vxpose.xlu0.c.b16.start [1/8] %v813, 128
        %1564 = vxpose.xlu0.c.b16.cont [2/8] 0, 128
        %1565 = vxpose.xlu0.c.b16.cont [3/8] 0, 128
        %1566 = vxpose.xlu0.c.b16.cont [4/8] 0, 128
        %1567 = vxpose.xlu0.c.b16.cont [5/8] 0, 128
        %1568 = vxpose.xlu0.c.b16.cont [6/8] 0, 128
        %1569 = vxpose.xlu0.c.b16.cont [7/8] 0, 128
        %1570 = vxpose.xlu0.c.b16.end [8/8] 0, 128
        %v1571 = vpop.trf.xlu0
        %v1572 = vpop.trf.xlu0
        %v1573 = vpop.trf.xlu0
        %v1574 = vpop.trf.xlu0
        %v1575 = vpop.trf.xlu0
        %v1576 = vpop.trf.xlu0
        %v1577 = vpop.trf.xlu0
        %v1578 = vpop.trf.xlu0
        %vm1579 = vcmask 64512
        %v1581 = vsel %vm1579, %v1571, 0
        %v1584 = vsel %vm1579, %v1572, 0
        %vm1586 = vcmask 1043456
        %v1588 = vsel %vm1586, %v1553, 0
        %1590 = vmatpush.bf16.msra.mxu0 0
        %1591 = vmatpush.bf16.msra.mxu0 0
        %1592 = vmatpush.bf16.msra.mxu0 0
        %1593 = vmatpush.bf16.msra.mxu0 0
        %1594 = vmatpush.bf16.msra.mxu0 0
        %1595 = vmatpush.bf16.msra.mxu0 0
        %1596 = vmatpush.bf16.msra.mxu0 0
        %1597 = vmatpush.bf16.msra.mxu0 %v1588
        %1598 = vmatmul.bf16.gmra.mxu0 %v1581
        %v1599 = vpop.f32.mrf.mxu0
        %v1600 = vadd.f32 0.0, %v1599
        %v1601 = vpop.f32.mrf.mxu0
        %v1602 = vadd.f32 0.0, %v1601
        %1603 = vmatmul.bf16.gmra.mxu0 %v1584
        %v1604 = vpop.f32.mrf.mxu0
        %v1605 = vadd.f32 0.0, %v1604
        %v1606 = vpop.f32.mrf.mxu0
        %v1607 = vadd.f32 0.0, %v1606
        %1608 = vdwg.mxu0
        %1609 = vxpose.xlu0.c.b16.start [1/8] %v814, 128
        %1610 = vxpose.xlu0.c.b16.cont [2/8] 0, 128
        %1611 = vxpose.xlu0.c.b16.cont [3/8] 0, 128
        %1612 = vxpose.xlu0.c.b16.cont [4/8] 0, 128
        %1613 = vxpose.xlu0.c.b16.cont [5/8] 0, 128
        %1614 = vxpose.xlu0.c.b16.cont [6/8] 0, 128
        %1615 = vxpose.xlu0.c.b16.cont [7/8] 0, 128
        %1616 = vxpose.xlu0.c.b16.end [8/8] 0, 128
        %v1617 = vpop.trf.xlu0
        %v1618 = vpop.trf.xlu0
        %v1619 = vpop.trf.xlu0
        %v1620 = vpop.trf.xlu0
        %v1621 = vpop.trf.xlu0
        %v1622 = vpop.trf.xlu0
        %v1623 = vpop.trf.xlu0
        %v1624 = vpop.trf.xlu0
        %v1626 = vsel %vm1579, %v1617, 0
        %v1629 = vsel %vm1579, %v1618, 0
        %v1632 = vsel %vm1586, %v1556, 0
        %1634 = vmatpush.bf16.msra.mxu0 0
        %1635 = vmatpush.bf16.msra.mxu0 0
        %1636 = vmatpush.bf16.msra.mxu0 0
        %1637 = vmatpush.bf16.msra.mxu0 0
        %1638 = vmatpush.bf16.msra.mxu0 0
        %1639 = vmatpush.bf16.msra.mxu0 0
        %1640 = vmatpush.bf16.msra.mxu0 0
        %1641 = vmatpush.bf16.msra.mxu0 %v1632
        %1642 = vmatmul.bf16.gmra.mxu0 %v1626
        %v1643 = vpop.f32.mrf.mxu0
        %v1644 = vadd.f32 0.0, %v1643
        %v1645 = vpop.f32.mrf.mxu0
        %v1646 = vadd.f32 0.0, %v1645
        %1647 = vmatmul.bf16.gmra.mxu0 %v1629
        %v1648 = vpop.f32.mrf.mxu0
        %v1649 = vadd.f32 0.0, %v1648
        %v1650 = vpop.f32.mrf.mxu0
        %v1651 = vadd.f32 0.0, %v1650
        %1652 = vdwg.mxu0
        %1653 = vxpose.xlu0.c.b16.start [1/8] %v815, 128
        %1654 = vxpose.xlu0.c.b16.cont [2/8] 0, 128
        %1655 = vxpose.xlu0.c.b16.cont [3/8] 0, 128
        %1656 = vxpose.xlu0.c.b16.cont [4/8] 0, 128
        %1657 = vxpose.xlu0.c.b16.cont [5/8] 0, 128
        %1658 = vxpose.xlu0.c.b16.cont [6/8] 0, 128
        %1659 = vxpose.xlu0.c.b16.cont [7/8] 0, 128
        %1660 = vxpose.xlu0.c.b16.end [8/8] 0, 128
        %v1661 = vpop.trf.xlu0
        %v1662 = vpop.trf.xlu0
        %v1663 = vpop.trf.xlu0
        %v1664 = vpop.trf.xlu0
        %v1665 = vpop.trf.xlu0
        %v1666 = vpop.trf.xlu0
        %v1667 = vpop.trf.xlu0
        %v1668 = vpop.trf.xlu0
        %v1670 = vsel %vm1579, %v1661, 0
        %v1673 = vsel %vm1579, %v1662, 0
        %v1676 = vsel %vm1586, %v1559, 0
        %1678 = vmatpush.bf16.msra.mxu0 0
        %1679 = vmatpush.bf16.msra.mxu0 0
        %1680 = vmatpush.bf16.msra.mxu0 0
        %1681 = vmatpush.bf16.msra.mxu0 0
        %1682 = vmatpush.bf16.msra.mxu0 0
        %1683 = vmatpush.bf16.msra.mxu0 0
        %1684 = vmatpush.bf16.msra.mxu0 0
        %1685 = vmatpush.bf16.msra.mxu0 %v1676
        %1686 = vmatmul.bf16.gmra.mxu0 %v1670
        %v1687 = vpop.f32.mrf.mxu0
        %v1688 = vadd.f32 0.0, %v1687
        %v1689 = vpop.f32.mrf.mxu0
        %v1690 = vadd.f32 0.0, %v1689
        %1691 = vmatmul.bf16.gmra.mxu0 %v1673
        %v1692 = vpop.f32.mrf.mxu0
        %v1693 = vadd.f32 0.0, %v1692
        %v1694 = vpop.f32.mrf.mxu0
        %v1695 = vadd.f32 0.0, %v1694
        %1696 = vdwg.mxu0
        %1697 = vxpose.xlu0.c.b16.start [1/8] %v816, 128
        %1698 = vxpose.xlu0.c.b16.cont [2/8] 0, 128
        %1699 = vxpose.xlu0.c.b16.cont [3/8] 0, 128
        %1700 = vxpose.xlu0.c.b16.cont [4/8] 0, 128
        %1701 = vxpose.xlu0.c.b16.cont [5/8] 0, 128
        %1702 = vxpose.xlu0.c.b16.cont [6/8] 0, 128
        %1703 = vxpose.xlu0.c.b16.cont [7/8] 0, 128
        %1704 = vxpose.xlu0.c.b16.end [8/8] 0, 128
        %v1705 = vpop.trf.xlu0
        %v1706 = vpop.trf.xlu0
        %v1707 = vpop.trf.xlu0
        %v1708 = vpop.trf.xlu0
        %v1709 = vpop.trf.xlu0
        %v1710 = vpop.trf.xlu0
        %v1711 = vpop.trf.xlu0
        %v1712 = vpop.trf.xlu0
        %v1714 = vsel %vm1579, %v1705, 0
        %v1717 = vsel %vm1579, %v1706, 0
        %v1720 = vsel %vm1586, %v1562, 0
        %1722 = vmatpush.bf16.msra.mxu0 0
        %1723 = vmatpush.bf16.msra.mxu0 0
        %1724 = vmatpush.bf16.msra.mxu0 0
        %1725 = vmatpush.bf16.msra.mxu0 0
        %1726 = vmatpush.bf16.msra.mxu0 0
        %1727 = vmatpush.bf16.msra.mxu0 0
        %1728 = vmatpush.bf16.msra.mxu0 0
        %1729 = vmatpush.bf16.msra.mxu0 %v1720
        %1730 = vmatmul.bf16.gmra.mxu0 %v1714
        %v1731 = vpop.f32.mrf.mxu0
        %v1732 = vadd.f32 0.0, %v1731
        %v1733 = vpop.f32.mrf.mxu0
        %v1734 = vadd.f32 0.0, %v1733
        %1735 = vmatmul.bf16.gmra.mxu0 %v1717
        %v1736 = vpop.f32.mrf.mxu0
        %v1737 = vadd.f32 0.0, %v1736
        %v1738 = vpop.f32.mrf.mxu0
        %v1739 = vadd.f32 0.0, %v1738
        %1740 = vdwg.mxu0
        %1741 = vxpose.xlu0.b32.start [1/16] %v1600, 128
        %1742 = vxpose.xlu0.b32.cont [2/16] %v1602, 128
        %1743 = vxpose.xlu0.b32.cont [3/16] %v1605, 128
        %1744 = vxpose.xlu0.b32.cont [4/16] %v1607, 128
        %1745 = vxpose.xlu0.b32.cont [5/16] 0.0, 128
        %1746 = vxpose.xlu0.b32.cont [6/16] 0.0, 128
        %1747 = vxpose.xlu0.b32.cont [7/16] 0.0, 128
        %1748 = vxpose.xlu0.b32.cont [8/16] 0.0, 128
        %1749 = vxpose.xlu0.b32.cont [9/16] 0.0, 128
        %1750 = vxpose.xlu0.b32.cont [10/16] 0.0, 128
        %1751 = vxpose.xlu0.b32.cont [11/16] 0.0, 128
        %1752 = vxpose.xlu0.b32.cont [12/16] 0.0, 128
        %1753 = vxpose.xlu0.b32.cont [13/16] 0.0, 128
        %1754 = vxpose.xlu0.b32.cont [14/16] 0.0, 128
        %1755 = vxpose.xlu0.b32.cont [15/16] 0.0, 128
        %1756 = vxpose.xlu0.b32.end [16/16] 0.0, 128
        %v1757 = vpop.trf.xlu0
        %v1758 = vpop.trf.xlu0
        %v1759 = vpop.trf.xlu0
        %v1760 = vpop.trf.xlu0
        %v1761 = vpop.trf.xlu0
        %v1762 = vpop.trf.xlu0
        %v1763 = vpop.trf.xlu0
        %v1764 = vpop.trf.xlu0
        %v1765 = vpop.trf.xlu0
        %v1766 = vpop.trf.xlu0
        %v1767 = vpop.trf.xlu0
        %v1768 = vpop.trf.xlu0
        %v1769 = vpop.trf.xlu0
        %v1770 = vpop.trf.xlu0
        %v1771 = vpop.trf.xlu0
        %v1772 = vpop.trf.xlu0
        %1773 = vxpose.xlu0.b32.start [1/16] %v1644, 128
        %1774 = vxpose.xlu0.b32.cont [2/16] %v1646, 128
        %1775 = vxpose.xlu0.b32.cont [3/16] %v1649, 128
        %1776 = vxpose.xlu0.b32.cont [4/16] %v1651, 128
        %1777 = vxpose.xlu0.b32.cont [5/16] 0.0, 128
        %1778 = vxpose.xlu0.b32.cont [6/16] 0.0, 128
        %1779 = vxpose.xlu0.b32.cont [7/16] 0.0, 128
        %1780 = vxpose.xlu0.b32.cont [8/16] 0.0, 128
        %1781 = vxpose.xlu0.b32.cont [9/16] 0.0, 128
        %1782 = vxpose.xlu0.b32.cont [10/16] 0.0, 128
        %1783 = vxpose.xlu0.b32.cont [11/16] 0.0, 128
        %1784 = vxpose.xlu0.b32.cont [12/16] 0.0, 128
        %1785 = vxpose.xlu0.b32.cont [13/16] 0.0, 128
        %1786 = vxpose.xlu0.b32.cont [14/16] 0.0, 128
        %1787 = vxpose.xlu0.b32.cont [15/16] 0.0, 128
        %1788 = vxpose.xlu0.b32.end [16/16] 0.0, 128
        %v1789 = vpop.trf.xlu0
        %v1790 = vpop.trf.xlu0
        %v1791 = vpop.trf.xlu0
        %v1792 = vpop.trf.xlu0
        %v1793 = vpop.trf.xlu0
        %v1794 = vpop.trf.xlu0
        %v1795 = vpop.trf.xlu0
        %v1796 = vpop.trf.xlu0
        %v1797 = vpop.trf.xlu0
        %v1798 = vpop.trf.xlu0
        %v1799 = vpop.trf.xlu0
        %v1800 = vpop.trf.xlu0
        %v1801 = vpop.trf.xlu0
        %v1802 = vpop.trf.xlu0
        %v1803 = vpop.trf.xlu0
        %v1804 = vpop.trf.xlu0
        %1805 = vxpose.xlu0.b32.start [1/16] %v1688, 128
        %1806 = vxpose.xlu0.b32.cont [2/16] %v1690, 128
        %1807 = vxpose.xlu0.b32.cont [3/16] %v1693, 128
        %1808 = vxpose.xlu0.b32.cont [4/16] %v1695, 128
        %1809 = vxpose.xlu0.b32.cont [5/16] 0.0, 128
        %1810 = vxpose.xlu0.b32.cont [6/16] 0.0, 128
        %1811 = vxpose.xlu0.b32.cont [7/16] 0.0, 128
        %1812 = vxpose.xlu0.b32.cont [8/16] 0.0, 128
        %1813 = vxpose.xlu0.b32.cont [9/16] 0.0, 128
        %1814 = vxpose.xlu0.b32.cont [10/16] 0.0, 128
        %1815 = vxpose.xlu0.b32.cont [11/16] 0.0, 128
        %1816 = vxpose.xlu0.b32.cont [12/16] 0.0, 128
        %1817 = vxpose.xlu0.b32.cont [13/16] 0.0, 128
        %1818 = vxpose.xlu0.b32.cont [14/16] 0.0, 128
        %1819 = vxpose.xlu0.b32.cont [15/16] 0.0, 128
        %1820 = vxpose.xlu0.b32.end [16/16] 0.0, 128
        %v1821 = vpop.trf.xlu0
        %v1822 = vpop.trf.xlu0
        %v1823 = vpop.trf.xlu0
        %v1824 = vpop.trf.xlu0
        %v1825 = vpop.trf.xlu0
        %v1826 = vpop.trf.xlu0
        %v1827 = vpop.trf.xlu0
        %v1828 = vpop.trf.xlu0
        %v1829 = vpop.trf.xlu0
        %v1830 = vpop.trf.xlu0
        %v1831 = vpop.trf.xlu0
        %v1832 = vpop.trf.xlu0
        %v1833 = vpop.trf.xlu0
        %v1834 = vpop.trf.xlu0
        %v1835 = vpop.trf.xlu0
        %v1836 = vpop.trf.xlu0
        %1837 = vxpose.xlu0.b32.start [1/16] %v1732, 128
        %1838 = vxpose.xlu0.b32.cont [2/16] %v1734, 128
        %1839 = vxpose.xlu0.b32.cont [3/16] %v1737, 128
        %1840 = vxpose.xlu0.b32.cont [4/16] %v1739, 128
        %1841 = vxpose.xlu0.b32.cont [5/16] 0.0, 128
        %1842 = vxpose.xlu0.b32.cont [6/16] 0.0, 128
        %1843 = vxpose.xlu0.b32.cont [7/16] 0.0, 128
        %1844 = vxpose.xlu0.b32.cont [8/16] 0.0, 128
        %1845 = vxpose.xlu0.b32.cont [9/16] 0.0, 128
        %1846 = vxpose.xlu0.b32.cont [10/16] 0.0, 128
        %1847 = vxpose.xlu0.b32.cont [11/16] 0.0, 128
        %1848 = vxpose.xlu0.b32.cont [12/16] 0.0, 128
        %1849 = vxpose.xlu0.b32.cont [13/16] 0.0, 128
        %1850 = vxpose.xlu0.b32.cont [14/16] 0.0, 128
        %1851 = vxpose.xlu0.b32.cont [15/16] 0.0, 128
        %1852 = vxpose.xlu0.b32.end [16/16] 0.0, 128
        %v1853 = vpop.trf.xlu0
        %v1854 = vpop.trf.xlu0
        %v1855 = vpop.trf.xlu0
        %v1856 = vpop.trf.xlu0
        %v1857 = vpop.trf.xlu0
        %v1858 = vpop.trf.xlu0
        %v1859 = vpop.trf.xlu0
        %v1860 = vpop.trf.xlu0
        %v1861 = vpop.trf.xlu0
        %v1862 = vpop.trf.xlu0
        %v1863 = vpop.trf.xlu0
        %v1864 = vpop.trf.xlu0
        %v1865 = vpop.trf.xlu0
        %v1866 = vpop.trf.xlu0
        %v1867 = vpop.trf.xlu0
        %v1868 = vpop.trf.xlu0
        %v1869 = vrot.slane %v1821, 4
        %v1870 = vsel %vm954, %v1869, %v1757
        %v1871 = vrot.slane %v1757, 4
        %v1872 = vsel %vm954, %v1821, %v1871
        %v1874 = vunpack.c.l.s4 1983009808
        %v1875 = vunpack.c.0.s8 %v1874
        %v1876 = vperm.slane %v1870, %v1875
        %v1878 = vunpack.c.l.s4 1983009808
        %v1879 = vunpack.c.0.s8 %v1878
        %v1880 = vperm.slane %v1872, %v1879
        %v1881 = vrot.slane %v1853, 4
        %v1882 = vsel %vm954, %v1881, %v1789
        %v1883 = vrot.slane %v1789, 4
        %v1884 = vsel %vm954, %v1853, %v1883
        %v1886 = vunpack.c.l.s4 1983009808
        %v1887 = vunpack.c.0.s8 %v1886
        %v1888 = vperm.slane %v1882, %v1887
        %v1890 = vunpack.c.l.s4 1983009808
        %v1891 = vunpack.c.0.s8 %v1890
        %v1892 = vperm.slane %v1884, %v1891
        %v1893 = vrot.slane %v1888, 4
        %v1894 = vsel %vm954, %v1893, %v1876
        %v1895 = vrot.slane %v1876, 4
        %v1896 = vsel %vm954, %v1888, %v1895
        %v1898 = vunpack.c.l.s4 1934713408
        %v1899 = vunpack.c.0.s8 %v1898
        %v1900 = vperm.slane %v1894, %v1899
        %v1902 = vunpack.c.l.s4 1934713408
        %v1903 = vunpack.c.0.s8 %v1902
        %v1904 = vperm.slane %v1896, %v1903
        %v1905 = vrot.slane %v1892, 4
        %v1906 = vsel %vm954, %v1905, %v1880
        %v1907 = vrot.slane %v1880, 4
        %v1908 = vsel %vm954, %v1892, %v1907
        %v1910 = vunpack.c.l.s4 1934713408
        %v1911 = vunpack.c.0.s8 %v1910
        %v1912 = vperm.slane %v1906, %v1911
        %v1914 = vunpack.c.l.s4 1934713408
        %v1915 = vunpack.c.0.s8 %v1914
        %v1916 = vperm.slane %v1908, %v1915
        %v1917 = vrot.slane %v1900, 4
        %v1918 = vsel %vm954, 0.0, %v1917
        %v1919 = vrot.slane %v1904, 4
        %v1920 = vsel %vm954, 0.0, %v1919
        %v1921 = vrot.slane %v1912, 4
        %v1922 = vsel %vm954, 0.0, %v1921
        %v1923 = vrot.slane %v1916, 4
        %v1924 = vsel %vm954, 0.0, %v1923
        %v1925 = vpack.c.bf16 %v1900, %v1900
        %v1926 = vpack.c.bf16 %v1918, %v1918
        %v1927 = vpack.c.bf16 %v1904, %v1904
        %v1928 = vpack.c.bf16 %v1920, %v1920
        %v1929 = vpack.c.bf16 %v1912, %v1912
        %v1930 = vpack.c.bf16 %v1922, %v1922
        %v1931 = vpack.c.bf16 %v1916, %v1916
        %v1932 = vpack.c.bf16 %v1924, %v1924
        %v1934 = vsel %vm867, %v842, 0
        %v1937 = vsel %vm867, %v1925, 0
        %1939 = vmatpush.bf16.xpose.msra.mxu0 0
        %1940 = vmatpush.bf16.xpose.msra.mxu0 0
        %1941 = vmatpush.bf16.xpose.msra.mxu0 0
        %1942 = vmatpush.bf16.xpose.msra.mxu0 0
        %1943 = vmatpush.bf16.xpose.msra.mxu0 0
        %1944 = vmatpush.bf16.xpose.msra.mxu0 0
        %1945 = vmatpush.bf16.xpose.msra.mxu0 0
        %1946 = vmatpush.bf16.xpose.msra.mxu0 %v1937
        %1947 = vmatmul.bf16.gmra.mxu0 %v1934
        %v1948 = vpop.f32.mrf.mxu0
        %v1949 = vadd.f32 0.0, %v1948
        %v1950 = vpop.f32.mrf.mxu0
        %1951 = vdwg.mxu0
        %v1953 = vsel %vm867, %v843, 0
        %v1956 = vsel %vm867, %v1926, 0
        %1958 = vmatpush.bf16.xpose.msra.mxu0 0
        %1959 = vmatpush.bf16.xpose.msra.mxu0 0
        %1960 = vmatpush.bf16.xpose.msra.mxu0 0
        %1961 = vmatpush.bf16.xpose.msra.mxu0 0
        %1962 = vmatpush.bf16.xpose.msra.mxu0 0
        %1963 = vmatpush.bf16.xpose.msra.mxu0 0
        %1964 = vmatpush.bf16.xpose.msra.mxu0 0
        %1965 = vmatpush.bf16.xpose.msra.mxu0 %v1956
        %1966 = vmatmul.bf16.gmra.mxu0 %v1953
        %v1967 = vpop.f32.mrf.mxu0
        %v1968 = vadd.f32 0.0, %v1967
        %v1969 = vpop.f32.mrf.mxu0
        %1970 = vdwg.mxu0
        %v1972 = vsel %vm867, %v844, 0
        %v1975 = vsel %vm867, %v1927, 0
        %1977 = vmatpush.bf16.xpose.msra.mxu0 0
        %1978 = vmatpush.bf16.xpose.msra.mxu0 0
        %1979 = vmatpush.bf16.xpose.msra.mxu0 0
        %1980 = vmatpush.bf16.xpose.msra.mxu0 0
        %1981 = vmatpush.bf16.xpose.msra.mxu0 0
        %1982 = vmatpush.bf16.xpose.msra.mxu0 0
        %1983 = vmatpush.bf16.xpose.msra.mxu0 0
        %1984 = vmatpush.bf16.xpose.msra.mxu0 %v1975
        %1985 = vmatmul.bf16.gmra.mxu0 %v1972
        %v1986 = vpop.f32.mrf.mxu0
        %v1987 = vadd.f32 0.0, %v1986
        %v1988 = vpop.f32.mrf.mxu0
        %1989 = vdwg.mxu0
        %v1991 = vsel %vm867, %v845, 0
        %v1994 = vsel %vm867, %v1928, 0
        %1996 = vmatpush.bf16.xpose.msra.mxu0 0
        %1997 = vmatpush.bf16.xpose.msra.mxu0 0
        %1998 = vmatpush.bf16.xpose.msra.mxu0 0
        %1999 = vmatpush.bf16.xpose.msra.mxu0 0
        %2000 = vmatpush.bf16.xpose.msra.mxu0 0
        %2001 = vmatpush.bf16.xpose.msra.mxu0 0
        %2002 = vmatpush.bf16.xpose.msra.mxu0 0
        %2003 = vmatpush.bf16.xpose.msra.mxu0 %v1994
        %2004 = vmatmul.bf16.gmra.mxu0 %v1991
        %v2005 = vpop.f32.mrf.mxu0
        %v2006 = vadd.f32 0.0, %v2005
        %v2007 = vpop.f32.mrf.mxu0
        %2008 = vdwg.mxu0
        %v2010 = vsel %vm867, %v846, 0
        %v2013 = vsel %vm867, %v1929, 0
        %2015 = vmatpush.bf16.xpose.msra.mxu0 0
        %2016 = vmatpush.bf16.xpose.msra.mxu0 0
        %2017 = vmatpush.bf16.xpose.msra.mxu0 0
        %2018 = vmatpush.bf16.xpose.msra.mxu0 0
        %2019 = vmatpush.bf16.xpose.msra.mxu0 0
        %2020 = vmatpush.bf16.xpose.msra.mxu0 0
        %2021 = vmatpush.bf16.xpose.msra.mxu0 0
        %2022 = vmatpush.bf16.xpose.msra.mxu0 %v2013
        %2023 = vmatmul.bf16.gmra.mxu0 %v2010
        %v2024 = vpop.f32.mrf.mxu0
        %v2025 = vadd.f32 0.0, %v2024
        %v2026 = vpop.f32.mrf.mxu0
        %2027 = vdwg.mxu0
        %v2029 = vsel %vm867, %v847, 0
        %v2032 = vsel %vm867, %v1930, 0
        %2034 = vmatpush.bf16.xpose.msra.mxu0 0
        %2035 = vmatpush.bf16.xpose.msra.mxu0 0
        %2036 = vmatpush.bf16.xpose.msra.mxu0 0
        %2037 = vmatpush.bf16.xpose.msra.mxu0 0
        %2038 = vmatpush.bf16.xpose.msra.mxu0 0
        %2039 = vmatpush.bf16.xpose.msra.mxu0 0
        %2040 = vmatpush.bf16.xpose.msra.mxu0 0
        %2041 = vmatpush.bf16.xpose.msra.mxu0 %v2032
        %2042 = vmatmul.bf16.gmra.mxu0 %v2029
        %v2043 = vpop.f32.mrf.mxu0
        %v2044 = vadd.f32 0.0, %v2043
        %v2045 = vpop.f32.mrf.mxu0
        %2046 = vdwg.mxu0
        %v2048 = vsel %vm867, %v848, 0
        %v2051 = vsel %vm867, %v1931, 0
        %2053 = vmatpush.bf16.xpose.msra.mxu0 0
        %2054 = vmatpush.bf16.xpose.msra.mxu0 0
        %2055 = vmatpush.bf16.xpose.msra.mxu0 0
        %2056 = vmatpush.bf16.xpose.msra.mxu0 0
        %2057 = vmatpush.bf16.xpose.msra.mxu0 0
        %2058 = vmatpush.bf16.xpose.msra.mxu0 0
        %2059 = vmatpush.bf16.xpose.msra.mxu0 0
        %2060 = vmatpush.bf16.xpose.msra.mxu0 %v2051
        %2061 = vmatmul.bf16.gmra.mxu0 %v2048
        %v2062 = vpop.f32.mrf.mxu0
        %v2063 = vadd.f32 0.0, %v2062
        %v2064 = vpop.f32.mrf.mxu0
        %2065 = vdwg.mxu0
        %v2067 = vsel %vm867, %v849, 0
        %v2070 = vsel %vm867, %v1932, 0
        %2072 = vmatpush.bf16.xpose.msra.mxu0 0
        %2073 = vmatpush.bf16.xpose.msra.mxu0 0
        %2074 = vmatpush.bf16.xpose.msra.mxu0 0
        %2075 = vmatpush.bf16.xpose.msra.mxu0 0
        %2076 = vmatpush.bf16.xpose.msra.mxu0 0
        %2077 = vmatpush.bf16.xpose.msra.mxu0 0
        %2078 = vmatpush.bf16.xpose.msra.mxu0 0
        %2079 = vmatpush.bf16.xpose.msra.mxu0 %v2070
        %2080 = vmatmul.bf16.gmra.mxu0 %v2067
        %v2081 = vpop.f32.mrf.mxu0
        %v2082 = vadd.f32 0.0, %v2081
        %v2083 = vpop.f32.mrf.mxu0
        %2084 = vdwg.mxu0
        %2085 = vxpose.xlu0.b32.start [1/16] %v1949, 128
        %2086 = vxpose.xlu0.b32.cont [2/16] 0.0, 128
        %2087 = vxpose.xlu0.b32.cont [3/16] 0.0, 128
        %2088 = vxpose.xlu0.b32.cont [4/16] 0.0, 128
        %2089 = vxpose.xlu0.b32.cont [5/16] 0.0, 128
        %2090 = vxpose.xlu0.b32.cont [6/16] 0.0, 128
        %2091 = vxpose.xlu0.b32.cont [7/16] 0.0, 128
        %2092 = vxpose.xlu0.b32.cont [8/16] 0.0, 128
        %2093 = vxpose.xlu0.b32.cont [9/16] 0.0, 128
        %2094 = vxpose.xlu0.b32.cont [10/16] 0.0, 128
        %2095 = vxpose.xlu0.b32.cont [11/16] 0.0, 128
        %2096 = vxpose.xlu0.b32.cont [12/16] 0.0, 128
        %2097 = vxpose.xlu0.b32.cont [13/16] 0.0, 128
        %2098 = vxpose.xlu0.b32.cont [14/16] 0.0, 128
        %2099 = vxpose.xlu0.b32.cont [15/16] 0.0, 128
        %2100 = vxpose.xlu0.b32.end [16/16] 0.0, 128
        %v2101 = vpop.trf.xlu0
        %v2102 = vpop.trf.xlu0
        %v2103 = vpop.trf.xlu0
        %v2104 = vpop.trf.xlu0
        %v2105 = vpop.trf.xlu0
        %v2106 = vpop.trf.xlu0
        %v2107 = vpop.trf.xlu0
        %v2108 = vpop.trf.xlu0
        %v2109 = vpop.trf.xlu0
        %v2110 = vpop.trf.xlu0
        %v2111 = vpop.trf.xlu0
        %v2112 = vpop.trf.xlu0
        %v2113 = vpop.trf.xlu0
        %v2114 = vpop.trf.xlu0
        %v2115 = vpop.trf.xlu0
        %v2116 = vpop.trf.xlu0
        %2117 = vxpose.xlu0.b32.start [1/16] %v1968, 128
        %2118 = vxpose.xlu0.b32.cont [2/16] 0.0, 128
        %2119 = vxpose.xlu0.b32.cont [3/16] 0.0, 128
        %2120 = vxpose.xlu0.b32.cont [4/16] 0.0, 128
        %2121 = vxpose.xlu0.b32.cont [5/16] 0.0, 128
        %2122 = vxpose.xlu0.b32.cont [6/16] 0.0, 128
        %2123 = vxpose.xlu0.b32.cont [7/16] 0.0, 128
        %2124 = vxpose.xlu0.b32.cont [8/16] 0.0, 128
        %2125 = vxpose.xlu0.b32.cont [9/16] 0.0, 128
        %2126 = vxpose.xlu0.b32.cont [10/16] 0.0, 128
        %2127 = vxpose.xlu0.b32.cont [11/16] 0.0, 128
        %2128 = vxpose.xlu0.b32.cont [12/16] 0.0, 128
        %2129 = vxpose.xlu0.b32.cont [13/16] 0.0, 128
        %2130 = vxpose.xlu0.b32.cont [14/16] 0.0, 128
        %2131 = vxpose.xlu0.b32.cont [15/16] 0.0, 128
        %2132 = vxpose.xlu0.b32.end [16/16] 0.0, 128
        %v2133 = vpop.trf.xlu0
        %v2134 = vpop.trf.xlu0
        %v2135 = vpop.trf.xlu0
        %v2136 = vpop.trf.xlu0
        %v2137 = vpop.trf.xlu0
        %v2138 = vpop.trf.xlu0
        %v2139 = vpop.trf.xlu0
        %v2140 = vpop.trf.xlu0
        %v2141 = vpop.trf.xlu0
        %v2142 = vpop.trf.xlu0
        %v2143 = vpop.trf.xlu0
        %v2144 = vpop.trf.xlu0
        %v2145 = vpop.trf.xlu0
        %v2146 = vpop.trf.xlu0
        %v2147 = vpop.trf.xlu0
        %v2148 = vpop.trf.xlu0
        %2149 = vxpose.xlu0.b32.start [1/16] %v1987, 128
        %2150 = vxpose.xlu0.b32.cont [2/16] 0.0, 128
        %2151 = vxpose.xlu0.b32.cont [3/16] 0.0, 128
        %2152 = vxpose.xlu0.b32.cont [4/16] 0.0, 128
        %2153 = vxpose.xlu0.b32.cont [5/16] 0.0, 128
        %2154 = vxpose.xlu0.b32.cont [6/16] 0.0, 128
        %2155 = vxpose.xlu0.b32.cont [7/16] 0.0, 128
        %2156 = vxpose.xlu0.b32.cont [8/16] 0.0, 128
        %2157 = vxpose.xlu0.b32.cont [9/16] 0.0, 128
        %2158 = vxpose.xlu0.b32.cont [10/16] 0.0, 128
        %2159 = vxpose.xlu0.b32.cont [11/16] 0.0, 128
        %2160 = vxpose.xlu0.b32.cont [12/16] 0.0, 128
        %2161 = vxpose.xlu0.b32.cont [13/16] 0.0, 128
        %2162 = vxpose.xlu0.b32.cont [14/16] 0.0, 128
        %2163 = vxpose.xlu0.b32.cont [15/16] 0.0, 128
        %2164 = vxpose.xlu0.b32.end [16/16] 0.0, 128
        %v2165 = vpop.trf.xlu0
        %v2166 = vpop.trf.xlu0
        %v2167 = vpop.trf.xlu0
        %v2168 = vpop.trf.xlu0
        %v2169 = vpop.trf.xlu0
        %v2170 = vpop.trf.xlu0
        %v2171 = vpop.trf.xlu0
        %v2172 = vpop.trf.xlu0
        %v2173 = vpop.trf.xlu0
        %v2174 = vpop.trf.xlu0
        %v2175 = vpop.trf.xlu0
        %v2176 = vpop.trf.xlu0
        %v2177 = vpop.trf.xlu0
        %v2178 = vpop.trf.xlu0
        %v2179 = vpop.trf.xlu0
        %v2180 = vpop.trf.xlu0
        %2181 = vxpose.xlu0.b32.start [1/16] %v2006, 128
        %2182 = vxpose.xlu0.b32.cont [2/16] 0.0, 128
        %2183 = vxpose.xlu0.b32.cont [3/16] 0.0, 128
        %2184 = vxpose.xlu0.b32.cont [4/16] 0.0, 128
        %2185 = vxpose.xlu0.b32.cont [5/16] 0.0, 128
        %2186 = vxpose.xlu0.b32.cont [6/16] 0.0, 128
        %2187 = vxpose.xlu0.b32.cont [7/16] 0.0, 128
        %2188 = vxpose.xlu0.b32.cont [8/16] 0.0, 128
        %2189 = vxpose.xlu0.b32.cont [9/16] 0.0, 128
        %2190 = vxpose.xlu0.b32.cont [10/16] 0.0, 128
        %2191 = vxpose.xlu0.b32.cont [11/16] 0.0, 128
        %2192 = vxpose.xlu0.b32.cont [12/16] 0.0, 128
        %2193 = vxpose.xlu0.b32.cont [13/16] 0.0, 128
        %2194 = vxpose.xlu0.b32.cont [14/16] 0.0, 128
        %2195 = vxpose.xlu0.b32.cont [15/16] 0.0, 128
        %2196 = vxpose.xlu0.b32.end [16/16] 0.0, 128
        %v2197 = vpop.trf.xlu0
        %v2198 = vpop.trf.xlu0
        %v2199 = vpop.trf.xlu0
        %v2200 = vpop.trf.xlu0
        %v2201 = vpop.trf.xlu0
        %v2202 = vpop.trf.xlu0
        %v2203 = vpop.trf.xlu0
        %v2204 = vpop.trf.xlu0
        %v2205 = vpop.trf.xlu0
        %v2206 = vpop.trf.xlu0
        %v2207 = vpop.trf.xlu0
        %v2208 = vpop.trf.xlu0
        %v2209 = vpop.trf.xlu0
        %v2210 = vpop.trf.xlu0
        %v2211 = vpop.trf.xlu0
        %v2212 = vpop.trf.xlu0
        %2213 = vxpose.xlu0.b32.start [1/16] %v2025, 128
        %2214 = vxpose.xlu0.b32.cont [2/16] 0.0, 128
        %2215 = vxpose.xlu0.b32.cont [3/16] 0.0, 128
        %2216 = vxpose.xlu0.b32.cont [4/16] 0.0, 128
        %2217 = vxpose.xlu0.b32.cont [5/16] 0.0, 128
        %2218 = vxpose.xlu0.b32.cont [6/16] 0.0, 128
        %2219 = vxpose.xlu0.b32.cont [7/16] 0.0, 128
        %2220 = vxpose.xlu0.b32.cont [8/16] 0.0, 128
        %2221 = vxpose.xlu0.b32.cont [9/16] 0.0, 128
        %2222 = vxpose.xlu0.b32.cont [10/16] 0.0, 128
        %2223 = vxpose.xlu0.b32.cont [11/16] 0.0, 128
        %2224 = vxpose.xlu0.b32.cont [12/16] 0.0, 128
        %2225 = vxpose.xlu0.b32.cont [13/16] 0.0, 128
        %2226 = vxpose.xlu0.b32.cont [14/16] 0.0, 128
        %2227 = vxpose.xlu0.b32.cont [15/16] 0.0, 128
        %2228 = vxpose.xlu0.b32.end [16/16] 0.0, 128
        %v2229 = vpop.trf.xlu0
        %v2230 = vpop.trf.xlu0
        %v2231 = vpop.trf.xlu0
        %v2232 = vpop.trf.xlu0
        %v2233 = vpop.trf.xlu0
        %v2234 = vpop.trf.xlu0
        %v2235 = vpop.trf.xlu0
        %v2236 = vpop.trf.xlu0
        %v2237 = vpop.trf.xlu0
        %v2238 = vpop.trf.xlu0
        %v2239 = vpop.trf.xlu0
        %v2240 = vpop.trf.xlu0
        %v2241 = vpop.trf.xlu0
        %v2242 = vpop.trf.xlu0
        %v2243 = vpop.trf.xlu0
        %v2244 = vpop.trf.xlu0
        %2245 = vxpose.xlu0.b32.start [1/16] %v2044, 128
        %2246 = vxpose.xlu0.b32.cont [2/16] 0.0, 128
        %2247 = vxpose.xlu0.b32.cont [3/16] 0.0, 128
        %2248 = vxpose.xlu0.b32.cont [4/16] 0.0, 128
        %2249 = vxpose.xlu0.b32.cont [5/16] 0.0, 128
        %2250 = vxpose.xlu0.b32.cont [6/16] 0.0, 128
        %2251 = vxpose.xlu0.b32.cont [7/16] 0.0, 128
        %2252 = vxpose.xlu0.b32.cont [8/16] 0.0, 128
        %2253 = vxpose.xlu0.b32.cont [9/16] 0.0, 128
        %2254 = vxpose.xlu0.b32.cont [10/16] 0.0, 128
        %2255 = vxpose.xlu0.b32.cont [11/16] 0.0, 128
        %2256 = vxpose.xlu0.b32.cont [12/16] 0.0, 128
        %2257 = vxpose.xlu0.b32.cont [13/16] 0.0, 128
        %2258 = vxpose.xlu0.b32.cont [14/16] 0.0, 128
        %2259 = vxpose.xlu0.b32.cont [15/16] 0.0, 128
        %2260 = vxpose.xlu0.b32.end [16/16] 0.0, 128
        %v2261 = vpop.trf.xlu0
        %v2262 = vpop.trf.xlu0
        %v2263 = vpop.trf.xlu0
        %v2264 = vpop.trf.xlu0
        %v2265 = vpop.trf.xlu0
        %v2266 = vpop.trf.xlu0
        %v2267 = vpop.trf.xlu0
        %v2268 = vpop.trf.xlu0
        %v2269 = vpop.trf.xlu0
        %v2270 = vpop.trf.xlu0
        %v2271 = vpop.trf.xlu0
        %v2272 = vpop.trf.xlu0
        %v2273 = vpop.trf.xlu0
        %v2274 = vpop.trf.xlu0
        %v2275 = vpop.trf.xlu0
        %v2276 = vpop.trf.xlu0
        %2277 = vxpose.xlu0.b32.start [1/16] %v2063, 128
        %2278 = vxpose.xlu0.b32.cont [2/16] 0.0, 128
        %2279 = vxpose.xlu0.b32.cont [3/16] 0.0, 128
        %2280 = vxpose.xlu0.b32.cont [4/16] 0.0, 128
        %2281 = vxpose.xlu0.b32.cont [5/16] 0.0, 128
        %2282 = vxpose.xlu0.b32.cont [6/16] 0.0, 128
        %2283 = vxpose.xlu0.b32.cont [7/16] 0.0, 128
        %2284 = vxpose.xlu0.b32.cont [8/16] 0.0, 128
        %2285 = vxpose.xlu0.b32.cont [9/16] 0.0, 128
        %2286 = vxpose.xlu0.b32.cont [10/16] 0.0, 128
        %2287 = vxpose.xlu0.b32.cont [11/16] 0.0, 128
        %2288 = vxpose.xlu0.b32.cont [12/16] 0.0, 128
        %2289 = vxpose.xlu0.b32.cont [13/16] 0.0, 128
        %2290 = vxpose.xlu0.b32.cont [14/16] 0.0, 128
        %2291 = vxpose.xlu0.b32.cont [15/16] 0.0, 128
        %2292 = vxpose.xlu0.b32.end [16/16] 0.0, 128
        %v2293 = vpop.trf.xlu0
        %v2294 = vpop.trf.xlu0
        %v2295 = vpop.trf.xlu0
        %v2296 = vpop.trf.xlu0
        %v2297 = vpop.trf.xlu0
        %v2298 = vpop.trf.xlu0
        %v2299 = vpop.trf.xlu0
        %v2300 = vpop.trf.xlu0
        %v2301 = vpop.trf.xlu0
        %v2302 = vpop.trf.xlu0
        %v2303 = vpop.trf.xlu0
        %v2304 = vpop.trf.xlu0
        %v2305 = vpop.trf.xlu0
        %v2306 = vpop.trf.xlu0
        %v2307 = vpop.trf.xlu0
        %v2308 = vpop.trf.xlu0
        %2309 = vxpose.xlu0.b32.start [1/16] %v2082, 128
        %2310 = vxpose.xlu0.b32.cont [2/16] 0.0, 128
        %2311 = vxpose.xlu0.b32.cont [3/16] 0.0, 128
        %2312 = vxpose.xlu0.b32.cont [4/16] 0.0, 128
        %2313 = vxpose.xlu0.b32.cont [5/16] 0.0, 128
        %2314 = vxpose.xlu0.b32.cont [6/16] 0.0, 128
        %2315 = vxpose.xlu0.b32.cont [7/16] 0.0, 128
        %2316 = vxpose.xlu0.b32.cont [8/16] 0.0, 128
        %2317 = vxpose.xlu0.b32.cont [9/16] 0.0, 128
        %2318 = vxpose.xlu0.b32.cont [10/16] 0.0, 128
        %2319 = vxpose.xlu0.b32.cont [11/16] 0.0, 128
        %2320 = vxpose.xlu0.b32.cont [12/16] 0.0, 128
        %2321 = vxpose.xlu0.b32.cont [13/16] 0.0, 128
        %2322 = vxpose.xlu0.b32.cont [14/16] 0.0, 128
        %2323 = vxpose.xlu0.b32.cont [15/16] 0.0, 128
        %2324 = vxpose.xlu0.b32.end [16/16] 0.0, 128
        %v2325 = vpop.trf.xlu0
        %v2326 = vpop.trf.xlu0
        %v2327 = vpop.trf.xlu0
        %v2328 = vpop.trf.xlu0
        %v2329 = vpop.trf.xlu0
        %v2330 = vpop.trf.xlu0
        %v2331 = vpop.trf.xlu0
        %v2332 = vpop.trf.xlu0
        %v2333 = vpop.trf.xlu0
        %v2334 = vpop.trf.xlu0
        %v2335 = vpop.trf.xlu0
        %v2336 = vpop.trf.xlu0
        %v2337 = vpop.trf.xlu0
        %v2338 = vpop.trf.xlu0
        %v2339 = vpop.trf.xlu0
        %v2340 = vpop.trf.xlu0
        %v2341 = vrot.slane %v2165, 4
        %v2342 = vsel %vm954, %v2341, %v2101
        %v2344 = vunpack.c.l.s4 1983009808
        %v2345 = vunpack.c.0.s8 %v2344
        %v2346 = vperm.slane %v2342, %v2345
        %v2347 = vrot.slane %v2197, 4
        %v2348 = vsel %vm954, %v2347, %v2133
        %v2350 = vunpack.c.l.s4 1983009808
        %v2351 = vunpack.c.0.s8 %v2350
        %v2352 = vperm.slane %v2348, %v2351
        %v2353 = vrot.slane %v2293, 4
        %v2354 = vsel %vm954, %v2353, %v2229
        %v2356 = vunpack.c.l.s4 1983009808
        %v2357 = vunpack.c.0.s8 %v2356
        %v2358 = vperm.slane %v2354, %v2357
        %v2359 = vrot.slane %v2325, 4
        %v2360 = vsel %vm954, %v2359, %v2261
        %v2362 = vunpack.c.l.s4 1983009808
        %v2363 = vunpack.c.0.s8 %v2362
        %v2364 = vperm.slane %v2360, %v2363
        %v2365 = vrot.slane %v2352, 4
        %v2366 = vsel %vm954, %v2365, %v2346
        %v2367 = vrot.slane %v2346, 4
        %v2368 = vsel %vm954, %v2352, %v2367
        %v2370 = vunpack.c.l.s4 1934713408
        %v2371 = vunpack.c.0.s8 %v2370
        %v2372 = vperm.slane %v2366, %v2371
        %v2374 = vunpack.c.l.s4 1934713408
        %v2375 = vunpack.c.0.s8 %v2374
        %v2376 = vperm.slane %v2368, %v2375
        %v2377 = vrot.slane %v2364, 4
        %v2378 = vsel %vm954, %v2377, %v2358
        %v2379 = vrot.slane %v2358, 4
        %v2380 = vsel %vm954, %v2364, %v2379
        %v2382 = vunpack.c.l.s4 1934713408
        %v2383 = vunpack.c.0.s8 %v2382
        %v2384 = vperm.slane %v2378, %v2383
        %v2386 = vunpack.c.l.s4 1934713408
        %v2387 = vunpack.c.0.s8 %v2386
        %v2388 = vperm.slane %v2380, %v2387
        %v2389 = vrot.slane %v2384, 4
        %v2390 = vsel %vm954, %v2389, %v2372
        %v2391 = vrot.slane %v2372, 4
        %v2392 = vsel %vm954, %v2384, %v2391
        %v2393 = vrot.slane %v2388, 4
        %v2394 = vsel %vm954, %v2393, %v2376
        %v2395 = vrot.slane %v2376, 4
        %v2396 = vsel %vm954, %v2388, %v2395
        %v2397 = vrot.slane %v1014, 4
        %v2398 = vsel %vm1295, %v2397, %v1010
        %v2400 = vunpack.c.l.s4 1983009808
        %v2401 = vunpack.c.0.s8 %v2400
        %v2402 = vperm.slane %v2398, %v2401
        %v2403 = vrot.slane %v1016, 4
        %v2404 = vsel %vm1295, %v2403, %v1012
        %v2406 = vunpack.c.l.s4 1983009808
        %v2407 = vunpack.c.0.s8 %v2406
        %v2408 = vperm.slane %v2404, %v2407
        %v2409 = vrot.slane %v2408, 4
        %v2410 = vsel %vm1295, %v2409, %v2402
        %v2412 = vunpack.c.l.s4 1934713408
        %v2413 = vunpack.c.0.s8 %v2412
        %v2414 = vperm.slane %v2410, %v2413
        %v2415 = vrot.slane %v2414, 4
        %v2416 = vsel %vm1295, 0, %v2415
        %v2417 = vrot.slane %v1015, 4
        %v2418 = vsel %vm1295, %v2417, %v1011
        %v2420 = vunpack.c.l.s4 1983009808
        %v2421 = vunpack.c.0.s8 %v2420
        %v2422 = vperm.slane %v2418, %v2421
        %v2423 = vrot.slane %v1017, 4
        %v2424 = vsel %vm1295, %v2423, %v1013
        %v2426 = vunpack.c.l.s4 1983009808
        %v2427 = vunpack.c.0.s8 %v2426
        %v2428 = vperm.slane %v2424, %v2427
        %v2429 = vrot.slane %v2428, 4
        %v2430 = vsel %vm1295, %v2429, %v2422
        %v2432 = vunpack.c.l.s4 1934713408
        %v2433 = vunpack.c.0.s8 %v2432
        %v2434 = vperm.slane %v2430, %v2433
        %v2435 = vrot.slane %v2434, 4
        %v2436 = vsel %vm1295, 0, %v2435
        %v2439 = vpack.i.b16 %v2434, %v2414
        %v2440 = vshrl.u32 %v2414, 16
        %v2441 = vshrl.u32 %v2434, 16
        %v2442 = vpack.i.b16 %v2441, %v2440
        %v2445 = vpack.i.b16 %v2436, %v2416
        %v2446 = vshrl.u32 %v2416, 16
        %v2447 = vshrl.u32 %v2436, 16
        %v2448 = vpack.i.b16 %v2447, %v2446
        %2449 = vxpose.xlu0.c.b16.start [1/8] %v1084, 128
        %2450 = vxpose.xlu0.c.b16.cont [2/8] 0, 128
        %2451 = vxpose.xlu0.c.b16.cont [3/8] 0, 128
        %2452 = vxpose.xlu0.c.b16.cont [4/8] 0, 128
        %2453 = vxpose.xlu0.c.b16.cont [5/8] 0, 128
        %2454 = vxpose.xlu0.c.b16.cont [6/8] 0, 128
        %2455 = vxpose.xlu0.c.b16.cont [7/8] 0, 128
        %2456 = vxpose.xlu0.c.b16.end [8/8] 0, 128
        %v2457 = vpop.trf.xlu0
        %v2458 = vpop.trf.xlu0
        %v2459 = vpop.trf.xlu0
        %v2460 = vpop.trf.xlu0
        %v2461 = vpop.trf.xlu0
        %v2462 = vpop.trf.xlu0
        %v2463 = vpop.trf.xlu0
        %v2464 = vpop.trf.xlu0
        %2465 = vxpose.xlu0.c.b16.start [1/8] %v1085, 128
        %2466 = vxpose.xlu0.c.b16.cont [2/8] 0, 128
        %2467 = vxpose.xlu0.c.b16.cont [3/8] 0, 128
        %2468 = vxpose.xlu0.c.b16.cont [4/8] 0, 128
        %2469 = vxpose.xlu0.c.b16.cont [5/8] 0, 128
        %2470 = vxpose.xlu0.c.b16.cont [6/8] 0, 128
        %2471 = vxpose.xlu0.c.b16.cont [7/8] 0, 128
        %2472 = vxpose.xlu0.c.b16.end [8/8] 0, 128
        %v2473 = vpop.trf.xlu0
        %v2474 = vpop.trf.xlu0
        %v2475 = vpop.trf.xlu0
        %v2476 = vpop.trf.xlu0
        %v2477 = vpop.trf.xlu0
        %v2478 = vpop.trf.xlu0
        %v2479 = vpop.trf.xlu0
        %v2480 = vpop.trf.xlu0
        %2481 = vxpose.xlu0.c.b16.start [1/8] %v1086, 128
        %2482 = vxpose.xlu0.c.b16.cont [2/8] 0, 128
        %2483 = vxpose.xlu0.c.b16.cont [3/8] 0, 128
        %2484 = vxpose.xlu0.c.b16.cont [4/8] 0, 128
        %2485 = vxpose.xlu0.c.b16.cont [5/8] 0, 128
        %2486 = vxpose.xlu0.c.b16.cont [6/8] 0, 128
        %2487 = vxpose.xlu0.c.b16.cont [7/8] 0, 128
        %2488 = vxpose.xlu0.c.b16.end [8/8] 0, 128
        %v2489 = vpop.trf.xlu0
        %v2490 = vpop.trf.xlu0
        %v2491 = vpop.trf.xlu0
        %v2492 = vpop.trf.xlu0
        %v2493 = vpop.trf.xlu0
        %v2494 = vpop.trf.xlu0
        %v2495 = vpop.trf.xlu0
        %v2496 = vpop.trf.xlu0
        %2497 = vxpose.xlu0.c.b16.start [1/8] %v1087, 128
        %2498 = vxpose.xlu0.c.b16.cont [2/8] 0, 128
        %2499 = vxpose.xlu0.c.b16.cont [3/8] 0, 128
        %2500 = vxpose.xlu0.c.b16.cont [4/8] 0, 128
        %2501 = vxpose.xlu0.c.b16.cont [5/8] 0, 128
        %2502 = vxpose.xlu0.c.b16.cont [6/8] 0, 128
        %2503 = vxpose.xlu0.c.b16.cont [7/8] 0, 128
        %2504 = vxpose.xlu0.c.b16.end [8/8] 0, 128
        %v2505 = vpop.trf.xlu0
        %v2506 = vpop.trf.xlu0
        %v2507 = vpop.trf.xlu0
        %v2508 = vpop.trf.xlu0
        %v2509 = vpop.trf.xlu0
        %v2510 = vpop.trf.xlu0
        %v2511 = vpop.trf.xlu0
        %v2512 = vpop.trf.xlu0
        %2513 = vxpose.xlu0.c.b16.start [1/8] %v1088, 128
        %2514 = vxpose.xlu0.c.b16.cont [2/8] 0, 128
        %2515 = vxpose.xlu0.c.b16.cont [3/8] 0, 128
        %2516 = vxpose.xlu0.c.b16.cont [4/8] 0, 128
        %2517 = vxpose.xlu0.c.b16.cont [5/8] 0, 128
        %2518 = vxpose.xlu0.c.b16.cont [6/8] 0, 128
        %2519 = vxpose.xlu0.c.b16.cont [7/8] 0, 128
        %2520 = vxpose.xlu0.c.b16.end [8/8] 0, 128
        %v2521 = vpop.trf.xlu0
        %v2522 = vpop.trf.xlu0
        %v2523 = vpop.trf.xlu0
        %v2524 = vpop.trf.xlu0
        %v2525 = vpop.trf.xlu0
        %v2526 = vpop.trf.xlu0
        %v2527 = vpop.trf.xlu0
        %v2528 = vpop.trf.xlu0
        %2529 = vxpose.xlu0.c.b16.start [1/8] %v1089, 128
        %2530 = vxpose.xlu0.c.b16.cont [2/8] 0, 128
        %2531 = vxpose.xlu0.c.b16.cont [3/8] 0, 128
        %2532 = vxpose.xlu0.c.b16.cont [4/8] 0, 128
        %2533 = vxpose.xlu0.c.b16.cont [5/8] 0, 128
        %2534 = vxpose.xlu0.c.b16.cont [6/8] 0, 128
        %2535 = vxpose.xlu0.c.b16.cont [7/8] 0, 128
        %2536 = vxpose.xlu0.c.b16.end [8/8] 0, 128
        %v2537 = vpop.trf.xlu0
        %v2538 = vpop.trf.xlu0
        %v2539 = vpop.trf.xlu0
        %v2540 = vpop.trf.xlu0
        %v2541 = vpop.trf.xlu0
        %v2542 = vpop.trf.xlu0
        %v2543 = vpop.trf.xlu0
        %v2544 = vpop.trf.xlu0
        %2545 = vxpose.xlu0.c.b16.start [1/8] %v1090, 128
        %2546 = vxpose.xlu0.c.b16.cont [2/8] 0, 128
        %2547 = vxpose.xlu0.c.b16.cont [3/8] 0, 128
        %2548 = vxpose.xlu0.c.b16.cont [4/8] 0, 128
        %2549 = vxpose.xlu0.c.b16.cont [5/8] 0, 128
        %2550 = vxpose.xlu0.c.b16.cont [6/8] 0, 128
        %2551 = vxpose.xlu0.c.b16.cont [7/8] 0, 128
        %2552 = vxpose.xlu0.c.b16.end [8/8] 0, 128
        %v2553 = vpop.trf.xlu0
        %v2554 = vpop.trf.xlu0
        %v2555 = vpop.trf.xlu0
        %v2556 = vpop.trf.xlu0
        %v2557 = vpop.trf.xlu0
        %v2558 = vpop.trf.xlu0
        %v2559 = vpop.trf.xlu0
        %v2560 = vpop.trf.xlu0
        %2561 = vxpose.xlu0.c.b16.start [1/8] %v1091, 128
        %2562 = vxpose.xlu0.c.b16.cont [2/8] 0, 128
        %2563 = vxpose.xlu0.c.b16.cont [3/8] 0, 128
        %2564 = vxpose.xlu0.c.b16.cont [4/8] 0, 128
        %2565 = vxpose.xlu0.c.b16.cont [5/8] 0, 128
        %2566 = vxpose.xlu0.c.b16.cont [6/8] 0, 128
        %2567 = vxpose.xlu0.c.b16.cont [7/8] 0, 128
        %2568 = vxpose.xlu0.c.b16.end [8/8] 0, 128
        %v2569 = vpop.trf.xlu0
        %v2570 = vpop.trf.xlu0
        %v2571 = vpop.trf.xlu0
        %v2572 = vpop.trf.xlu0
        %v2573 = vpop.trf.xlu0
        %v2574 = vpop.trf.xlu0
        %v2575 = vpop.trf.xlu0
        %v2576 = vpop.trf.xlu0
        %v2577 = vrot.slane %v2521, 4
        %v2578 = vsel %vm1295, %v2577, %v2457
        %v2580 = vunpack.c.l.s4 1983009808
        %v2581 = vunpack.c.0.s8 %v2580
        %v2582 = vperm.slane %v2578, %v2581
        %v2583 = vrot.slane %v2553, 4
        %v2584 = vsel %vm1295, %v2583, %v2489
        %v2586 = vunpack.c.l.s4 1983009808
        %v2587 = vunpack.c.0.s8 %v2586
        %v2588 = vperm.slane %v2584, %v2587
        %v2589 = vrot.slane %v2588, 4
        %v2590 = vsel %vm1295, %v2589, %v2582
        %v2591 = vrot.slane %v2582, 4
        %v2592 = vsel %vm1295, %v2588, %v2591
        %v2594 = vunpack.c.l.s4 1934713408
        %v2595 = vunpack.c.0.s8 %v2594
        %v2596 = vperm.slane %v2590, %v2595
        %v2598 = vunpack.c.l.s4 1934713408
        %v2599 = vunpack.c.0.s8 %v2598
        %v2600 = vperm.slane %v2592, %v2599
        %v2601 = vrot.slane %v2596, 4
        %v2602 = vsel %vm1295, 0, %v2601
        %v2603 = vrot.slane %v2600, 4
        %v2604 = vsel %vm1295, 0, %v2603
        %v2605 = vrot.slane %v2537, 4
        %v2606 = vsel %vm1295, %v2605, %v2473
        %v2608 = vunpack.c.l.s4 1983009808
        %v2609 = vunpack.c.0.s8 %v2608
        %v2610 = vperm.slane %v2606, %v2609
        %v2611 = vrot.slane %v2569, 4
        %v2612 = vsel %vm1295, %v2611, %v2505
        %v2614 = vunpack.c.l.s4 1983009808
        %v2615 = vunpack.c.0.s8 %v2614
        %v2616 = vperm.slane %v2612, %v2615
        %v2617 = vrot.slane %v2616, 4
        %v2618 = vsel %vm1295, %v2617, %v2610
        %v2619 = vrot.slane %v2610, 4
        %v2620 = vsel %vm1295, %v2616, %v2619
        %v2622 = vunpack.c.l.s4 1934713408
        %v2623 = vunpack.c.0.s8 %v2622
        %v2624 = vperm.slane %v2618, %v2623
        %v2626 = vunpack.c.l.s4 1934713408
        %v2627 = vunpack.c.0.s8 %v2626
        %v2628 = vperm.slane %v2620, %v2627
        %v2629 = vrot.slane %v2624, 4
        %v2630 = vsel %vm1295, 0, %v2629
        %v2631 = vrot.slane %v2628, 4
        %v2632 = vsel %vm1295, 0, %v2631
        %v2635 = vpack.i.b16 %v2624, %v2596
        %v2637 = vshrl.u32 %v2596, 16
        %v2638 = vshrl.u32 %v2624, 16
        %v2639 = vpack.i.b16 %v2638, %v2637
        %v2643 = vpack.i.b16 %v2630, %v2602
        %v2645 = vshrl.u32 %v2602, 16
        %v2646 = vshrl.u32 %v2630, 16
        %v2647 = vpack.i.b16 %v2646, %v2645
        %v2651 = vpack.i.b16 %v2628, %v2600
        %v2653 = vshrl.u32 %v2600, 16
        %v2654 = vshrl.u32 %v2628, 16
        %v2655 = vpack.i.b16 %v2654, %v2653
        %v2659 = vpack.i.b16 %v2632, %v2604
        %v2661 = vshrl.u32 %v2604, 16
        %v2662 = vshrl.u32 %v2632, 16
        %v2663 = vpack.i.b16 %v2662, %v2661
        %2665 = vxpose.xlu0.c.b16.start [1/8] %v2635, 128
        %2666 = vxpose.xlu0.c.b16.cont [2/8] 0, 128
        %2667 = vxpose.xlu0.c.b16.cont [3/8] 0, 128
        %2668 = vxpose.xlu0.c.b16.cont [4/8] 0, 128
        %2669 = vxpose.xlu0.c.b16.cont [5/8] 0, 128
        %2670 = vxpose.xlu0.c.b16.cont [6/8] 0, 128
        %2671 = vxpose.xlu0.c.b16.cont [7/8] 0, 128
        %2672 = vxpose.xlu0.c.b16.end [8/8] 0, 128
        %v2673 = vpop.trf.xlu0
        %v2674 = vpop.trf.xlu0
        %v2675 = vpop.trf.xlu0
        %v2676 = vpop.trf.xlu0
        %v2677 = vpop.trf.xlu0
        %v2678 = vpop.trf.xlu0
        %v2679 = vpop.trf.xlu0
        %v2680 = vpop.trf.xlu0
        %2681 = vxpose.xlu0.c.b16.start [1/8] %v2639, 128
        %2682 = vxpose.xlu0.c.b16.cont [2/8] 0, 128
        %2683 = vxpose.xlu0.c.b16.cont [3/8] 0, 128
        %2684 = vxpose.xlu0.c.b16.cont [4/8] 0, 128
        %2685 = vxpose.xlu0.c.b16.cont [5/8] 0, 128
        %2686 = vxpose.xlu0.c.b16.cont [6/8] 0, 128
        %2687 = vxpose.xlu0.c.b16.cont [7/8] 0, 128
        %2688 = vxpose.xlu0.c.b16.end [8/8] 0, 128
        %v2689 = vpop.trf.xlu0
        %v2690 = vpop.trf.xlu0
        %v2691 = vpop.trf.xlu0
        %v2692 = vpop.trf.xlu0
        %v2693 = vpop.trf.xlu0
        %v2694 = vpop.trf.xlu0
        %v2695 = vpop.trf.xlu0
        %v2696 = vpop.trf.xlu0
        %2697 = vxpose.xlu0.c.b16.start [1/8] %v2643, 128
        %2698 = vxpose.xlu0.c.b16.cont [2/8] 0, 128
        %2699 = vxpose.xlu0.c.b16.cont [3/8] 0, 128
        %2700 = vxpose.xlu0.c.b16.cont [4/8] 0, 128
        %2701 = vxpose.xlu0.c.b16.cont [5/8] 0, 128
        %2702 = vxpose.xlu0.c.b16.cont [6/8] 0, 128
        %2703 = vxpose.xlu0.c.b16.cont [7/8] 0, 128
        %2704 = vxpose.xlu0.c.b16.end [8/8] 0, 128
        %v2705 = vpop.trf.xlu0
        %v2706 = vpop.trf.xlu0
        %v2707 = vpop.trf.xlu0
        %v2708 = vpop.trf.xlu0
        %v2709 = vpop.trf.xlu0
        %v2710 = vpop.trf.xlu0
        %v2711 = vpop.trf.xlu0
        %v2712 = vpop.trf.xlu0
        %2713 = vxpose.xlu0.c.b16.start [1/8] %v2647, 128
        %2714 = vxpose.xlu0.c.b16.cont [2/8] 0, 128
        %2715 = vxpose.xlu0.c.b16.cont [3/8] 0, 128
        %2716 = vxpose.xlu0.c.b16.cont [4/8] 0, 128
        %2717 = vxpose.xlu0.c.b16.cont [5/8] 0, 128
        %2718 = vxpose.xlu0.c.b16.cont [6/8] 0, 128
        %2719 = vxpose.xlu0.c.b16.cont [7/8] 0, 128
        %2720 = vxpose.xlu0.c.b16.end [8/8] 0, 128
        %v2721 = vpop.trf.xlu0
        %v2722 = vpop.trf.xlu0
        %v2723 = vpop.trf.xlu0
        %v2724 = vpop.trf.xlu0
        %v2725 = vpop.trf.xlu0
        %v2726 = vpop.trf.xlu0
        %v2727 = vpop.trf.xlu0
        %v2728 = vpop.trf.xlu0
        %2729 = vxpose.xlu0.c.b16.start [1/8] %v2651, 128
        %2730 = vxpose.xlu0.c.b16.cont [2/8] 0, 128
        %2731 = vxpose.xlu0.c.b16.cont [3/8] 0, 128
        %2732 = vxpose.xlu0.c.b16.cont [4/8] 0, 128
        %2733 = vxpose.xlu0.c.b16.cont [5/8] 0, 128
        %2734 = vxpose.xlu0.c.b16.cont [6/8] 0, 128
        %2735 = vxpose.xlu0.c.b16.cont [7/8] 0, 128
        %2736 = vxpose.xlu0.c.b16.end [8/8] 0, 128
        %v2737 = vpop.trf.xlu0
        %v2738 = vpop.trf.xlu0
        %v2739 = vpop.trf.xlu0
        %v2740 = vpop.trf.xlu0
        %v2741 = vpop.trf.xlu0
        %v2742 = vpop.trf.xlu0
        %v2743 = vpop.trf.xlu0
        %v2744 = vpop.trf.xlu0
        %2745 = vxpose.xlu0.c.b16.start [1/8] %v2655, 128
        %2746 = vxpose.xlu0.c.b16.cont [2/8] 0, 128
        %2747 = vxpose.xlu0.c.b16.cont [3/8] 0, 128
        %2748 = vxpose.xlu0.c.b16.cont [4/8] 0, 128
        %2749 = vxpose.xlu0.c.b16.cont [5/8] 0, 128
        %2750 = vxpose.xlu0.c.b16.cont [6/8] 0, 128
        %2751 = vxpose.xlu0.c.b16.cont [7/8] 0, 128
        %2752 = vxpose.xlu0.c.b16.end [8/8] 0, 128
        %v2753 = vpop.trf.xlu0
        %v2754 = vpop.trf.xlu0
        %v2755 = vpop.trf.xlu0
        %v2756 = vpop.trf.xlu0
        %v2757 = vpop.trf.xlu0
        %v2758 = vpop.trf.xlu0
        %v2759 = vpop.trf.xlu0
        %v2760 = vpop.trf.xlu0
        %2761 = vxpose.xlu0.c.b16.start [1/8] %v2659, 128
        %2762 = vxpose.xlu0.c.b16.cont [2/8] 0, 128
        %2763 = vxpose.xlu0.c.b16.cont [3/8] 0, 128
        %2764 = vxpose.xlu0.c.b16.cont [4/8] 0, 128
        %2765 = vxpose.xlu0.c.b16.cont [5/8] 0, 128
        %2766 = vxpose.xlu0.c.b16.cont [6/8] 0, 128
        %2767 = vxpose.xlu0.c.b16.cont [7/8] 0, 128
        %2768 = vxpose.xlu0.c.b16.end [8/8] 0, 128
        %v2769 = vpop.trf.xlu0
        %v2770 = vpop.trf.xlu0
        %v2771 = vpop.trf.xlu0
        %v2772 = vpop.trf.xlu0
        %v2773 = vpop.trf.xlu0
        %v2774 = vpop.trf.xlu0
        %v2775 = vpop.trf.xlu0
        %v2776 = vpop.trf.xlu0
        %2777 = vxpose.xlu0.c.b16.start [1/8] %v2663, 128
        %2778 = vxpose.xlu0.c.b16.cont [2/8] 0, 128
        %2779 = vxpose.xlu0.c.b16.cont [3/8] 0, 128
        %2780 = vxpose.xlu0.c.b16.cont [4/8] 0, 128
        %2781 = vxpose.xlu0.c.b16.cont [5/8] 0, 128
        %2782 = vxpose.xlu0.c.b16.cont [6/8] 0, 128
        %2783 = vxpose.xlu0.c.b16.cont [7/8] 0, 128
        %2784 = vxpose.xlu0.c.b16.end [8/8] 0, 128
        %v2785 = vpop.trf.xlu0
        %v2786 = vpop.trf.xlu0
        %v2787 = vpop.trf.xlu0
        %v2788 = vpop.trf.xlu0
        %v2789 = vpop.trf.xlu0
        %v2790 = vpop.trf.xlu0
        %v2791 = vpop.trf.xlu0
        %v2792 = vpop.trf.xlu0
        %v2793 = vrot.slane %v2737, 4
        %v2794 = vsel %vm1295, %v2793, %v2673
        %v2796 = vunpack.c.l.s4 1983009808
        %v2797 = vunpack.c.0.s8 %v2796
        %v2798 = vperm.slane %v2794, %v2797
        %v2799 = vrot.slane %v2769, 4
        %v2800 = vsel %vm1295, %v2799, %v2705
        %v2802 = vunpack.c.l.s4 1983009808
        %v2803 = vunpack.c.0.s8 %v2802
        %v2804 = vperm.slane %v2800, %v2803
        %v2805 = vrot.slane %v2804, 4
        %v2806 = vsel %vm1295, %v2805, %v2798
        %v2808 = vunpack.c.l.s4 1934713408
        %v2809 = vunpack.c.0.s8 %v2808
        %v2810 = vperm.slane %v2806, %v2809
        %v2811 = vrot.slane %v2810, 4
        %v2812 = vsel %vm1295, 0, %v2811
        %v2813 = vrot.slane %v2753, 4
        %v2814 = vsel %vm1295, %v2813, %v2689
        %v2816 = vunpack.c.l.s4 1983009808
        %v2817 = vunpack.c.0.s8 %v2816
        %v2818 = vperm.slane %v2814, %v2817
        %v2819 = vrot.slane %v2785, 4
        %v2820 = vsel %vm1295, %v2819, %v2721
        %v2822 = vunpack.c.l.s4 1983009808
        %v2823 = vunpack.c.0.s8 %v2822
        %v2824 = vperm.slane %v2820, %v2823
        %v2825 = vrot.slane %v2824, 4
        %v2826 = vsel %vm1295, %v2825, %v2818
        %v2828 = vunpack.c.l.s4 1934713408
        %v2829 = vunpack.c.0.s8 %v2828
        %v2830 = vperm.slane %v2826, %v2829
        %v2831 = vrot.slane %v2830, 4
        %v2832 = vsel %vm1295, 0, %v2831
        %v2835 = vpack.i.b16 %v2830, %v2810
        %v2836 = vshrl.u32 %v2810, 16
        %v2837 = vshrl.u32 %v2830, 16
        %v2838 = vpack.i.b16 %v2837, %v2836
        %v2841 = vpack.i.b16 %v2832, %v2812
        %v2842 = vshrl.u32 %v2812, 16
        %v2843 = vshrl.u32 %v2832, 16
        %v2844 = vpack.i.b16 %v2843, %v2842
        %v2846 = vsel %vm1579, %v2439, 0
        %v2849 = vsel %vm1586, %v2835, 0
        %2851 = vmatpush.bf16.msra.mxu0 0
        %2852 = vmatpush.bf16.msra.mxu0 0
        %2853 = vmatpush.bf16.msra.mxu0 0
        %2854 = vmatpush.bf16.msra.mxu0 0
        %2855 = vmatpush.bf16.msra.mxu0 0
        %2856 = vmatpush.bf16.msra.mxu0 0
        %2857 = vmatpush.bf16.msra.mxu0 0
        %2858 = vmatpush.bf16.msra.mxu0 %v2849
        %2859 = vmatmul.bf16.gmra.mxu0 %v2846
        %v2860 = vpop.f32.mrf.mxu0
        %v2861 = vadd.f32 %v2390, %v2860
        %v2862 = vpop.f32.mrf.mxu0
        %2863 = vdwg.mxu0
        %v2865 = vsel %vm1579, %v2442, 0
        %v2868 = vsel %vm1586, %v2838, 0
        %2870 = vmatpush.bf16.msra.mxu0 0
        %2871 = vmatpush.bf16.msra.mxu0 0
        %2872 = vmatpush.bf16.msra.mxu0 0
        %2873 = vmatpush.bf16.msra.mxu0 0
        %2874 = vmatpush.bf16.msra.mxu0 0
        %2875 = vmatpush.bf16.msra.mxu0 0
        %2876 = vmatpush.bf16.msra.mxu0 0
        %2877 = vmatpush.bf16.msra.mxu0 %v2868
        %2878 = vmatmul.bf16.gmra.mxu0 %v2865
        %v2879 = vpop.f32.mrf.mxu0
        %v2880 = vadd.f32 %v2392, %v2879
        %v2881 = vpop.f32.mrf.mxu0
        %2882 = vdwg.mxu0
        %v2884 = vsel %vm1579, %v2445, 0
        %v2887 = vsel %vm1586, %v2841, 0
        %2889 = vmatpush.bf16.msra.mxu0 0
        %2890 = vmatpush.bf16.msra.mxu0 0
        %2891 = vmatpush.bf16.msra.mxu0 0
        %2892 = vmatpush.bf16.msra.mxu0 0
        %2893 = vmatpush.bf16.msra.mxu0 0
        %2894 = vmatpush.bf16.msra.mxu0 0
        %2895 = vmatpush.bf16.msra.mxu0 0
        %2896 = vmatpush.bf16.msra.mxu0 %v2887
        %2897 = vmatmul.bf16.gmra.mxu0 %v2884
        %v2898 = vpop.f32.mrf.mxu0
        %v2899 = vadd.f32 %v2394, %v2898
        %v2900 = vpop.f32.mrf.mxu0
        %2901 = vdwg.mxu0
        %v2903 = vsel %vm1579, %v2448, 0
        %v2906 = vsel %vm1586, %v2844, 0
        %2908 = vmatpush.bf16.msra.mxu0 0
        %2909 = vmatpush.bf16.msra.mxu0 0
        %2910 = vmatpush.bf16.msra.mxu0 0
        %2911 = vmatpush.bf16.msra.mxu0 0
        %2912 = vmatpush.bf16.msra.mxu0 0
        %2913 = vmatpush.bf16.msra.mxu0 0
        %2914 = vmatpush.bf16.msra.mxu0 0
        %2915 = vmatpush.bf16.msra.mxu0 %v2906
        %2916 = vmatmul.bf16.gmra.mxu0 %v2903
        %v2917 = vpop.f32.mrf.mxu0
        %v2918 = vadd.f32 %v2396, %v2917
        %v2919 = vpop.f32.mrf.mxu0
        %2920 = vdwg.mxu0
        %v2921 = vmul.f32 %v2861, 0.35355338
        %v2922 = vmul.f32 %v2880, 0.35355338
        %v2923 = vmul.f32 %v2899, 0.35355338
        %v2924 = vmul.f32 %v2918, 0.35355338
        %v2925 = vsel %vm1579, %v2921, -inf
        %2926 = vmax.xlane.f32.xlu0 %v2925
        %v2927 = vpop.xlane.xlu0 %2926
        %v2928 = vsel %vm1579, %v2922, -inf
        %2929 = vmax.xlane.f32.xlu0 %v2928
        %v2930 = vpop.xlane.xlu0 %2929
        %v2931 = vsel %vm1579, %v2923, -inf
        %2932 = vmax.xlane.f32.xlu0 %v2931
        %v2933 = vpop.xlane.xlu0 %2932
        %v2934 = vsel %vm1579, %v2924, -inf
        %2935 = vmax.xlane.f32.xlu0 %v2934
        %v2936 = vpop.xlane.xlu0 %2935
        %v2937 = vsub.f32 %v2921, %v2927
        %v2938 = vsub.f32 %v2922, %v2930
        %v2939 = vsub.f32 %v2923, %v2933
        %v2940 = vsub.f32 %v2924, %v2936
        %v2941 = vmul.f32 %v2937, 1.442695
        %v2942 = vpow.pop %v2941
        %v2943 = vmul.f32 %v2938, 1.442695
        %v2944 = vpow.pop %v2943
        %v2945 = vmul.f32 %v2939, 1.442695
        %v2946 = vpow.pop %v2945
        %v2947 = vmul.f32 %v2940, 1.442695
        %v2948 = vpow.pop %v2947
        %v2949 = vsel %vm1579, %v2942, 0.0
        %2950 = vadd.xlane.f32.xlu0 %v2949
        %v2951 = vpop.xlane.xlu0 %2950
        %v2952 = vsel %vm1579, %v2944, 0.0
        %2953 = vadd.xlane.f32.xlu0 %v2952
        %v2954 = vpop.xlane.xlu0 %2953
        %v2955 = vsel %vm1579, %v2946, 0.0
        %2956 = vadd.xlane.f32.xlu0 %v2955
        %v2957 = vpop.xlane.xlu0 %2956
        %v2958 = vsel %vm1579, %v2948, 0.0
        %2959 = vadd.xlane.f32.xlu0 %v2958
        %v2960 = vpop.xlane.xlu0 %2959
        %v2961 = vrcp.pop %v2951
        %v2962 = vrcp.pop %v2954
        %v2963 = vrcp.pop %v2957
        %v2964 = vrcp.pop %v2960
        %v2965 = vmul.f32 %v2942, %v2961
        %v2966 = vmul.f32 %v2944, %v2962
        %v2967 = vmul.f32 %v2946, %v2963
        %v2968 = vmul.f32 %v2948, %v2964
        %v2969 = vpack.c.bf16 %v2965, %v2965
        %v2970 = vpack.c.bf16 %v2966, %v2966
        %v2971 = vpack.c.bf16 %v2967, %v2967
        %v2972 = vpack.c.bf16 %v2968, %v2968
        %2973 = vxpose.xlu0.c.b16.start [1/8] %v1158, 128
        %2974 = vxpose.xlu0.c.b16.cont [2/8] 0, 128
        %2975 = vxpose.xlu0.c.b16.cont [3/8] 0, 128
        %2976 = vxpose.xlu0.c.b16.cont [4/8] 0, 128
        %2977 = vxpose.xlu0.c.b16.cont [5/8] 0, 128
        %2978 = vxpose.xlu0.c.b16.cont [6/8] 0, 128
        %2979 = vxpose.xlu0.c.b16.cont [7/8] 0, 128
        %2980 = vxpose.xlu0.c.b16.end [8/8] 0, 128
        %v2981 = vpop.trf.xlu0
        %v2982 = vpop.trf.xlu0
        %v2983 = vpop.trf.xlu0
        %v2984 = vpop.trf.xlu0
        %v2985 = vpop.trf.xlu0
        %v2986 = vpop.trf.xlu0
        %v2987 = vpop.trf.xlu0
        %v2988 = vpop.trf.xlu0
        %2989 = vxpose.xlu0.c.b16.start [1/8] %v1159, 128
        %2990 = vxpose.xlu0.c.b16.cont [2/8] 0, 128
        %2991 = vxpose.xlu0.c.b16.cont [3/8] 0, 128
        %2992 = vxpose.xlu0.c.b16.cont [4/8] 0, 128
        %2993 = vxpose.xlu0.c.b16.cont [5/8] 0, 128
        %2994 = vxpose.xlu0.c.b16.cont [6/8] 0, 128
        %2995 = vxpose.xlu0.c.b16.cont [7/8] 0, 128
        %2996 = vxpose.xlu0.c.b16.end [8/8] 0, 128
        %v2997 = vpop.trf.xlu0
        %v2998 = vpop.trf.xlu0
        %v2999 = vpop.trf.xlu0
        %v3000 = vpop.trf.xlu0
        %v3001 = vpop.trf.xlu0
        %v3002 = vpop.trf.xlu0
        %v3003 = vpop.trf.xlu0
        %v3004 = vpop.trf.xlu0
        %3005 = vxpose.xlu0.c.b16.start [1/8] %v1160, 128
        %3006 = vxpose.xlu0.c.b16.cont [2/8] 0, 128
        %3007 = vxpose.xlu0.c.b16.cont [3/8] 0, 128
        %3008 = vxpose.xlu0.c.b16.cont [4/8] 0, 128
        %3009 = vxpose.xlu0.c.b16.cont [5/8] 0, 128
        %3010 = vxpose.xlu0.c.b16.cont [6/8] 0, 128
        %3011 = vxpose.xlu0.c.b16.cont [7/8] 0, 128
        %3012 = vxpose.xlu0.c.b16.end [8/8] 0, 128
        %v3013 = vpop.trf.xlu0
        %v3014 = vpop.trf.xlu0
        %v3015 = vpop.trf.xlu0
        %v3016 = vpop.trf.xlu0
        %v3017 = vpop.trf.xlu0
        %v3018 = vpop.trf.xlu0
        %v3019 = vpop.trf.xlu0
        %v3020 = vpop.trf.xlu0
        %3021 = vxpose.xlu0.c.b16.start [1/8] %v1161, 128
        %3022 = vxpose.xlu0.c.b16.cont [2/8] 0, 128
        %3023 = vxpose.xlu0.c.b16.cont [3/8] 0, 128
        %3024 = vxpose.xlu0.c.b16.cont [4/8] 0, 128
        %3025 = vxpose.xlu0.c.b16.cont [5/8] 0, 128
        %3026 = vxpose.xlu0.c.b16.cont [6/8] 0, 128
        %3027 = vxpose.xlu0.c.b16.cont [7/8] 0, 128
        %3028 = vxpose.xlu0.c.b16.end [8/8] 0, 128
        %v3029 = vpop.trf.xlu0
        %v3030 = vpop.trf.xlu0
        %v3031 = vpop.trf.xlu0
        %v3032 = vpop.trf.xlu0
        %v3033 = vpop.trf.xlu0
        %v3034 = vpop.trf.xlu0
        %v3035 = vpop.trf.xlu0
        %v3036 = vpop.trf.xlu0
        %3037 = vxpose.xlu0.c.b16.start [1/8] %v1162, 128
        %3038 = vxpose.xlu0.c.b16.cont [2/8] 0, 128
        %3039 = vxpose.xlu0.c.b16.cont [3/8] 0, 128
        %3040 = vxpose.xlu0.c.b16.cont [4/8] 0, 128
        %3041 = vxpose.xlu0.c.b16.cont [5/8] 0, 128
        %3042 = vxpose.xlu0.c.b16.cont [6/8] 0, 128
        %3043 = vxpose.xlu0.c.b16.cont [7/8] 0, 128
        %3044 = vxpose.xlu0.c.b16.end [8/8] 0, 128
        %v3045 = vpop.trf.xlu0
        %v3046 = vpop.trf.xlu0
        %v3047 = vpop.trf.xlu0
        %v3048 = vpop.trf.xlu0
        %v3049 = vpop.trf.xlu0
        %v3050 = vpop.trf.xlu0
        %v3051 = vpop.trf.xlu0
        %v3052 = vpop.trf.xlu0
        %3053 = vxpose.xlu0.c.b16.start [1/8] %v1163, 128
        %3054 = vxpose.xlu0.c.b16.cont [2/8] 0, 128
        %3055 = vxpose.xlu0.c.b16.cont [3/8] 0, 128
        %3056 = vxpose.xlu0.c.b16.cont [4/8] 0, 128
        %3057 = vxpose.xlu0.c.b16.cont [5/8] 0, 128
        %3058 = vxpose.xlu0.c.b16.cont [6/8] 0, 128
        %3059 = vxpose.xlu0.c.b16.cont [7/8] 0, 128
        %3060 = vxpose.xlu0.c.b16.end [8/8] 0, 128
        %v3061 = vpop.trf.xlu0
        %v3062 = vpop.trf.xlu0
        %v3063 = vpop.trf.xlu0
        %v3064 = vpop.trf.xlu0
        %v3065 = vpop.trf.xlu0
        %v3066 = vpop.trf.xlu0
        %v3067 = vpop.trf.xlu0
        %v3068 = vpop.trf.xlu0
        %3069 = vxpose.xlu0.c.b16.start [1/8] %v1164, 128
        %3070 = vxpose.xlu0.c.b16.cont [2/8] 0, 128
        %3071 = vxpose.xlu0.c.b16.cont [3/8] 0, 128
        %3072 = vxpose.xlu0.c.b16.cont [4/8] 0, 128
        %3073 = vxpose.xlu0.c.b16.cont [5/8] 0, 128
        %3074 = vxpose.xlu0.c.b16.cont [6/8] 0, 128
        %3075 = vxpose.xlu0.c.b16.cont [7/8] 0, 128
        %3076 = vxpose.xlu0.c.b16.end [8/8] 0, 128
        %v3077 = vpop.trf.xlu0
        %v3078 = vpop.trf.xlu0
        %v3079 = vpop.trf.xlu0
        %v3080 = vpop.trf.xlu0
        %v3081 = vpop.trf.xlu0
        %v3082 = vpop.trf.xlu0
        %v3083 = vpop.trf.xlu0
        %v3084 = vpop.trf.xlu0
        %3085 = vxpose.xlu0.c.b16.start [1/8] %v1165, 128
        %3086 = vxpose.xlu0.c.b16.cont [2/8] 0, 128
        %3087 = vxpose.xlu0.c.b16.cont [3/8] 0, 128
        %3088 = vxpose.xlu0.c.b16.cont [4/8] 0, 128
        %3089 = vxpose.xlu0.c.b16.cont [5/8] 0, 128
        %3090 = vxpose.xlu0.c.b16.cont [6/8] 0, 128
        %3091 = vxpose.xlu0.c.b16.cont [7/8] 0, 128
        %3092 = vxpose.xlu0.c.b16.end [8/8] 0, 128
        %v3093 = vpop.trf.xlu0
        %v3094 = vpop.trf.xlu0
        %v3095 = vpop.trf.xlu0
        %v3096 = vpop.trf.xlu0
        %v3097 = vpop.trf.xlu0
        %v3098 = vpop.trf.xlu0
        %v3099 = vpop.trf.xlu0
        %v3100 = vpop.trf.xlu0
        %v3101 = vrot.slane %v3045, 4
        %v3102 = vsel %vm1295, %v3101, %v2981
        %v3104 = vunpack.c.l.s4 1983009808
        %v3105 = vunpack.c.0.s8 %v3104
        %v3106 = vperm.slane %v3102, %v3105
        %v3107 = vrot.slane %v3077, 4
        %v3108 = vsel %vm1295, %v3107, %v3013
        %v3110 = vunpack.c.l.s4 1983009808
        %v3111 = vunpack.c.0.s8 %v3110
        %v3112 = vperm.slane %v3108, %v3111
        %v3113 = vrot.slane %v3112, 4
        %v3114 = vsel %vm1295, %v3113, %v3106
        %v3115 = vrot.slane %v3106, 4
        %v3116 = vsel %vm1295, %v3112, %v3115
        %v3118 = vunpack.c.l.s4 1934713408
        %v3119 = vunpack.c.0.s8 %v3118
        %v3120 = vperm.slane %v3114, %v3119
        %v3122 = vunpack.c.l.s4 1934713408
        %v3123 = vunpack.c.0.s8 %v3122
        %v3124 = vperm.slane %v3116, %v3123
        %v3125 = vrot.slane %v3120, 4
        %v3126 = vsel %vm1295, 0, %v3125
        %v3127 = vrot.slane %v3124, 4
        %v3128 = vsel %vm1295, 0, %v3127
        %v3129 = vrot.slane %v3061, 4
        %v3130 = vsel %vm1295, %v3129, %v2997
        %v3132 = vunpack.c.l.s4 1983009808
        %v3133 = vunpack.c.0.s8 %v3132
        %v3134 = vperm.slane %v3130, %v3133
        %v3135 = vrot.slane %v3093, 4
        %v3136 = vsel %vm1295, %v3135, %v3029
        %v3138 = vunpack.c.l.s4 1983009808
        %v3139 = vunpack.c.0.s8 %v3138
        %v3140 = vperm.slane %v3136, %v3139
        %v3141 = vrot.slane %v3140, 4
        %v3142 = vsel %vm1295, %v3141, %v3134
        %v3143 = vrot.slane %v3134, 4
        %v3144 = vsel %vm1295, %v3140, %v3143
        %v3146 = vunpack.c.l.s4 1934713408
        %v3147 = vunpack.c.0.s8 %v3146
        %v3148 = vperm.slane %v3142, %v3147
        %v3150 = vunpack.c.l.s4 1934713408
        %v3151 = vunpack.c.0.s8 %v3150
        %v3152 = vperm.slane %v3144, %v3151
        %v3153 = vrot.slane %v3148, 4
        %v3154 = vsel %vm1295, 0, %v3153
        %v3155 = vrot.slane %v3152, 4
        %v3156 = vsel %vm1295, 0, %v3155
        %v3159 = vpack.i.b16 %v3148, %v3120
        %v3161 = vshrl.u32 %v3120, 16
        %v3162 = vshrl.u32 %v3148, 16
        %v3163 = vpack.i.b16 %v3162, %v3161
        %v3167 = vpack.i.b16 %v3154, %v3126
        %v3169 = vshrl.u32 %v3126, 16
        %v3170 = vshrl.u32 %v3154, 16
        %v3171 = vpack.i.b16 %v3170, %v3169
        %v3175 = vpack.i.b16 %v3152, %v3124
        %v3177 = vshrl.u32 %v3124, 16
        %v3178 = vshrl.u32 %v3152, 16
        %v3179 = vpack.i.b16 %v3178, %v3177
        %v3183 = vpack.i.b16 %v3156, %v3128
        %v3185 = vshrl.u32 %v3128, 16
        %v3186 = vshrl.u32 %v3156, 16
        %v3187 = vpack.i.b16 %v3186, %v3185
        %3189 = vxpose.xlu0.c.b16.start [1/8] %v3159, 128
        %3190 = vxpose.xlu0.c.b16.cont [2/8] 0, 128
        %3191 = vxpose.xlu0.c.b16.cont [3/8] 0, 128
        %3192 = vxpose.xlu0.c.b16.cont [4/8] 0, 128
        %3193 = vxpose.xlu0.c.b16.cont [5/8] 0, 128
        %3194 = vxpose.xlu0.c.b16.cont [6/8] 0, 128
        %3195 = vxpose.xlu0.c.b16.cont [7/8] 0, 128
        %3196 = vxpose.xlu0.c.b16.end [8/8] 0, 128
        %v3197 = vpop.trf.xlu0
        %v3198 = vpop.trf.xlu0
        %v3199 = vpop.trf.xlu0
        %v3200 = vpop.trf.xlu0
        %v3201 = vpop.trf.xlu0
        %v3202 = vpop.trf.xlu0
        %v3203 = vpop.trf.xlu0
        %v3204 = vpop.trf.xlu0
        %3205 = vxpose.xlu0.c.b16.start [1/8] %v3163, 128
        %3206 = vxpose.xlu0.c.b16.cont [2/8] 0, 128
        %3207 = vxpose.xlu0.c.b16.cont [3/8] 0, 128
        %3208 = vxpose.xlu0.c.b16.cont [4/8] 0, 128
        %3209 = vxpose.xlu0.c.b16.cont [5/8] 0, 128
        %3210 = vxpose.xlu0.c.b16.cont [6/8] 0, 128
        %3211 = vxpose.xlu0.c.b16.cont [7/8] 0, 128
        %3212 = vxpose.xlu0.c.b16.end [8/8] 0, 128
        %v3213 = vpop.trf.xlu0
        %v3214 = vpop.trf.xlu0
        %v3215 = vpop.trf.xlu0
        %v3216 = vpop.trf.xlu0
        %v3217 = vpop.trf.xlu0
        %v3218 = vpop.trf.xlu0
        %v3219 = vpop.trf.xlu0
        %v3220 = vpop.trf.xlu0
        %3221 = vxpose.xlu0.c.b16.start [1/8] %v3167, 128
        %3222 = vxpose.xlu0.c.b16.cont [2/8] 0, 128
        %3223 = vxpose.xlu0.c.b16.cont [3/8] 0, 128
        %3224 = vxpose.xlu0.c.b16.cont [4/8] 0, 128
        %3225 = vxpose.xlu0.c.b16.cont [5/8] 0, 128
        %3226 = vxpose.xlu0.c.b16.cont [6/8] 0, 128
        %3227 = vxpose.xlu0.c.b16.cont [7/8] 0, 128
        %3228 = vxpose.xlu0.c.b16.end [8/8] 0, 128
        %v3229 = vpop.trf.xlu0
        %v3230 = vpop.trf.xlu0
        %v3231 = vpop.trf.xlu0
        %v3232 = vpop.trf.xlu0
        %v3233 = vpop.trf.xlu0
        %v3234 = vpop.trf.xlu0
        %v3235 = vpop.trf.xlu0
        %v3236 = vpop.trf.xlu0
        %3237 = vxpose.xlu0.c.b16.start [1/8] %v3171, 128
        %3238 = vxpose.xlu0.c.b16.cont [2/8] 0, 128
        %3239 = vxpose.xlu0.c.b16.cont [3/8] 0, 128
        %3240 = vxpose.xlu0.c.b16.cont [4/8] 0, 128
        %3241 = vxpose.xlu0.c.b16.cont [5/8] 0, 128
        %3242 = vxpose.xlu0.c.b16.cont [6/8] 0, 128
        %3243 = vxpose.xlu0.c.b16.cont [7/8] 0, 128
        %3244 = vxpose.xlu0.c.b16.end [8/8] 0, 128
        %v3245 = vpop.trf.xlu0
        %v3246 = vpop.trf.xlu0
        %v3247 = vpop.trf.xlu0
        %v3248 = vpop.trf.xlu0
        %v3249 = vpop.trf.xlu0
        %v3250 = vpop.trf.xlu0
        %v3251 = vpop.trf.xlu0
        %v3252 = vpop.trf.xlu0
        %3253 = vxpose.xlu0.c.b16.start [1/8] %v3175, 128
        %3254 = vxpose.xlu0.c.b16.cont [2/8] 0, 128
        %3255 = vxpose.xlu0.c.b16.cont [3/8] 0, 128
        %3256 = vxpose.xlu0.c.b16.cont [4/8] 0, 128
        %3257 = vxpose.xlu0.c.b16.cont [5/8] 0, 128
        %3258 = vxpose.xlu0.c.b16.cont [6/8] 0, 128
        %3259 = vxpose.xlu0.c.b16.cont [7/8] 0, 128
        %3260 = vxpose.xlu0.c.b16.end [8/8] 0, 128
        %v3261 = vpop.trf.xlu0
        %v3262 = vpop.trf.xlu0
        %v3263 = vpop.trf.xlu0
        %v3264 = vpop.trf.xlu0
        %v3265 = vpop.trf.xlu0
        %v3266 = vpop.trf.xlu0
        %v3267 = vpop.trf.xlu0
        %v3268 = vpop.trf.xlu0
        %3269 = vxpose.xlu0.c.b16.start [1/8] %v3179, 128
        %3270 = vxpose.xlu0.c.b16.cont [2/8] 0, 128
        %3271 = vxpose.xlu0.c.b16.cont [3/8] 0, 128
        %3272 = vxpose.xlu0.c.b16.cont [4/8] 0, 128
        %3273 = vxpose.xlu0.c.b16.cont [5/8] 0, 128
        %3274 = vxpose.xlu0.c.b16.cont [6/8] 0, 128
        %3275 = vxpose.xlu0.c.b16.cont [7/8] 0, 128
        %3276 = vxpose.xlu0.c.b16.end [8/8] 0, 128
        %v3277 = vpop.trf.xlu0
        %v3278 = vpop.trf.xlu0
        %v3279 = vpop.trf.xlu0
        %v3280 = vpop.trf.xlu0
        %v3281 = vpop.trf.xlu0
        %v3282 = vpop.trf.xlu0
        %v3283 = vpop.trf.xlu0
        %v3284 = vpop.trf.xlu0
        %3285 = vxpose.xlu0.c.b16.start [1/8] %v3183, 128
        %3286 = vxpose.xlu0.c.b16.cont [2/8] 0, 128
        %3287 = vxpose.xlu0.c.b16.cont [3/8] 0, 128
        %3288 = vxpose.xlu0.c.b16.cont [4/8] 0, 128
        %3289 = vxpose.xlu0.c.b16.cont [5/8] 0, 128
        %3290 = vxpose.xlu0.c.b16.cont [6/8] 0, 128
        %3291 = vxpose.xlu0.c.b16.cont [7/8] 0, 128
        %3292 = vxpose.xlu0.c.b16.end [8/8] 0, 128
        %v3293 = vpop.trf.xlu0
        %v3294 = vpop.trf.xlu0
        %v3295 = vpop.trf.xlu0
        %v3296 = vpop.trf.xlu0
        %v3297 = vpop.trf.xlu0
        %v3298 = vpop.trf.xlu0
        %v3299 = vpop.trf.xlu0
        %v3300 = vpop.trf.xlu0
        %3301 = vxpose.xlu0.c.b16.start [1/8] %v3187, 128
        %3302 = vxpose.xlu0.c.b16.cont [2/8] 0, 128
        %3303 = vxpose.xlu0.c.b16.cont [3/8] 0, 128
        %3304 = vxpose.xlu0.c.b16.cont [4/8] 0, 128
        %3305 = vxpose.xlu0.c.b16.cont [5/8] 0, 128
        %3306 = vxpose.xlu0.c.b16.cont [6/8] 0, 128
        %3307 = vxpose.xlu0.c.b16.cont [7/8] 0, 128
        %3308 = vxpose.xlu0.c.b16.end [8/8] 0, 128
        %v3309 = vpop.trf.xlu0
        %v3310 = vpop.trf.xlu0
        %v3311 = vpop.trf.xlu0
        %v3312 = vpop.trf.xlu0
        %v3313 = vpop.trf.xlu0
        %v3314 = vpop.trf.xlu0
        %v3315 = vpop.trf.xlu0
        %v3316 = vpop.trf.xlu0
        %v3317 = vrot.slane %v3261, 4
        %v3318 = vsel %vm1295, %v3317, %v3197
        %v3320 = vunpack.c.l.s4 1983009808
        %v3321 = vunpack.c.0.s8 %v3320
        %v3322 = vperm.slane %v3318, %v3321
        %v3323 = vrot.slane %v3293, 4
        %v3324 = vsel %vm1295, %v3323, %v3229
        %v3326 = vunpack.c.l.s4 1983009808
        %v3327 = vunpack.c.0.s8 %v3326
        %v3328 = vperm.slane %v3324, %v3327
        %v3329 = vrot.slane %v3328, 4
        %v3330 = vsel %vm1295, %v3329, %v3322
        %v3332 = vunpack.c.l.s4 1934713408
        %v3333 = vunpack.c.0.s8 %v3332
        %v3334 = vperm.slane %v3330, %v3333
        %v3335 = vrot.slane %v3334, 4
        %v3336 = vsel %vm1295, 0, %v3335
        %v3337 = vrot.slane %v3277, 4
        %v3338 = vsel %vm1295, %v3337, %v3213
        %v3340 = vunpack.c.l.s4 1983009808
        %v3341 = vunpack.c.0.s8 %v3340
        %v3342 = vperm.slane %v3338, %v3341
        %v3343 = vrot.slane %v3309, 4
        %v3344 = vsel %vm1295, %v3343, %v3245
        %v3346 = vunpack.c.l.s4 1983009808
        %v3347 = vunpack.c.0.s8 %v3346
        %v3348 = vperm.slane %v3344, %v3347
        %v3349 = vrot.slane %v3348, 4
        %v3350 = vsel %vm1295, %v3349, %v3342
        %v3352 = vunpack.c.l.s4 1934713408
        %v3353 = vunpack.c.0.s8 %v3352
        %v3354 = vperm.slane %v3350, %v3353
        %v3355 = vrot.slane %v3354, 4
        %v3356 = vsel %vm1295, 0, %v3355
        %v3359 = vpack.i.b16 %v3354, %v3334
        %v3360 = vshrl.u32 %v3334, 16
        %v3361 = vshrl.u32 %v3354, 16
        %v3362 = vpack.i.b16 %v3361, %v3360
        %v3365 = vpack.i.b16 %v3356, %v3336
        %v3366 = vshrl.u32 %v3336, 16
        %v3367 = vshrl.u32 %v3356, 16
        %v3368 = vpack.i.b16 %v3367, %v3366
        %v3370 = vsel %vm1579, %v3359, 0
        %v3373 = vsel %vm1579, %v2969, 0
        %3375 = vmatpush.bf16.xpose.msra.mxu0 0
        %3376 = vmatpush.bf16.xpose.msra.mxu0 0
        %3377 = vmatpush.bf16.xpose.msra.mxu0 0
        %3378 = vmatpush.bf16.xpose.msra.mxu0 0
        %3379 = vmatpush.bf16.xpose.msra.mxu0 0
        %3380 = vmatpush.bf16.xpose.msra.mxu0 0
        %3381 = vmatpush.bf16.xpose.msra.mxu0 0
        %3382 = vmatpush.bf16.xpose.msra.mxu0 %v3373
        %3383 = vmatmul.bf16.gmra.mxu0 %v3370
        %v3384 = vpop.f32.mrf.mxu0
        %v3385 = vadd.f32 0.0, %v3384
        %v3386 = vpop.f32.mrf.mxu0
        %3387 = vdwg.mxu0
        %v3389 = vsel %vm1579, %v3362, 0
        %v3392 = vsel %vm1579, %v2970, 0
        %3394 = vmatpush.bf16.xpose.msra.mxu0 0
        %3395 = vmatpush.bf16.xpose.msra.mxu0 0
        %3396 = vmatpush.bf16.xpose.msra.mxu0 0
        %3397 = vmatpush.bf16.xpose.msra.mxu0 0
        %3398 = vmatpush.bf16.xpose.msra.mxu0 0
        %3399 = vmatpush.bf16.xpose.msra.mxu0 0
        %3400 = vmatpush.bf16.xpose.msra.mxu0 0
        %3401 = vmatpush.bf16.xpose.msra.mxu0 %v3392
        %3402 = vmatmul.bf16.gmra.mxu0 %v3389
        %v3403 = vpop.f32.mrf.mxu0
        %v3404 = vadd.f32 0.0, %v3403
        %v3405 = vpop.f32.mrf.mxu0
        %3406 = vdwg.mxu0
        %v3408 = vsel %vm1579, %v3365, 0
        %v3411 = vsel %vm1579, %v2971, 0
        %3413 = vmatpush.bf16.xpose.msra.mxu0 0
        %3414 = vmatpush.bf16.xpose.msra.mxu0 0
        %3415 = vmatpush.bf16.xpose.msra.mxu0 0
        %3416 = vmatpush.bf16.xpose.msra.mxu0 0
        %3417 = vmatpush.bf16.xpose.msra.mxu0 0
        %3418 = vmatpush.bf16.xpose.msra.mxu0 0
        %3419 = vmatpush.bf16.xpose.msra.mxu0 0
        %3420 = vmatpush.bf16.xpose.msra.mxu0 %v3411
        %3421 = vmatmul.bf16.gmra.mxu0 %v3408
        %v3422 = vpop.f32.mrf.mxu0
        %v3423 = vadd.f32 0.0, %v3422
        %v3424 = vpop.f32.mrf.mxu0
        %3425 = vdwg.mxu0
        %v3427 = vsel %vm1579, %v3368, 0
        %v3430 = vsel %vm1579, %v2972, 0
        %3432 = vmatpush.bf16.xpose.msra.mxu0 0
        %3433 = vmatpush.bf16.xpose.msra.mxu0 0
        %3434 = vmatpush.bf16.xpose.msra.mxu0 0
        %3435 = vmatpush.bf16.xpose.msra.mxu0 0
        %3436 = vmatpush.bf16.xpose.msra.mxu0 0
        %3437 = vmatpush.bf16.xpose.msra.mxu0 0
        %3438 = vmatpush.bf16.xpose.msra.mxu0 0
        %3439 = vmatpush.bf16.xpose.msra.mxu0 %v3430
        %3440 = vmatmul.bf16.gmra.mxu0 %v3427
        %v3441 = vpop.f32.mrf.mxu0
        %v3442 = vadd.f32 0.0, %v3441
        %v3443 = vpop.f32.mrf.mxu0
        %3444 = vdwg.mxu0
        %3445 = vxpose.xlu0.b32.start [1/16] %v3385, 128
        %3446 = vxpose.xlu0.b32.cont [2/16] 0.0, 128
        %3447 = vxpose.xlu0.b32.cont [3/16] 0.0, 128
        %3448 = vxpose.xlu0.b32.cont [4/16] 0.0, 128
        %3449 = vxpose.xlu0.b32.cont [5/16] 0.0, 128
        %3450 = vxpose.xlu0.b32.cont [6/16] 0.0, 128
        %3451 = vxpose.xlu0.b32.cont [7/16] 0.0, 128
        %3452 = vxpose.xlu0.b32.cont [8/16] 0.0, 128
        %3453 = vxpose.xlu0.b32.cont [9/16] 0.0, 128
        %3454 = vxpose.xlu0.b32.cont [10/16] 0.0, 128
        %3455 = vxpose.xlu0.b32.cont [11/16] 0.0, 128
        %3456 = vxpose.xlu0.b32.cont [12/16] 0.0, 128
        %3457 = vxpose.xlu0.b32.cont [13/16] 0.0, 128
        %3458 = vxpose.xlu0.b32.cont [14/16] 0.0, 128
        %3459 = vxpose.xlu0.b32.cont [15/16] 0.0, 128
        %3460 = vxpose.xlu0.b32.end [16/16] 0.0, 128
        %v3461 = vpop.trf.xlu0
        %v3462 = vpop.trf.xlu0
        %v3463 = vpop.trf.xlu0
        %v3464 = vpop.trf.xlu0
        %v3465 = vpop.trf.xlu0
        %v3466 = vpop.trf.xlu0
        %v3467 = vpop.trf.xlu0
        %v3468 = vpop.trf.xlu0
        %v3469 = vpop.trf.xlu0
        %v3470 = vpop.trf.xlu0
        %v3471 = vpop.trf.xlu0
        %v3472 = vpop.trf.xlu0
        %v3473 = vpop.trf.xlu0
        %v3474 = vpop.trf.xlu0
        %v3475 = vpop.trf.xlu0
        %v3476 = vpop.trf.xlu0
        %3477 = vxpose.xlu0.b32.start [1/16] %v3404, 128
        %3478 = vxpose.xlu0.b32.cont [2/16] 0.0, 128
        %3479 = vxpose.xlu0.b32.cont [3/16] 0.0, 128
        %3480 = vxpose.xlu0.b32.cont [4/16] 0.0, 128
        %3481 = vxpose.xlu0.b32.cont [5/16] 0.0, 128
        %3482 = vxpose.xlu0.b32.cont [6/16] 0.0, 128
        %3483 = vxpose.xlu0.b32.cont [7/16] 0.0, 128
        %3484 = vxpose.xlu0.b32.cont [8/16] 0.0, 128
        %3485 = vxpose.xlu0.b32.cont [9/16] 0.0, 128
        %3486 = vxpose.xlu0.b32.cont [10/16] 0.0, 128
        %3487 = vxpose.xlu0.b32.cont [11/16] 0.0, 128
        %3488 = vxpose.xlu0.b32.cont [12/16] 0.0, 128
        %3489 = vxpose.xlu0.b32.cont [13/16] 0.0, 128
        %3490 = vxpose.xlu0.b32.cont [14/16] 0.0, 128
        %3491 = vxpose.xlu0.b32.cont [15/16] 0.0, 128
        %3492 = vxpose.xlu0.b32.end [16/16] 0.0, 128
        %v3493 = vpop.trf.xlu0
        %v3494 = vpop.trf.xlu0
        %v3495 = vpop.trf.xlu0
        %v3496 = vpop.trf.xlu0
        %v3497 = vpop.trf.xlu0
        %v3498 = vpop.trf.xlu0
        %v3499 = vpop.trf.xlu0
        %v3500 = vpop.trf.xlu0
        %v3501 = vpop.trf.xlu0
        %v3502 = vpop.trf.xlu0
        %v3503 = vpop.trf.xlu0
        %v3504 = vpop.trf.xlu0
        %v3505 = vpop.trf.xlu0
        %v3506 = vpop.trf.xlu0
        %v3507 = vpop.trf.xlu0
        %v3508 = vpop.trf.xlu0
        %3509 = vxpose.xlu0.b32.start [1/16] %v3423, 128
        %3510 = vxpose.xlu0.b32.cont [2/16] 0.0, 128
        %3511 = vxpose.xlu0.b32.cont [3/16] 0.0, 128
        %3512 = vxpose.xlu0.b32.cont [4/16] 0.0, 128
        %3513 = vxpose.xlu0.b32.cont [5/16] 0.0, 128
        %3514 = vxpose.xlu0.b32.cont [6/16] 0.0, 128
        %3515 = vxpose.xlu0.b32.cont [7/16] 0.0, 128
        %3516 = vxpose.xlu0.b32.cont [8/16] 0.0, 128
        %3517 = vxpose.xlu0.b32.cont [9/16] 0.0, 128
        %3518 = vxpose.xlu0.b32.cont [10/16] 0.0, 128
        %3519 = vxpose.xlu0.b32.cont [11/16] 0.0, 128
        %3520 = vxpose.xlu0.b32.cont [12/16] 0.0, 128
        %3521 = vxpose.xlu0.b32.cont [13/16] 0.0, 128
        %3522 = vxpose.xlu0.b32.cont [14/16] 0.0, 128
        %3523 = vxpose.xlu0.b32.cont [15/16] 0.0, 128
        %3524 = vxpose.xlu0.b32.end [16/16] 0.0, 128
        %v3525 = vpop.trf.xlu0
        %v3526 = vpop.trf.xlu0
        %v3527 = vpop.trf.xlu0
        %v3528 = vpop.trf.xlu0
        %v3529 = vpop.trf.xlu0
        %v3530 = vpop.trf.xlu0
        %v3531 = vpop.trf.xlu0
        %v3532 = vpop.trf.xlu0
        %v3533 = vpop.trf.xlu0
        %v3534 = vpop.trf.xlu0
        %v3535 = vpop.trf.xlu0
        %v3536 = vpop.trf.xlu0
        %v3537 = vpop.trf.xlu0
        %v3538 = vpop.trf.xlu0
        %v3539 = vpop.trf.xlu0
        %v3540 = vpop.trf.xlu0
        %3541 = vxpose.xlu0.b32.start [1/16] %v3442, 128
        %3542 = vxpose.xlu0.b32.cont [2/16] 0.0, 128
        %3543 = vxpose.xlu0.b32.cont [3/16] 0.0, 128
        %3544 = vxpose.xlu0.b32.cont [4/16] 0.0, 128
        %3545 = vxpose.xlu0.b32.cont [5/16] 0.0, 128
        %3546 = vxpose.xlu0.b32.cont [6/16] 0.0, 128
        %3547 = vxpose.xlu0.b32.cont [7/16] 0.0, 128
        %3548 = vxpose.xlu0.b32.cont [8/16] 0.0, 128
        %3549 = vxpose.xlu0.b32.cont [9/16] 0.0, 128
        %3550 = vxpose.xlu0.b32.cont [10/16] 0.0, 128
        %3551 = vxpose.xlu0.b32.cont [11/16] 0.0, 128
        %3552 = vxpose.xlu0.b32.cont [12/16] 0.0, 128
        %3553 = vxpose.xlu0.b32.cont [13/16] 0.0, 128
        %3554 = vxpose.xlu0.b32.cont [14/16] 0.0, 128
        %3555 = vxpose.xlu0.b32.cont [15/16] 0.0, 128
        %3556 = vxpose.xlu0.b32.end [16/16] 0.0, 128
        %v3557 = vpop.trf.xlu0
        %v3558 = vpop.trf.xlu0
        %v3559 = vpop.trf.xlu0
        %v3560 = vpop.trf.xlu0
        %v3561 = vpop.trf.xlu0
        %v3562 = vpop.trf.xlu0
        %v3563 = vpop.trf.xlu0
        %v3564 = vpop.trf.xlu0
        %v3565 = vpop.trf.xlu0
        %v3566 = vpop.trf.xlu0
        %v3567 = vpop.trf.xlu0
        %v3568 = vpop.trf.xlu0
        %v3569 = vpop.trf.xlu0
        %v3570 = vpop.trf.xlu0
        %v3571 = vpop.trf.xlu0
        %v3572 = vpop.trf.xlu0
        %v3573 = vrot.slane %v3525, 4
        %v3574 = vsel %vm954, %v3573, %v3461
        %v3575 = vrot.slane %v3461, 4
        %v3576 = vsel %vm954, %v3525, %v3575
        %v3578 = vunpack.c.l.s4 1983009808
        %v3579 = vunpack.c.0.s8 %v3578
        %v3580 = vperm.slane %v3574, %v3579
        %v3582 = vunpack.c.l.s4 1983009808
        %v3583 = vunpack.c.0.s8 %v3582
        %v3584 = vperm.slane %v3576, %v3583
        %v3585 = vrot.slane %v3557, 4
        %v3586 = vsel %vm954, %v3585, %v3493
        %v3587 = vrot.slane %v3493, 4
        %v3588 = vsel %vm954, %v3557, %v3587
        %v3590 = vunpack.c.l.s4 1983009808
        %v3591 = vunpack.c.0.s8 %v3590
        %v3592 = vperm.slane %v3586, %v3591
        %v3594 = vunpack.c.l.s4 1983009808
        %v3595 = vunpack.c.0.s8 %v3594
        %v3596 = vperm.slane %v3588, %v3595
        %v3597 = vrot.slane %v3592, 4
        %v3598 = vsel %vm954, %v3597, %v3580
        %v3599 = vrot.slane %v3580, 4
        %v3600 = vsel %vm954, %v3592, %v3599
        %v3602 = vunpack.c.l.s4 1934713408
        %v3603 = vunpack.c.0.s8 %v3602
        %v3604 = vperm.slane %v3598, %v3603
        %v3606 = vunpack.c.l.s4 1934713408
        %v3607 = vunpack.c.0.s8 %v3606
        %v3608 = vperm.slane %v3600, %v3607
        %v3609 = vrot.slane %v3596, 4
        %v3610 = vsel %vm954, %v3609, %v3584
        %v3611 = vrot.slane %v3584, 4
        %v3612 = vsel %vm954, %v3596, %v3611
        %v3614 = vunpack.c.l.s4 1934713408
        %v3615 = vunpack.c.0.s8 %v3614
        %v3616 = vperm.slane %v3610, %v3615
        %v3618 = vunpack.c.l.s4 1934713408
        %v3619 = vunpack.c.0.s8 %v3618
        %v3620 = vperm.slane %v3612, %v3619
        %v3621 = vrot.slane %v3604, 4
        %v3622 = vsel %vm954, 0.0, %v3621
        %v3623 = vrot.slane %v3608, 4
        %v3624 = vsel %vm954, 0.0, %v3623
        %v3625 = vrot.slane %v3616, 4
        %v3626 = vsel %vm954, 0.0, %v3625
        %v3627 = vrot.slane %v3620, 4
        %v3628 = vsel %vm954, 0.0, %v3627
        %v3629 = vsel %vm954, %v3623, %v3604
        %v3631 = vunpack.c.l.s4 1983009808
        %v3632 = vunpack.c.0.s8 %v3631
        %v3633 = vperm.slane %v3629, %v3632
        %v3634 = vrot.slane %v3624, 4
        %v3635 = vsel %vm954, %v3634, %v3622
        %v3637 = vunpack.c.l.s4 1983009808
        %v3638 = vunpack.c.0.s8 %v3637
        %v3639 = vperm.slane %v3635, %v3638
        %v3640 = vsel %vm954, %v3627, %v3616
        %v3642 = vunpack.c.l.s4 1983009808
        %v3643 = vunpack.c.0.s8 %v3642
        %v3644 = vperm.slane %v3640, %v3643
        %v3645 = vrot.slane %v3628, 4
        %v3646 = vsel %vm954, %v3645, %v3626
        %v3648 = vunpack.c.l.s4 1983009808
        %v3649 = vunpack.c.0.s8 %v3648
        %v3650 = vperm.slane %v3646, %v3649
        %v3651 = vrot.slane %v3639, 4
        %v3652 = vsel %vm954, %v3651, %v3633
        %v3653 = vrot.slane %v3633, 4
        %v3654 = vsel %vm954, %v3639, %v3653
        %v3656 = vunpack.c.l.s4 1934713408
        %v3657 = vunpack.c.0.s8 %v3656
        %v3658 = vperm.slane %v3652, %v3657
        %v3660 = vunpack.c.l.s4 1934713408
        %v3661 = vunpack.c.0.s8 %v3660
        %v3662 = vperm.slane %v3654, %v3661
        %v3663 = vrot.slane %v3650, 4
        %v3664 = vsel %vm954, %v3663, %v3644
        %v3665 = vrot.slane %v3644, 4
        %v3666 = vsel %vm954, %v3650, %v3665
        %v3668 = vunpack.c.l.s4 1934713408
        %v3669 = vunpack.c.0.s8 %v3668
        %v3670 = vperm.slane %v3664, %v3669
        %v3672 = vunpack.c.l.s4 1934713408
        %v3673 = vunpack.c.0.s8 %v3672
        %v3674 = vperm.slane %v3666, %v3673
        %v3675 = vrot.slane %v3670, 4
        %v3676 = vsel %vm954, %v3675, %v3658
        %v3677 = vrot.slane %v3658, 4
        %v3678 = vsel %vm954, %v3670, %v3677
        %v3679 = vrot.slane %v3674, 4
        %v3680 = vsel %vm954, %v3679, %v3662
        %v3681 = vrot.slane %v3662, 4
        %v3682 = vsel %vm954, %v3674, %v3681
        %3684 = vrot.lane.b32.xlu0 %v3678, 8
        %v3685 = vpop.permute.xlu0 %3684
        %3688 = vrot.lane.b32.xlu0 %v3680, 16
        %v3689 = vpop.permute.xlu0 %3688
        %3692 = vrot.lane.b32.xlu0 %v3682, 24
        %v3693 = vpop.permute.xlu0 %3692
        %v3695 = vsel %vm1579, %v3676, %v3685
        %vm3696 = vcmask 130048
        %v3697 = vsel %vm3696, %v3695, %v3689
        %vm3698 = vcmask 195584
        %v3699 = vsel %vm3698, %v3697, %v3693
        %v3700 = vpack.c.bf16 %v3699, %v3699
        %v3702 = vperm.slane %v821, 0
        %v3708 = vunpack.c.l.b16 %v817
        %v3709 = vunpack.c.l.b16 %v818
        %v3710 = vunpack.c.l.b16 %v819
        %v3711 = vunpack.c.l.b16 %v820
        %v3712 = vpack.c.b16 %v3709, %v3708
        %v3713 = vpack.c.b16 %v3711, %v3710
        %v3717 = vsel %vm867, %v3700, 0
        %3719 = vmatpush.bf16.msra.mxu0 0
        %3720 = vmatpush.bf16.msra.mxu0 0
        %3721 = vmatpush.bf16.msra.mxu0 0
        %3722 = vmatpush.bf16.msra.mxu0 0
        %3723 = vmatpush.bf16.msra.mxu0 0
        %3724 = vmatpush.bf16.msra.mxu0 0
        %3725 = vmatpush.bf16.msra.mxu0 %v3713
        %3726 = vmatpush.bf16.msra.mxu0 %v3712
        %3727 = vmatmul.bf16.gmra.mxu0 %v3717
        %v3728 = vpop.f32.mrf.mxu0
        %v3729 = vadd.f32 %v3702, %v3728
        %v3730 = vpop.f32.mrf.mxu0
        %3731 = vdwg.mxu0
        %v3732 = vadd.f32 %v3729, %v840
        %v3733 = vsel %vm867, %v3732, 0.0
        %3734 = vadd.xlane.f32.xlu0 %v3733
        %v3735 = vpop.xlane.xlu0 %3734
        %v3736 = vrcp.pop 32.0
        %v3737 = vmul.f32 32.0, %v3736
        %v3738 = vsub.f32 1.0, %v3737
        %v3739 = vmul.f32 %v3736, %v3738
        %v3740 = vadd.f32 %v3736, %v3739
        %vm3741 = vweird.f32 %v3736
        %v3742 = vsel %vm3741, %v3736, %v3740
        %v3743 = vmul.f32 %v3735, %v3742
        %v3744 = vsub.f32 %v3732, %v3743
        %v3745 = vmul.f32 %v3744, %v3744
        %v3746 = vsel %vm867, %v3745, 0.0
        %3747 = vadd.xlane.f32.xlu0 %v3746
        %v3748 = vpop.xlane.xlu0 %3747
        %v3749 = vmul.f32 %v3748, %v3742
        %v3750 = vadd.f32 %v3749, 1e-05
        %v3751 = vrsqrt.pop %v3750
        %v3752 = vmul.f32 %v3751, %v3750
        %v3753 = vmul.f32 %v3752, %v3751
        %v3754 = vmul.f32 0.5, %v3753
        %v3755 = vsub.f32 1.5, %v3754
        %v3756 = vmul.f32 %v3751, %v3755
        %vm3757 = vweird.f32 %v3750
        %vm3758 = vweird.f32 %v3751
        %vm3759 = vmor %vm3757, %vm3758
        %v3760 = vsel %vm3759, %v3751, %v3756
        %v3761 = vmul.f32 %v3744, %v3760
        %v3763 = vperm.slane %v822, 0
        %v3765 = vmul.f32 %v3761, %v3763
        %v3767 = vperm.slane %v823, 0
        %v3769 = vadd.f32 %v3765, %v3767
        %v3770 = vpack.c.bf16 %v3769, %v3769
        %v3772 = vperm.slane %v828, 0
        %v3778 = vunpack.c.l.b16 %v824
        %v3779 = vunpack.c.l.b16 %v825
        %v3780 = vunpack.c.l.b16 %v826
        %v3781 = vunpack.c.l.b16 %v827
        %v3782 = vpack.c.b16 %v3779, %v3778
        %v3783 = vpack.c.b16 %v3781, %v3780
        %v3787 = vsel %vm867, %v3770, 0
        %3789 = vmatpush.bf16.msra.mxu0 0
        %3790 = vmatpush.bf16.msra.mxu0 0
        %3791 = vmatpush.bf16.msra.mxu0 0
        %3792 = vmatpush.bf16.msra.mxu0 0
        %3793 = vmatpush.bf16.msra.mxu0 0
        %3794 = vmatpush.bf16.msra.mxu0 0
        %3795 = vmatpush.bf16.msra.mxu0 %v3783
        %3796 = vmatpush.bf16.msra.mxu0 %v3782
        %3797 = vmatmul.bf16.gmra.mxu0 %v3787
        %v3798 = vpop.f32.mrf.mxu0
        %v3799 = vadd.f32 %v3772, %v3798
        %v3800 = vpop.f32.mrf.mxu0
        %3801 = vdwg.mxu0
        %v3802 = vmax.f32 %v3799, 0.0
        %v3803 = vpack.c.bf16 %v3802, %v3802
        %v3805 = vperm.slane %v837, 0
        %v3815 = vunpack.c.l.b16 %v829
        %v3816 = vunpack.c.l.b16 %v830
        %v3817 = vunpack.c.l.b16 %v831
        %v3818 = vunpack.c.l.b16 %v832
        %v3819 = vunpack.c.l.b16 %v833
        %v3820 = vunpack.c.l.b16 %v834
        %v3821 = vunpack.c.l.b16 %v835
        %v3822 = vunpack.c.l.b16 %v836
        %v3823 = vpack.c.b16 %v3816, %v3815
        %v3824 = vpack.c.b16 %v3818, %v3817
        %v3825 = vpack.c.b16 %v3820, %v3819
        %v3826 = vpack.c.b16 %v3822, %v3821
        %vm3831 = vcmask 523264
        %v3833 = vsel %vm3831, %v3803, 0
        %3835 = vmatpush.bf16.msra.mxu0 0
        %3836 = vmatpush.bf16.msra.mxu0 0
        %3837 = vmatpush.bf16.msra.mxu0 0
        %3838 = vmatpush.bf16.msra.mxu0 0
        %3839 = vmatpush.bf16.msra.mxu0 %v3826
        %3840 = vmatpush.bf16.msra.mxu0 %v3825
        %3841 = vmatpush.bf16.msra.mxu0 %v3824
        %3842 = vmatpush.bf16.msra.mxu0 %v3823
        %3843 = vmatmul.bf16.gmra.mxu0 %v3833
        %v3844 = vpop.f32.mrf.mxu0
        %v3845 = vadd.f32 %v3805, %v3844
        %v3846 = vpop.f32.mrf.mxu0
        %3847 = vdwg.mxu0
        %v3848 = vadd.f32 %v3769, %v3845
        %v3849 = vsel %vm867, %v3848, 0.0
        %3850 = vadd.xlane.f32.xlu0 %v3849
        %v3851 = vpop.xlane.xlu0 %3850
        %v3852 = vmul.f32 %v3851, %v3742
        %v3853 = vsub.f32 %v3848, %v3852
        %v3854 = vmul.f32 %v3853, %v3853
        %v3855 = vsel %vm867, %v3854, 0.0
        %3856 = vadd.xlane.f32.xlu0 %v3855
        %v3857 = vpop.xlane.xlu0 %3856
        %v3858 = vmul.f32 %v3857, %v3742
        %v3859 = vadd.f32 %v3858, 1e-05
        %v3860 = vrsqrt.pop %v3859
        %v3861 = vmul.f32 %v3860, %v3859
        %v3862 = vmul.f32 %v3861, %v3860
        %v3863 = vmul.f32 0.5, %v3862
        %v3864 = vsub.f32 1.5, %v3863
        %v3865 = vmul.f32 %v3860, %v3864
        %vm3866 = vweird.f32 %v3859
        %vm3867 = vweird.f32 %v3860
        %vm3868 = vmor %vm3866, %vm3867
        %v3869 = vsel %vm3868, %v3860, %v3865
        %v3870 = vmul.f32 %v3853, %v3869
        %v3872 = vperm.slane %v838, 0
        %v3874 = vmul.f32 %v3870, %v3872
        %v3876 = vperm.slane %v839, 0
        %v3878 = vadd.f32 %v3874, %v3876
        %3879 = vst.msk [vmem:[%s784] sm:$0xff] %vm867, %v3878
        %s3880 = sand.u32 %s501, 1
        %s3881 = scalar_lea.sflag [#allocation4], %s3880
        %s3882 = sand.u32 %s501, 1
        %s3883 = smul.addr %s3882, 8
        %s3884 = scalar_lea.vmem [#allocation13], %s3883
        // Predicated region
        $region125: #{tpu_custom_call.1} parent=99 // pred_check
          %p3885 = pneg %p511
        $region126: #{tpu_custom_call.1} parent=99 // pred_check_branch
          %3887 = sbr.rel (%p3885) target = $region128
        $region127: #{tpu_custom_call.1} parent=99 // pred_region
          %3889 = vsyncadd %s3881, 0
          %s3890 = sadd.s32 %s45, %s44
          %s3891 = smul.addr %s3890, 8
          %s3892 = scalar_lea.hbm %s20, %s3891
          %s3894 = sshll.u32 %s3884, 4
          %s3895 = int_to_ptr.vmem [resolvable:$true] %s3894
          %s3896 = sshll.u32 %s3892, 4
          %s3897 = int_to_ptr.hbm [resolvable:$true] %s3896
          %3899 = dma.vmem_to_hbm [thread:$0]  %s3895, 128, %s3897, %s3881
        $region128: #{tpu_custom_call.1} parent=99 // pred_fallthru
          _
      $region100: #{tpu_custom_call.1} parent=5 // pred_fallthru
        _
      %p3900 = scmp.le.s32.totalorder 2, %s35
      // Predicated region
      $region129: #{tpu_custom_call.1} parent=5 // pred_check
        %p3901 = pneg %p3900
      $region130: #{tpu_custom_call.1} parent=5 // pred_check_branch
        %3903 = sbr.rel (%p3901) target = $region132
      $region131: #{tpu_custom_call.1} parent=5 // pred_region
        %s3904 = ssub.s32 %s35, 2
        // Predicated region
        $region133: #{tpu_custom_call.1} parent=131 // pred_check
          %p3905 = pneg %p517
        $region134: #{tpu_custom_call.1} parent=131 // pred_check_branch
          %3907 = sbr.rel (%p3905) target = $region136
        $region135: #{tpu_custom_call.1} parent=131 // pred_region
          %s3908 = sand.u32 %s502, 1
          %s3909 = scalar_lea.sflag [#allocation4], %s3908
          %s3910 = sand.u32 %s502, 1
          %s3911 = smul.addr %s3910, 8
          %s3912 = scalar_lea.vmem [#allocation13], %s3911
          %3914 = dma.done %s3909, 128
        $region136: #{tpu_custom_call.1} parent=131 // pred_fallthru
          _
      $region132: #{tpu_custom_call.1} parent=5 // pred_fallthru
        _
    $region6: #{tpu_custom_call.1} parent=1 // loop_footer
      %s39 = sadd.s32 1, %s35
    $region7: #{tpu_custom_call.1} parent=1 // loop_footer_branch
      %34 = sbr.rel target = $region3
    $region8: #{tpu_custom_call.1} parent=1 // loop_exit
      _
    %3915 = vsyncpa [#allocation3], 1
    %s3916 = scalar_lea.sflag [#allocation3], 1
    %3917 = vsyncpa %s3916, 1
    %3918 = vsyncpa [#allocation6], 1
    %3919 = vsyncpa [#allocation9], 1
    %3920 = vsyncpa [#allocation12], 1
    %3921 = vsyncpa [#allocation4], 1
    %s3922 = scalar_lea.sflag [#allocation4], 1
    %3923 = vsyncpa %s3922, 1

</llo_original>
